<compile_context>
chip_gen: v6e
topology: v6e:2x2x1
jax: 0.10.0
libtpu: 0.0.40
codegen_flags: <defaults>
</compile_context>

<pallas_src>
import math
from functools import partial

import jax
import jax.numpy as jnp
from jax.experimental import pallas as pl
from jax.experimental.pallas import tpu as pltpu  # noqa: F401  (TPU backend assumed)

# ---- small synthetic "bert-base-chinese" config ----
VOCAB = 100
MAX_POS = 16
TYPE_VOCAB = 2
HIDDEN = 32
NUM_LAYERS = 2
NUM_HEADS = 4
HEAD_DIM = HIDDEN // NUM_HEADS
INTERMEDIATE = 4 * HIDDEN
N_CLASSES = 5
LN_EPS = 1e-12
LANE = 128      # lane-dense padded classifier output width
QKV_PAD = 128   # fused QKV weight padded from 3*HIDDEN=96 to 128 lanes


def _layernorm(x, gamma, beta):
    mu = jnp.mean(x, axis=-1, keepdims=True)
    var = jnp.mean((x - mu) ** 2, axis=-1, keepdims=True)
    return (x - mu) * jax.lax.rsqrt(var + LN_EPS) * gamma + beta


def _gelu(x):
    # TODO(synk): HF BERT uses exact erf-GELU; tanh approximation used here for Mosaic-friendly lowering.
    c = math.sqrt(2.0 / math.pi)
    return 0.5 * x * (1.0 + jnp.tanh(c * (x + 0.044715 * x * x * x)))


# ------------------------- fused Pallas kernel -------------------------

def bert_model_kernel(x_ref, mask_ref, sel_ref,
                      wqkv_ref, bqkv_ref, woh_ref, bo_ref, g1_ref, be1_ref,
                      wi_ref, bi_ref, wo2_ref, bo2_ref, g2_ref, be2_ref,
                      wp_ref, bp_ref, wc_ref, bc_ref,
                      out_ref, *, num_layers, num_heads, head_dim, hidden):
    """Entire BERT encoder stack + pooler + classifier, single invocation (no grid).

    x_ref:    (B*S, H) f32 embedded + layernormed tokens (batch folded into rows)
    mask_ref: (B*S, B*S) f32 additive mask (block-diagonal over batch + padding mask)
    sel_ref:  (B, B*S) bf16 one-hot CLS-row selector
    wqkv_ref: (L, H, 128) bf16 fused [Wq|Wk|Wv|0] weights (Wq pre-scaled by 1/sqrt(head_dim))
    woh_ref:  (L, NUM_HEADS, HEAD_DIM, H) bf16 output projection split by head rows
    other weights bf16; biases / LN params f32 with an explicit broadcast row dim.
    out_ref:  (B, 128) f32 zero-padded logits
    """
    x = x_ref[...]          # (B*S, H) f32
    mask = mask_ref[...]    # (B*S, B*S) f32 additive

    for l in range(num_layers):                    # static unroll (NUM_LAYERS = 2)
        # --- self-attention: one fused QKV projection (Wq carries 1/sqrt(head_dim)) ---
        xb = x.astype(jnp.bfloat16)
        qkv = jnp.dot(xb, wqkv_ref[l],
                      preferred_element_type=jnp.float32) + bqkv_ref[l]   # (B*S, 128) f32

        attn = jnp.zeros_like(x)                   # register accumulator for sum_h ctx_h @ Wo_h
        for h in range(num_heads):                 # static unroll over heads
            qh = qkv[:, h * head_dim:(h + 1) * head_dim].astype(jnp.bfloat16)
            kh = qkv[:, hidden + h * head_dim:hidden + (h + 1) * head_dim].astype(jnp.bfloat16)
            vh = qkv[:, 2 * hidden + h * head_dim:2 * hidden + (h + 1) * head_dim].astype(jnp.bfloat16)

            # (B*S, B*S) scores for all batch elements at once; the block-diagonal additive
            # mask keeps tokens from attending across sequences. dot_general contracts the
            # feature dim of both operands (== q @ k.T) without an explicit XLU transpose.
            s = jax.lax.dot_general(qh, kh, (((1,), (1,)), ((), ())),
                                    preferred_element_type=jnp.float32) + mask
            s = s - jnp.max(s, axis=-1, keepdims=True)
            p = jnp.exp(s)                                                   # un-normalized
            inv_l = pl.reciprocal(jnp.sum(p, axis=-1, keepdims=True), approx=True)
            # normalize AFTER the PV matmul: scale the (rows, head_dim) context, not the
            # (rows, rows) probability matrix.
            ctx = jnp.dot(p.astype(jnp.bfloat16), vh,
                          preferred_element_type=jnp.float32) * inv_l        # (B*S, head_dim)
            # fold the output projection into the head loop (no ctx scratch round trip).
            attn = attn + jnp.dot(ctx.astype(jnp.bfloat16), woh_ref[l, h],
                                  preferred_element_type=jnp.float32)

        attn = attn + bo_ref[l]
        x1 = _layernorm(x + attn, g1_ref[l], be1_ref[l])

        # --- feed-forward ---
        hdn = _gelu(jnp.dot(x1.astype(jnp.bfloat16), wi_ref[l],
                            preferred_element_type=jnp.float32) + bi_ref[l])
        ffn = jnp.dot(hdn.astype(jnp.bfloat16), wo2_ref[l],
                      preferred_element_type=jnp.float32) + bo2_ref[l]
        x = _layernorm(x1 + ffn, g2_ref[l], be2_ref[l])

    # --- pooler (CLS token of each sequence, picked via one-hot matmul) ---
    cls = jnp.dot(sel_ref[...], x.astype(jnp.bfloat16),
                  preferred_element_type=jnp.float32)                        # (B, H)
    pooled = jnp.tanh(jnp.dot(cls.astype(jnp.bfloat16), wp_ref[...],
                              preferred_element_type=jnp.float32) + bp_ref[...])
    # nn.Dropout(p=0.3) is the identity in eval/inference mode.
    out_ref[...] = (
        jnp.dot(pooled.astype(jnp.bfloat16), wc_ref[...],
                preferred_element_type=jnp.float32) + bc_ref[...]
    ).astype(out_ref.dtype)


# ------------------------- weight preparation -------------------------

def _prepare_weights(params):
    """Stack per-layer params, fuse QKV (with 1/sqrt(head_dim) folded into Wq), split Wo
    by head rows, pad lane dims, and cast matmul weights to bf16 (biases/LN stay f32)."""
    layers = params["layers"]
    L = NUM_LAYERS
    scale = 1.0 / math.sqrt(HEAD_DIM)

    def stack(i):
        return jnp.stack([lp[i] for lp in layers], axis=0)

    wq, bq = stack(0) * scale, stack(1) * scale
    wk, bk = stack(2), stack(3)
    wv, bv = stack(4), stack(5)
    wqkv = jnp.concatenate([wq, wk, wv], axis=-1)            # (L, H, 3H)
    bqkv = jnp.concatenate([bq, bk, bv], axis=-1)            # (L, 3H)
    wqkv_pad = jnp.zeros((L, HIDDEN, QKV_PAD), jnp.float32).at[:, :, :3 * HIDDEN].set(wqkv)
    bqkv_pad = jnp.zeros((L, 1, QKV_PAD), jnp.float32).at[:, 0, :3 * HIDDEN].set(bqkv)

    woh = stack(6).reshape(L, NUM_HEADS, HEAD_DIM, HIDDEN)   # Wo split by head rows
    bo = stack(7).reshape(L, 1, HIDDEN)
    g1 = stack(8).reshape(L, 1, HIDDEN)
    be1 = stack(9).reshape(L, 1, HIDDEN)
    wi = stack(10)                                           # (L, H, 4H)
    bi = stack(11).reshape(L, 1, INTERMEDIATE)
    wo2 = stack(12)                                          # (L, 4H, H)
    bo2 = stack(13).reshape(L, 1, HIDDEN)
    g2 = stack(14).reshape(L, 1, HIDDEN)
    be2 = stack(15).reshape(L, 1, HIDDEN)

    wp = params["pool_w"]
    bp = params["pool_b"].reshape(1, HIDDEN)
    # Zero-pad the classifier to 128 output lanes -> lane-dense (unmasked) store.
    wc_pad = jnp.zeros((HIDDEN, LANE), jnp.float32).at[:, :N_CLASSES].set(params["out_w"])
    bc_pad = jnp.zeros((1, LANE), jnp.float32).at[0, :N_CLASSES].set(params["out_b"])

    bf = lambda a: a.astype(jnp.bfloat16)
    return (bf(wqkv_pad), bqkv_pad, bf(woh), bo, g1, be1,
            bf(wi), bi, bf(wo2), bo2, g2, be2,
            bf(wp), bp, bf(wc_pad), bc_pad)


# ------------------------- wrapper -------------------------

def bert_news_classifier(params, input_ids, attention_mask):
    B, S = input_ids.shape
    H = HIDDEN

    # --- embeddings (gather is glue; plain JAX) ---
    x = (params["word_emb"][input_ids]
         + params["pos_emb"][:S][None, :, :]
         + params["type_emb"][0][None, None, :])
    x = _layernorm(x, params["emb_ln_g"], params["emb_ln_b"])
    x2 = x.reshape(B * S, H).astype(jnp.float32)
    # embedding dropout: identity at inference

    # Combined additive attention mask over the flattened (B*S) token axis:
    # block-diagonal over batch (no cross-sequence attention) + padding mask,
    # both as -10000 like HF BERT's extended attention mask.
    batch_ids = jnp.repeat(jnp.arange(B), S)
    same_batch = batch_ids[:, None] == batch_ids[None, :]
    key_ok = (attention_mask.reshape(B * S) > 0)[None, :]
    add_mask = jnp.where(same_batch & key_ok, 0.0, -10000.0).astype(jnp.float32)

    # CLS-row selector: picks token 0 of each sequence with a single tiny matmul.
    sel = jax.nn.one_hot(jnp.arange(B) * S, B * S, dtype=jnp.bfloat16)

    weights = _prepare_weights(params)

    logits_pad = pl.pallas_call(
        partial(bert_model_kernel, num_layers=NUM_LAYERS,
                num_heads=NUM_HEADS, head_dim=HEAD_DIM, hidden=H),
        out_shape=jax.ShapeDtypeStruct((B, LANE), jnp.float32),
    )(x2, add_mask, sel, *weights)

    return logits_pad[:, :N_CLASSES]


# ------------------------- deterministic parameter init -------------------------

def init_params(key):
    keys = iter(jax.random.split(key, 64))

    def w(shape):
        return jax.random.normal(next(keys), shape, jnp.float32) * 0.02

    def z(shape):
        return jnp.zeros(shape, jnp.float32)

    def o(shape):
        return jnp.ones(shape, jnp.float32)

    params = {
        "word_emb": w((VOCAB, HIDDEN)),
        "pos_emb": w((MAX_POS, HIDDEN)),
        "type_emb": w((TYPE_VOCAB, HIDDEN)),
        "emb_ln_g": o((HIDDEN,)),
        "emb_ln_b": z((HIDDEN,)),
        "layers": [],
        "pool_w": w((HIDDEN, HIDDEN)),
        "pool_b": z((HIDDEN,)),
        "out_w": w((HIDDEN, N_CLASSES)),
        "out_b": z((N_CLASSES,)),
    }
    for _ in range(NUM_LAYERS):
        lp = [
            w((HIDDEN, HIDDEN)), z((HIDDEN,)),                 # Wq, bq
            w((HIDDEN, HIDDEN)), z((HIDDEN,)),                 # Wk, bk
            w((HIDDEN, HIDDEN)), z((HIDDEN,)),                 # Wv, bv
            w((HIDDEN, HIDDEN)), z((HIDDEN,)),                 # Wo, bo
            o((HIDDEN,)), z((HIDDEN,)),                        # LN1 gamma, beta
            w((HIDDEN, INTERMEDIATE)), z((INTERMEDIATE,)),     # FFN in
            w((INTERMEDIATE, HIDDEN)), z((HIDDEN,)),           # FFN out
            o((HIDDEN,)), z((HIDDEN,)),                        # LN2 gamma, beta
        ]
        params["layers"].append(lp)
    return params


if __name__ == "__main__":
    key = jax.random.PRNGKey(0)
    pkey, ikey = jax.random.split(key)
    params = init_params(pkey)

    B, S = 2, 8
    input_ids = jax.random.randint(ikey, (B, S), 0, VOCAB, dtype=jnp.int32)
    attention_mask = jnp.ones((B, S), dtype=jnp.int32)

    logits = jax.jit(bert_news_classifier)(params, input_ids, attention_mask)
    jax.block_until_ready(logits)
    assert logits.shape == (B, N_CLASSES) and logits.dtype == jnp.float32
    print("KERNEL_OK")
</pallas_src>

<mosaic_0001>
module attributes {stable_mosaic.version = 11 : i64} {
  func.func @bert_model_kernel(%arg0: memref<16x32xf32, #tpu.memory_space<vmem>>, %arg1: memref<16x16xf32, #tpu.memory_space<vmem>>, %arg2: memref<2x16xbf16, #tpu.memory_space<vmem>>, %arg3: memref<2x32x128xbf16, #tpu.memory_space<vmem>>, %arg4: memref<2x1x128xf32, #tpu.memory_space<vmem>>, %arg5: memref<2x4x8x32xbf16, #tpu.memory_space<vmem>>, %arg6: memref<2x1x32xf32, #tpu.memory_space<vmem>>, %arg7: memref<2x1x32xf32, #tpu.memory_space<vmem>>, %arg8: memref<2x1x32xf32, #tpu.memory_space<vmem>>, %arg9: memref<2x32x128xbf16, #tpu.memory_space<vmem>>, %arg10: memref<2x1x128xf32, #tpu.memory_space<vmem>>, %arg11: memref<2x128x32xbf16, #tpu.memory_space<vmem>>, %arg12: memref<2x1x32xf32, #tpu.memory_space<vmem>>, %arg13: memref<2x1x32xf32, #tpu.memory_space<vmem>>, %arg14: memref<2x1x32xf32, #tpu.memory_space<vmem>>, %arg15: memref<32x32xbf16, #tpu.memory_space<vmem>>, %arg16: memref<1x32xf32, #tpu.memory_space<vmem>>, %arg17: memref<32x128xbf16, #tpu.memory_space<vmem>>, %arg18: memref<1x128xf32, #tpu.memory_space<vmem>>, %arg19: memref<2x128xf32, #tpu.memory_space<vmem>>) attributes {dimension_semantics = [], scalar_prefetch = 0 : i64, scratch_operands = 0 : i64, tpu.core_type = #tpu.core_type<tc>} {
    %c0 = arith.constant 0 : index
    %c0_0 = arith.constant 0 : index
    %0 = vector.load %arg0[%c0, %c0_0] : memref<16x32xf32, #tpu.memory_space<vmem>>, vector<16x32xf32>
    %c0_1 = arith.constant 0 : index
    %c0_2 = arith.constant 0 : index
    %1 = vector.load %arg1[%c0_1, %c0_2] : memref<16x16xf32, #tpu.memory_space<vmem>>, vector<16x16xf32>
    %2 = arith.truncf %0 : vector<16x32xf32> to vector<16x32xbf16>
    %c0_3 = arith.constant 0 : index
    %c0_4 = arith.constant 0 : index
    %c0_5 = arith.constant 0 : index
    %3 = vector.load %arg3[%c0_3, %c0_4, %c0_5] : memref<2x32x128xbf16, #tpu.memory_space<vmem>>, vector<1x32x128xbf16>
    %4 = vector.shape_cast %3 : vector<1x32x128xbf16> to vector<32x128xbf16>
    %cst = arith.constant dense<0.000000e+00> : vector<16x128xf32>
    %5 = tpu.matmul %2, %4, %cst {dimension_numbers = #tpu.dot_dimension_numbers<[1], [0], [0], [1], [0, 0, 1, 1], [], []>} : vector<16x32xbf16>, vector<32x128xbf16>, vector<16x128xf32> -> vector<16x128xf32>
    %c0_6 = arith.constant 0 : index
    %c0_7 = arith.constant 0 : index
    %c0_8 = arith.constant 0 : index
    %6 = vector.load %arg4[%c0_6, %c0_7, %c0_8] : memref<2x1x128xf32, #tpu.memory_space<vmem>>, vector<1x1x128xf32>
    %7 = vector.shape_cast %6 : vector<1x1x128xf32> to vector<1x128xf32>
    %8 = vector.broadcast %7 : vector<1x128xf32> to vector<16x128xf32>
    %9 = arith.addf %5, %8 : vector<16x128xf32>
    %cst_9 = arith.constant 0.000000e+00 : f32
    %10 = vector.broadcast %cst_9 : f32 to vector<16x32xf32>
    %11 = vector.extract_strided_slice %9 {offsets = [0, 0], sizes = [16, 8], strides = [1, 1]} : vector<16x128xf32> to vector<16x8xf32>
    %12 = arith.truncf %11 : vector<16x8xf32> to vector<16x8xbf16>
    %13 = vector.extract_strided_slice %9 {offsets = [0, 32], sizes = [16, 8], strides = [1, 1]} : vector<16x128xf32> to vector<16x8xf32>
    %14 = arith.truncf %13 : vector<16x8xf32> to vector<16x8xbf16>
    %15 = vector.extract_strided_slice %9 {offsets = [0, 64], sizes = [16, 8], strides = [1, 1]} : vector<16x128xf32> to vector<16x8xf32>
    %16 = arith.truncf %15 : vector<16x8xf32> to vector<16x8xbf16>
    %cst_10 = arith.constant dense<0.000000e+00> : vector<16x16xf32>
    %17 = tpu.matmul %12, %14, %cst_10 {dimension_numbers = #tpu.dot_dimension_numbers<[1], [1], [0], [0], [0, 0, 1, 0], [], []>} : vector<16x8xbf16>, vector<16x8xbf16>, vector<16x16xf32> -> vector<16x16xf32>
    %18 = arith.addf %17, %1 : vector<16x16xf32>
    %cst_11 = arith.constant dense<0xFF800000> : vector<16xf32>
    %19 = vector.multi_reduction <maximumf>, %18, %cst_11 [1] : vector<16x16xf32> to vector<16xf32>
    %20 = vector.shape_cast %19 : vector<16xf32> to vector<16x1xf32>
    %21 = vector.broadcast %20 : vector<16x1xf32> to vector<16x16xf32>
    %22 = arith.subf %18, %21 : vector<16x16xf32>
    %23 = math.exp %22 : vector<16x16xf32>
    %cst_12 = arith.constant dense<0.000000e+00> : vector<16xf32>
    %24 = vector.multi_reduction <add>, %23, %cst_12 [1] : vector<16x16xf32> to vector<16xf32>
    %25 = vector.shape_cast %24 : vector<16xf32> to vector<16x1xf32>
    %26 = tpu.reciprocal %25 {approx = true} : vector<16x1xf32> -> vector<16x1xf32>
    %27 = arith.truncf %23 : vector<16x16xf32> to vector<16x16xbf16>
    %cst_13 = arith.constant dense<0.000000e+00> : vector<16x8xf32>
    %28 = tpu.matmul %27, %16, %cst_13 {dimension_numbers = #tpu.dot_dimension_numbers<[1], [0], [0], [1], [0, 0, 1, 1], [], []>} : vector<16x16xbf16>, vector<16x8xbf16>, vector<16x8xf32> -> vector<16x8xf32>
    %29 = vector.broadcast %26 : vector<16x1xf32> to vector<16x8xf32>
    %30 = arith.mulf %28, %29 : vector<16x8xf32>
    %31 = arith.truncf %30 : vector<16x8xf32> to vector<16x8xbf16>
    %c0_14 = arith.constant 0 : index
    %c0_15 = arith.constant 0 : index
    %c0_16 = arith.constant 0 : index
    %c0_17 = arith.constant 0 : index
    %32 = vector.load %arg5[%c0_14, %c0_15, %c0_16, %c0_17] : memref<2x4x8x32xbf16, #tpu.memory_space<vmem>>, vector<1x1x8x32xbf16>
    %33 = vector.shape_cast %32 : vector<1x1x8x32xbf16> to vector<8x32xbf16>
    %cst_18 = arith.constant dense<0.000000e+00> : vector<16x32xf32>
    %34 = tpu.matmul %31, %33, %cst_18 {dimension_numbers = #tpu.dot_dimension_numbers<[1], [0], [0], [1], [0, 0, 1, 1], [], []>} : vector<16x8xbf16>, vector<8x32xbf16>, vector<16x32xf32> -> vector<16x32xf32>
    %35 = arith.addf %10, %34 : vector<16x32xf32>
    %36 = vector.extract_strided_slice %9 {offsets = [0, 8], sizes = [16, 8], strides = [1, 1]} : vector<16x128xf32> to vector<16x8xf32>
    %37 = arith.truncf %36 : vector<16x8xf32> to vector<16x8xbf16>
    %38 = vector.extract_strided_slice %9 {offsets = [0, 40], sizes = [16, 8], strides = [1, 1]} : vector<16x128xf32> to vector<16x8xf32>
    %39 = arith.truncf %38 : vector<16x8xf32> to vector<16x8xbf16>
    %40 = vector.extract_strided_slice %9 {offsets = [0, 72], sizes = [16, 8], strides = [1, 1]} : vector<16x128xf32> to vector<16x8xf32>
    %41 = arith.truncf %40 : vector<16x8xf32> to vector<16x8xbf16>
    %cst_19 = arith.constant dense<0.000000e+00> : vector<16x16xf32>
    %42 = tpu.matmul %37, %39, %cst_19 {dimension_numbers = #tpu.dot_dimension_numbers<[1], [1], [0], [0], [0, 0, 1, 0], [], []>} : vector<16x8xbf16>, vector<16x8xbf16>, vector<16x16xf32> -> vector<16x16xf32>
    %43 = arith.addf %42, %1 : vector<16x16xf32>
    %cst_20 = arith.constant dense<0xFF800000> : vector<16xf32>
    %44 = vector.multi_reduction <maximumf>, %43, %cst_20 [1] : vector<16x16xf32> to vector<16xf32>
    %45 = vector.shape_cast %44 : vector<16xf32> to vector<16x1xf32>
    %46 = vector.broadcast %45 : vector<16x1xf32> to vector<16x16xf32>
    %47 = arith.subf %43, %46 : vector<16x16xf32>
    %48 = math.exp %47 : vector<16x16xf32>
    %cst_21 = arith.constant dense<0.000000e+00> : vector<16xf32>
    %49 = vector.multi_reduction <add>, %48, %cst_21 [1] : vector<16x16xf32> to vector<16xf32>
    %50 = vector.shape_cast %49 : vector<16xf32> to vector<16x1xf32>
    %51 = tpu.reciprocal %50 {approx = true} : vector<16x1xf32> -> vector<16x1xf32>
    %52 = arith.truncf %48 : vector<16x16xf32> to vector<16x16xbf16>
    %cst_22 = arith.constant dense<0.000000e+00> : vector<16x8xf32>
    %53 = tpu.matmul %52, %41, %cst_22 {dimension_numbers = #tpu.dot_dimension_numbers<[1], [0], [0], [1], [0, 0, 1, 1], [], []>} : vector<16x16xbf16>, vector<16x8xbf16>, vector<16x8xf32> -> vector<16x8xf32>
    %54 = vector.broadcast %51 : vector<16x1xf32> to vector<16x8xf32>
    %55 = arith.mulf %53, %54 : vector<16x8xf32>
    %56 = arith.truncf %55 : vector<16x8xf32> to vector<16x8xbf16>
    %c0_23 = arith.constant 0 : index
    %c1 = arith.constant 1 : index
    %c0_24 = arith.constant 0 : index
    %c0_25 = arith.constant 0 : index
    %57 = vector.load %arg5[%c0_23, %c1, %c0_24, %c0_25] : memref<2x4x8x32xbf16, #tpu.memory_space<vmem>>, vector<1x1x8x32xbf16>
    %58 = vector.shape_cast %57 : vector<1x1x8x32xbf16> to vector<8x32xbf16>
    %cst_26 = arith.constant dense<0.000000e+00> : vector<16x32xf32>
    %59 = tpu.matmul %56, %58, %cst_26 {dimension_numbers = #tpu.dot_dimension_numbers<[1], [0], [0], [1], [0, 0, 1, 1], [], []>} : vector<16x8xbf16>, vector<8x32xbf16>, vector<16x32xf32> -> vector<16x32xf32>
    %60 = arith.addf %35, %59 : vector<16x32xf32>
    %61 = vector.extract_strided_slice %9 {offsets = [0, 16], sizes = [16, 8], strides = [1, 1]} : vector<16x128xf32> to vector<16x8xf32>
    %62 = arith.truncf %61 : vector<16x8xf32> to vector<16x8xbf16>
    %63 = vector.extract_strided_slice %9 {offsets = [0, 48], sizes = [16, 8], strides = [1, 1]} : vector<16x128xf32> to vector<16x8xf32>
    %64 = arith.truncf %63 : vector<16x8xf32> to vector<16x8xbf16>
    %65 = vector.extract_strided_slice %9 {offsets = [0, 80], sizes = [16, 8], strides = [1, 1]} : vector<16x128xf32> to vector<16x8xf32>
    %66 = arith.truncf %65 : vector<16x8xf32> to vector<16x8xbf16>
    %cst_27 = arith.constant dense<0.000000e+00> : vector<16x16xf32>
    %67 = tpu.matmul %62, %64, %cst_27 {dimension_numbers = #tpu.dot_dimension_numbers<[1], [1], [0], [0], [0, 0, 1, 0], [], []>} : vector<16x8xbf16>, vector<16x8xbf16>, vector<16x16xf32> -> vector<16x16xf32>
    %68 = arith.addf %67, %1 : vector<16x16xf32>
    %cst_28 = arith.constant dense<0xFF800000> : vector<16xf32>
    %69 = vector.multi_reduction <maximumf>, %68, %cst_28 [1] : vector<16x16xf32> to vector<16xf32>
    %70 = vector.shape_cast %69 : vector<16xf32> to vector<16x1xf32>
    %71 = vector.broadcast %70 : vector<16x1xf32> to vector<16x16xf32>
    %72 = arith.subf %68, %71 : vector<16x16xf32>
    %73 = math.exp %72 : vector<16x16xf32>
    %cst_29 = arith.constant dense<0.000000e+00> : vector<16xf32>
    %74 = vector.multi_reduction <add>, %73, %cst_29 [1] : vector<16x16xf32> to vector<16xf32>
    %75 = vector.shape_cast %74 : vector<16xf32> to vector<16x1xf32>
    %76 = tpu.reciprocal %75 {approx = true} : vector<16x1xf32> -> vector<16x1xf32>
    %77 = arith.truncf %73 : vector<16x16xf32> to vector<16x16xbf16>
    %cst_30 = arith.constant dense<0.000000e+00> : vector<16x8xf32>
    %78 = tpu.matmul %77, %66, %cst_30 {dimension_numbers = #tpu.dot_dimension_numbers<[1], [0], [0], [1], [0, 0, 1, 1], [], []>} : vector<16x16xbf16>, vector<16x8xbf16>, vector<16x8xf32> -> vector<16x8xf32>
    %79 = vector.broadcast %76 : vector<16x1xf32> to vector<16x8xf32>
    %80 = arith.mulf %78, %79 : vector<16x8xf32>
    %81 = arith.truncf %80 : vector<16x8xf32> to vector<16x8xbf16>
    %c0_31 = arith.constant 0 : index
    %c2 = arith.constant 2 : index
    %c0_32 = arith.constant 0 : index
    %c0_33 = arith.constant 0 : index
    %82 = vector.load %arg5[%c0_31, %c2, %c0_32, %c0_33] : memref<2x4x8x32xbf16, #tpu.memory_space<vmem>>, vector<1x1x8x32xbf16>
    %83 = vector.shape_cast %82 : vector<1x1x8x32xbf16> to vector<8x32xbf16>
    %cst_34 = arith.constant dense<0.000000e+00> : vector<16x32xf32>
    %84 = tpu.matmul %81, %83, %cst_34 {dimension_numbers = #tpu.dot_dimension_numbers<[1], [0], [0], [1], [0, 0, 1, 1], [], []>} : vector<16x8xbf16>, vector<8x32xbf16>, vector<16x32xf32> -> vector<16x32xf32>
    %85 = arith.addf %60, %84 : vector<16x32xf32>
    %86 = vector.extract_strided_slice %9 {offsets = [0, 24], sizes = [16, 8], strides = [1, 1]} : vector<16x128xf32> to vector<16x8xf32>
    %87 = arith.truncf %86 : vector<16x8xf32> to vector<16x8xbf16>
    %88 = vector.extract_strided_slice %9 {offsets = [0, 56], sizes = [16, 8], strides = [1, 1]} : vector<16x128xf32> to vector<16x8xf32>
    %89 = arith.truncf %88 : vector<16x8xf32> to vector<16x8xbf16>
    %90 = vector.extract_strided_slice %9 {offsets = [0, 88], sizes = [16, 8], strides = [1, 1]} : vector<16x128xf32> to vector<16x8xf32>
    %91 = arith.truncf %90 : vector<16x8xf32> to vector<16x8xbf16>
    %cst_35 = arith.constant dense<0.000000e+00> : vector<16x16xf32>
    %92 = tpu.matmul %87, %89, %cst_35 {dimension_numbers = #tpu.dot_dimension_numbers<[1], [1], [0], [0], [0, 0, 1, 0], [], []>} : vector<16x8xbf16>, vector<16x8xbf16>, vector<16x16xf32> -> vector<16x16xf32>
    %93 = arith.addf %92, %1 : vector<16x16xf32>
    %cst_36 = arith.constant dense<0xFF800000> : vector<16xf32>
    %94 = vector.multi_reduction <maximumf>, %93, %cst_36 [1] : vector<16x16xf32> to vector<16xf32>
    %95 = vector.shape_cast %94 : vector<16xf32> to vector<16x1xf32>
    %96 = vector.broadcast %95 : vector<16x1xf32> to vector<16x16xf32>
    %97 = arith.subf %93, %96 : vector<16x16xf32>
    %98 = math.exp %97 : vector<16x16xf32>
    %cst_37 = arith.constant dense<0.000000e+00> : vector<16xf32>
    %99 = vector.multi_reduction <add>, %98, %cst_37 [1] : vector<16x16xf32> to vector<16xf32>
    %100 = vector.shape_cast %99 : vector<16xf32> to vector<16x1xf32>
    %101 = tpu.reciprocal %100 {approx = true} : vector<16x1xf32> -> vector<16x1xf32>
    %102 = arith.truncf %98 : vector<16x16xf32> to vector<16x16xbf16>
    %cst_38 = arith.constant dense<0.000000e+00> : vector<16x8xf32>
    %103 = tpu.matmul %102, %91, %cst_38 {dimension_numbers = #tpu.dot_dimension_numbers<[1], [0], [0], [1], [0, 0, 1, 1], [], []>} : vector<16x16xbf16>, vector<16x8xbf16>, vector<16x8xf32> -> vector<16x8xf32>
    %104 = vector.broadcast %101 : vector<16x1xf32> to vector<16x8xf32>
    %105 = arith.mulf %103, %104 : vector<16x8xf32>
    %106 = arith.truncf %105 : vector<16x8xf32> to vector<16x8xbf16>
    %c0_39 = arith.constant 0 : index
    %c3 = arith.constant 3 : index
    %c0_40 = arith.constant 0 : index
    %c0_41 = arith.constant 0 : index
    %107 = vector.load %arg5[%c0_39, %c3, %c0_40, %c0_41] : memref<2x4x8x32xbf16, #tpu.memory_space<vmem>>, vector<1x1x8x32xbf16>
    %108 = vector.shape_cast %107 : vector<1x1x8x32xbf16> to vector<8x32xbf16>
    %cst_42 = arith.constant dense<0.000000e+00> : vector<16x32xf32>
    %109 = tpu.matmul %106, %108, %cst_42 {dimension_numbers = #tpu.dot_dimension_numbers<[1], [0], [0], [1], [0, 0, 1, 1], [], []>} : vector<16x8xbf16>, vector<8x32xbf16>, vector<16x32xf32> -> vector<16x32xf32>
    %110 = arith.addf %85, %109 : vector<16x32xf32>
    %c0_43 = arith.constant 0 : index
    %c0_44 = arith.constant 0 : index
    %c0_45 = arith.constant 0 : index
    %111 = vector.load %arg6[%c0_43, %c0_44, %c0_45] : memref<2x1x32xf32, #tpu.memory_space<vmem>>, vector<1x1x32xf32>
    %112 = vector.shape_cast %111 : vector<1x1x32xf32> to vector<1x32xf32>
    %113 = vector.broadcast %112 : vector<1x32xf32> to vector<16x32xf32>
    %114 = arith.addf %110, %113 : vector<16x32xf32>
    %115 = arith.addf %0, %114 : vector<16x32xf32>
    %c0_46 = arith.constant 0 : index
    %c0_47 = arith.constant 0 : index
    %c0_48 = arith.constant 0 : index
    %116 = vector.load %arg7[%c0_46, %c0_47, %c0_48] : memref<2x1x32xf32, #tpu.memory_space<vmem>>, vector<1x1x32xf32>
    %117 = vector.shape_cast %116 : vector<1x1x32xf32> to vector<1x32xf32>
    %c0_49 = arith.constant 0 : index
    %c0_50 = arith.constant 0 : index
    %c0_51 = arith.constant 0 : index
    %118 = vector.load %arg8[%c0_49, %c0_50, %c0_51] : memref<2x1x32xf32, #tpu.memory_space<vmem>>, vector<1x1x32xf32>
    %119 = vector.shape_cast %118 : vector<1x1x32xf32> to vector<1x32xf32>
    %cst_52 = arith.constant dense<0.000000e+00> : vector<16xf32>
    %120 = vector.multi_reduction <add>, %115, %cst_52 [1] : vector<16x32xf32> to vector<16xf32>
    %121 = vector.shape_cast %120 : vector<16xf32> to vector<16x1xf32>
    %cst_53 = arith.constant 3.200000e+01 : f32
    %122 = vector.broadcast %cst_53 : f32 to vector<16x1xf32>
    %123 = arith.divf %121, %122 : vector<16x1xf32>
    %124 = vector.broadcast %123 : vector<16x1xf32> to vector<16x32xf32>
    %125 = arith.subf %115, %124 : vector<16x32xf32>
    %126 = arith.mulf %125, %125 : vector<16x32xf32>
    %cst_54 = arith.constant dense<0.000000e+00> : vector<16xf32>
    %127 = vector.multi_reduction <add>, %126, %cst_54 [1] : vector<16x32xf32> to vector<16xf32>
    %128 = vector.shape_cast %127 : vector<16xf32> to vector<16x1xf32>
    %cst_55 = arith.constant 3.200000e+01 : f32
    %129 = vector.broadcast %cst_55 : f32 to vector<16x1xf32>
    %130 = arith.divf %128, %129 : vector<16x1xf32>
    %131 = vector.broadcast %123 : vector<16x1xf32> to vector<16x32xf32>
    %132 = arith.subf %115, %131 : vector<16x32xf32>
    %cst_56 = arith.constant 9.99999996E-13 : f32
    %133 = vector.broadcast %cst_56 : f32 to vector<16x1xf32>
    %134 = arith.addf %130, %133 : vector<16x1xf32>
    %135 = math.rsqrt %134 : vector<16x1xf32>
    %136 = vector.broadcast %135 : vector<16x1xf32> to vector<16x32xf32>
    %137 = arith.mulf %132, %136 : vector<16x32xf32>
    %138 = vector.broadcast %117 : vector<1x32xf32> to vector<16x32xf32>
    %139 = arith.mulf %137, %138 : vector<16x32xf32>
    %140 = vector.broadcast %119 : vector<1x32xf32> to vector<16x32xf32>
    %141 = arith.addf %139, %140 : vector<16x32xf32>
    %142 = arith.truncf %141 : vector<16x32xf32> to vector<16x32xbf16>
    %c0_57 = arith.constant 0 : index
    %c0_58 = arith.constant 0 : index
    %c0_59 = arith.constant 0 : index
    %143 = vector.load %arg9[%c0_57, %c0_58, %c0_59] : memref<2x32x128xbf16, #tpu.memory_space<vmem>>, vector<1x32x128xbf16>
    %144 = vector.shape_cast %143 : vector<1x32x128xbf16> to vector<32x128xbf16>
    %cst_60 = arith.constant dense<0.000000e+00> : vector<16x128xf32>
    %145 = tpu.matmul %142, %144, %cst_60 {dimension_numbers = #tpu.dot_dimension_numbers<[1], [0], [0], [1], [0, 0, 1, 1], [], []>} : vector<16x32xbf16>, vector<32x128xbf16>, vector<16x128xf32> -> vector<16x128xf32>
    %c0_61 = arith.constant 0 : index
    %c0_62 = arith.constant 0 : index
    %c0_63 = arith.constant 0 : index
    %146 = vector.load %arg10[%c0_61, %c0_62, %c0_63] : memref<2x1x128xf32, #tpu.memory_space<vmem>>, vector<1x1x128xf32>
    %147 = vector.shape_cast %146 : vector<1x1x128xf32> to vector<1x128xf32>
    %148 = vector.broadcast %147 : vector<1x128xf32> to vector<16x128xf32>
    %149 = arith.addf %145, %148 : vector<16x128xf32>
    %cst_64 = arith.constant 5.000000e-01 : f32
    %150 = vector.broadcast %cst_64 : f32 to vector<16x128xf32>
    %151 = arith.mulf %150, %149 : vector<16x128xf32>
    %cst_65 = arith.constant 4.471500e-02 : f32
    %152 = vector.broadcast %cst_65 : f32 to vector<16x128xf32>
    %153 = arith.mulf %152, %149 : vector<16x128xf32>
    %154 = arith.mulf %153, %149 : vector<16x128xf32>
    %155 = arith.mulf %154, %149 : vector<16x128xf32>
    %156 = arith.addf %149, %155 : vector<16x128xf32>
    %cst_66 = arith.constant 0.797884583 : f32
    %157 = vector.broadcast %cst_66 : f32 to vector<16x128xf32>
    %158 = arith.mulf %157, %156 : vector<16x128xf32>
    %159 = math.tanh %158 : vector<16x128xf32>
    %cst_67 = arith.constant 1.000000e+00 : f32
    %160 = vector.broadcast %cst_67 : f32 to vector<16x128xf32>
    %161 = arith.addf %160, %159 : vector<16x128xf32>
    %162 = arith.mulf %151, %161 : vector<16x128xf32>
    %163 = arith.truncf %162 : vector<16x128xf32> to vector<16x128xbf16>
    %c0_68 = arith.constant 0 : index
    %c0_69 = arith.constant 0 : index
    %c0_70 = arith.constant 0 : index
    %164 = vector.load %arg11[%c0_68, %c0_69, %c0_70] : memref<2x128x32xbf16, #tpu.memory_space<vmem>>, vector<1x128x32xbf16>
    %165 = vector.shape_cast %164 : vector<1x128x32xbf16> to vector<128x32xbf16>
    %cst_71 = arith.constant dense<0.000000e+00> : vector<16x32xf32>
    %166 = tpu.matmul %163, %165, %cst_71 {dimension_numbers = #tpu.dot_dimension_numbers<[1], [0], [0], [1], [0, 0, 1, 1], [], []>} : vector<16x128xbf16>, vector<128x32xbf16>, vector<16x32xf32> -> vector<16x32xf32>
    %c0_72 = arith.constant 0 : index
    %c0_73 = arith.constant 0 : index
    %c0_74 = arith.constant 0 : index
    %167 = vector.load %arg12[%c0_72, %c0_73, %c0_74] : memref<2x1x32xf32, #tpu.memory_space<vmem>>, vector<1x1x32xf32>
    %168 = vector.shape_cast %167 : vector<1x1x32xf32> to vector<1x32xf32>
    %169 = vector.broadcast %168 : vector<1x32xf32> to vector<16x32xf32>
    %170 = arith.addf %166, %169 : vector<16x32xf32>
    %171 = arith.addf %141, %170 : vector<16x32xf32>
    %c0_75 = arith.constant 0 : index
    %c0_76 = arith.constant 0 : index
    %c0_77 = arith.constant 0 : index
    %172 = vector.load %arg13[%c0_75, %c0_76, %c0_77] : memref<2x1x32xf32, #tpu.memory_space<vmem>>, vector<1x1x32xf32>
    %173 = vector.shape_cast %172 : vector<1x1x32xf32> to vector<1x32xf32>
    %c0_78 = arith.constant 0 : index
    %c0_79 = arith.constant 0 : index
    %c0_80 = arith.constant 0 : index
    %174 = vector.load %arg14[%c0_78, %c0_79, %c0_80] : memref<2x1x32xf32, #tpu.memory_space<vmem>>, vector<1x1x32xf32>
    %175 = vector.shape_cast %174 : vector<1x1x32xf32> to vector<1x32xf32>
    %cst_81 = arith.constant dense<0.000000e+00> : vector<16xf32>
    %176 = vector.multi_reduction <add>, %171, %cst_81 [1] : vector<16x32xf32> to vector<16xf32>
    %177 = vector.shape_cast %176 : vector<16xf32> to vector<16x1xf32>
    %cst_82 = arith.constant 3.200000e+01 : f32
    %178 = vector.broadcast %cst_82 : f32 to vector<16x1xf32>
    %179 = arith.divf %177, %178 : vector<16x1xf32>
    %180 = vector.broadcast %179 : vector<16x1xf32> to vector<16x32xf32>
    %181 = arith.subf %171, %180 : vector<16x32xf32>
    %182 = arith.mulf %181, %181 : vector<16x32xf32>
    %cst_83 = arith.constant dense<0.000000e+00> : vector<16xf32>
    %183 = vector.multi_reduction <add>, %182, %cst_83 [1] : vector<16x32xf32> to vector<16xf32>
    %184 = vector.shape_cast %183 : vector<16xf32> to vector<16x1xf32>
    %cst_84 = arith.constant 3.200000e+01 : f32
    %185 = vector.broadcast %cst_84 : f32 to vector<16x1xf32>
    %186 = arith.divf %184, %185 : vector<16x1xf32>
    %187 = vector.broadcast %179 : vector<16x1xf32> to vector<16x32xf32>
    %188 = arith.subf %171, %187 : vector<16x32xf32>
    %cst_85 = arith.constant 9.99999996E-13 : f32
    %189 = vector.broadcast %cst_85 : f32 to vector<16x1xf32>
    %190 = arith.addf %186, %189 : vector<16x1xf32>
    %191 = math.rsqrt %190 : vector<16x1xf32>
    %192 = vector.broadcast %191 : vector<16x1xf32> to vector<16x32xf32>
    %193 = arith.mulf %188, %192 : vector<16x32xf32>
    %194 = vector.broadcast %173 : vector<1x32xf32> to vector<16x32xf32>
    %195 = arith.mulf %193, %194 : vector<16x32xf32>
    %196 = vector.broadcast %175 : vector<1x32xf32> to vector<16x32xf32>
    %197 = arith.addf %195, %196 : vector<16x32xf32>
    %198 = arith.truncf %197 : vector<16x32xf32> to vector<16x32xbf16>
    %c1_86 = arith.constant 1 : index
    %c0_87 = arith.constant 0 : index
    %c0_88 = arith.constant 0 : index
    %199 = vector.load %arg3[%c1_86, %c0_87, %c0_88] : memref<2x32x128xbf16, #tpu.memory_space<vmem>>, vector<1x32x128xbf16>
    %200 = vector.shape_cast %199 : vector<1x32x128xbf16> to vector<32x128xbf16>
    %cst_89 = arith.constant dense<0.000000e+00> : vector<16x128xf32>
    %201 = tpu.matmul %198, %200, %cst_89 {dimension_numbers = #tpu.dot_dimension_numbers<[1], [0], [0], [1], [0, 0, 1, 1], [], []>} : vector<16x32xbf16>, vector<32x128xbf16>, vector<16x128xf32> -> vector<16x128xf32>
    %c1_90 = arith.constant 1 : index
    %c0_91 = arith.constant 0 : index
    %c0_92 = arith.constant 0 : index
    %202 = vector.load %arg4[%c1_90, %c0_91, %c0_92] : memref<2x1x128xf32, #tpu.memory_space<vmem>>, vector<1x1x128xf32>
    %203 = vector.shape_cast %202 : vector<1x1x128xf32> to vector<1x128xf32>
    %204 = vector.broadcast %203 : vector<1x128xf32> to vector<16x128xf32>
    %205 = arith.addf %201, %204 : vector<16x128xf32>
    %cst_93 = arith.constant 0.000000e+00 : f32
    %206 = vector.broadcast %cst_93 : f32 to vector<16x32xf32>
    %207 = vector.extract_strided_slice %205 {offsets = [0, 0], sizes = [16, 8], strides = [1, 1]} : vector<16x128xf32> to vector<16x8xf32>
    %208 = arith.truncf %207 : vector<16x8xf32> to vector<16x8xbf16>
    %209 = vector.extract_strided_slice %205 {offsets = [0, 32], sizes = [16, 8], strides = [1, 1]} : vector<16x128xf32> to vector<16x8xf32>
    %210 = arith.truncf %209 : vector<16x8xf32> to vector<16x8xbf16>
    %211 = vector.extract_strided_slice %205 {offsets = [0, 64], sizes = [16, 8], strides = [1, 1]} : vector<16x128xf32> to vector<16x8xf32>
    %212 = arith.truncf %211 : vector<16x8xf32> to vector<16x8xbf16>
    %cst_94 = arith.constant dense<0.000000e+00> : vector<16x16xf32>
    %213 = tpu.matmul %208, %210, %cst_94 {dimension_numbers = #tpu.dot_dimension_numbers<[1], [1], [0], [0], [0, 0, 1, 0], [], []>} : vector<16x8xbf16>, vector<16x8xbf16>, vector<16x16xf32> -> vector<16x16xf32>
    %214 = arith.addf %213, %1 : vector<16x16xf32>
    %cst_95 = arith.constant dense<0xFF800000> : vector<16xf32>
    %215 = vector.multi_reduction <maximumf>, %214, %cst_95 [1] : vector<16x16xf32> to vector<16xf32>
    %216 = vector.shape_cast %215 : vector<16xf32> to vector<16x1xf32>
    %217 = vector.broadcast %216 : vector<16x1xf32> to vector<16x16xf32>
    %218 = arith.subf %214, %217 : vector<16x16xf32>
    %219 = math.exp %218 : vector<16x16xf32>
    %cst_96 = arith.constant dense<0.000000e+00> : vector<16xf32>
    %220 = vector.multi_reduction <add>, %219, %cst_96 [1] : vector<16x16xf32> to vector<16xf32>
    %221 = vector.shape_cast %220 : vector<16xf32> to vector<16x1xf32>
    %222 = tpu.reciprocal %221 {approx = true} : vector<16x1xf32> -> vector<16x1xf32>
    %223 = arith.truncf %219 : vector<16x16xf32> to vector<16x16xbf16>
    %cst_97 = arith.constant dense<0.000000e+00> : vector<16x8xf32>
    %224 = tpu.matmul %223, %212, %cst_97 {dimension_numbers = #tpu.dot_dimension_numbers<[1], [0], [0], [1], [0, 0, 1, 1], [], []>} : vector<16x16xbf16>, vector<16x8xbf16>, vector<16x8xf32> -> vector<16x8xf32>
    %225 = vector.broadcast %222 : vector<16x1xf32> to vector<16x8xf32>
    %226 = arith.mulf %224, %225 : vector<16x8xf32>
    %227 = arith.truncf %226 : vector<16x8xf32> to vector<16x8xbf16>
    %c1_98 = arith.constant 1 : index
    %c0_99 = arith.constant 0 : index
    %c0_100 = arith.constant 0 : index
    %c0_101 = arith.constant 0 : index
    %228 = vector.load %arg5[%c1_98, %c0_99, %c0_100, %c0_101] : memref<2x4x8x32xbf16, #tpu.memory_space<vmem>>, vector<1x1x8x32xbf16>
    %229 = vector.shape_cast %228 : vector<1x1x8x32xbf16> to vector<8x32xbf16>
    %cst_102 = arith.constant dense<0.000000e+00> : vector<16x32xf32>
    %230 = tpu.matmul %227, %229, %cst_102 {dimension_numbers = #tpu.dot_dimension_numbers<[1], [0], [0], [1], [0, 0, 1, 1], [], []>} : vector<16x8xbf16>, vector<8x32xbf16>, vector<16x32xf32> -> vector<16x32xf32>
    %231 = arith.addf %206, %230 : vector<16x32xf32>
    %232 = vector.extract_strided_slice %205 {offsets = [0, 8], sizes = [16, 8], strides = [1, 1]} : vector<16x128xf32> to vector<16x8xf32>
    %233 = arith.truncf %232 : vector<16x8xf32> to vector<16x8xbf16>
    %234 = vector.extract_strided_slice %205 {offsets = [0, 40], sizes = [16, 8], strides = [1, 1]} : vector<16x128xf32> to vector<16x8xf32>
    %235 = arith.truncf %234 : vector<16x8xf32> to vector<16x8xbf16>
    %236 = vector.extract_strided_slice %205 {offsets = [0, 72], sizes = [16, 8], strides = [1, 1]} : vector<16x128xf32> to vector<16x8xf32>
    %237 = arith.truncf %236 : vector<16x8xf32> to vector<16x8xbf16>
    %cst_103 = arith.constant dense<0.000000e+00> : vector<16x16xf32>
    %238 = tpu.matmul %233, %235, %cst_103 {dimension_numbers = #tpu.dot_dimension_numbers<[1], [1], [0], [0], [0, 0, 1, 0], [], []>} : vector<16x8xbf16>, vector<16x8xbf16>, vector<16x16xf32> -> vector<16x16xf32>
    %239 = arith.addf %238, %1 : vector<16x16xf32>
    %cst_104 = arith.constant dense<0xFF800000> : vector<16xf32>
    %240 = vector.multi_reduction <maximumf>, %239, %cst_104 [1] : vector<16x16xf32> to vector<16xf32>
    %241 = vector.shape_cast %240 : vector<16xf32> to vector<16x1xf32>
    %242 = vector.broadcast %241 : vector<16x1xf32> to vector<16x16xf32>
    %243 = arith.subf %239, %242 : vector<16x16xf32>
    %244 = math.exp %243 : vector<16x16xf32>
    %cst_105 = arith.constant dense<0.000000e+00> : vector<16xf32>
    %245 = vector.multi_reduction <add>, %244, %cst_105 [1] : vector<16x16xf32> to vector<16xf32>
    %246 = vector.shape_cast %245 : vector<16xf32> to vector<16x1xf32>
    %247 = tpu.reciprocal %246 {approx = true} : vector<16x1xf32> -> vector<16x1xf32>
    %248 = arith.truncf %244 : vector<16x16xf32> to vector<16x16xbf16>
    %cst_106 = arith.constant dense<0.000000e+00> : vector<16x8xf32>
    %249 = tpu.matmul %248, %237, %cst_106 {dimension_numbers = #tpu.dot_dimension_numbers<[1], [0], [0], [1], [0, 0, 1, 1], [], []>} : vector<16x16xbf16>, vector<16x8xbf16>, vector<16x8xf32> -> vector<16x8xf32>
    %250 = vector.broadcast %247 : vector<16x1xf32> to vector<16x8xf32>
    %251 = arith.mulf %249, %250 : vector<16x8xf32>
    %252 = arith.truncf %251 : vector<16x8xf32> to vector<16x8xbf16>
    %c1_107 = arith.constant 1 : index
    %c1_108 = arith.constant 1 : index
    %c0_109 = arith.constant 0 : index
    %c0_110 = arith.constant 0 : index
    %253 = vector.load %arg5[%c1_107, %c1_108, %c0_109, %c0_110] : memref<2x4x8x32xbf16, #tpu.memory_space<vmem>>, vector<1x1x8x32xbf16>
    %254 = vector.shape_cast %253 : vector<1x1x8x32xbf16> to vector<8x32xbf16>
    %cst_111 = arith.constant dense<0.000000e+00> : vector<16x32xf32>
    %255 = tpu.matmul %252, %254, %cst_111 {dimension_numbers = #tpu.dot_dimension_numbers<[1], [0], [0], [1], [0, 0, 1, 1], [], []>} : vector<16x8xbf16>, vector<8x32xbf16>, vector<16x32xf32> -> vector<16x32xf32>
    %256 = arith.addf %231, %255 : vector<16x32xf32>
    %257 = vector.extract_strided_slice %205 {offsets = [0, 16], sizes = [16, 8], strides = [1, 1]} : vector<16x128xf32> to vector<16x8xf32>
    %258 = arith.truncf %257 : vector<16x8xf32> to vector<16x8xbf16>
    %259 = vector.extract_strided_slice %205 {offsets = [0, 48], sizes = [16, 8], strides = [1, 1]} : vector<16x128xf32> to vector<16x8xf32>
    %260 = arith.truncf %259 : vector<16x8xf32> to vector<16x8xbf16>
    %261 = vector.extract_strided_slice %205 {offsets = [0, 80], sizes = [16, 8], strides = [1, 1]} : vector<16x128xf32> to vector<16x8xf32>
    %262 = arith.truncf %261 : vector<16x8xf32> to vector<16x8xbf16>
    %cst_112 = arith.constant dense<0.000000e+00> : vector<16x16xf32>
    %263 = tpu.matmul %258, %260, %cst_112 {dimension_numbers = #tpu.dot_dimension_numbers<[1], [1], [0], [0], [0, 0, 1, 0], [], []>} : vector<16x8xbf16>, vector<16x8xbf16>, vector<16x16xf32> -> vector<16x16xf32>
    %264 = arith.addf %263, %1 : vector<16x16xf32>
    %cst_113 = arith.constant dense<0xFF800000> : vector<16xf32>
    %265 = vector.multi_reduction <maximumf>, %264, %cst_113 [1] : vector<16x16xf32> to vector<16xf32>
    %266 = vector.shape_cast %265 : vector<16xf32> to vector<16x1xf32>
    %267 = vector.broadcast %266 : vector<16x1xf32> to vector<16x16xf32>
    %268 = arith.subf %264, %267 : vector<16x16xf32>
    %269 = math.exp %268 : vector<16x16xf32>
    %cst_114 = arith.constant dense<0.000000e+00> : vector<16xf32>
    %270 = vector.multi_reduction <add>, %269, %cst_114 [1] : vector<16x16xf32> to vector<16xf32>
    %271 = vector.shape_cast %270 : vector<16xf32> to vector<16x1xf32>
    %272 = tpu.reciprocal %271 {approx = true} : vector<16x1xf32> -> vector<16x1xf32>
    %273 = arith.truncf %269 : vector<16x16xf32> to vector<16x16xbf16>
    %cst_115 = arith.constant dense<0.000000e+00> : vector<16x8xf32>
    %274 = tpu.matmul %273, %262, %cst_115 {dimension_numbers = #tpu.dot_dimension_numbers<[1], [0], [0], [1], [0, 0, 1, 1], [], []>} : vector<16x16xbf16>, vector<16x8xbf16>, vector<16x8xf32> -> vector<16x8xf32>
    %275 = vector.broadcast %272 : vector<16x1xf32> to vector<16x8xf32>
    %276 = arith.mulf %274, %275 : vector<16x8xf32>
    %277 = arith.truncf %276 : vector<16x8xf32> to vector<16x8xbf16>
    %c1_116 = arith.constant 1 : index
    %c2_117 = arith.constant 2 : index
    %c0_118 = arith.constant 0 : index
    %c0_119 = arith.constant 0 : index
    %278 = vector.load %arg5[%c1_116, %c2_117, %c0_118, %c0_119] : memref<2x4x8x32xbf16, #tpu.memory_space<vmem>>, vector<1x1x8x32xbf16>
    %279 = vector.shape_cast %278 : vector<1x1x8x32xbf16> to vector<8x32xbf16>
    %cst_120 = arith.constant dense<0.000000e+00> : vector<16x32xf32>
    %280 = tpu.matmul %277, %279, %cst_120 {dimension_numbers = #tpu.dot_dimension_numbers<[1], [0], [0], [1], [0, 0, 1, 1], [], []>} : vector<16x8xbf16>, vector<8x32xbf16>, vector<16x32xf32> -> vector<16x32xf32>
    %281 = arith.addf %256, %280 : vector<16x32xf32>
    %282 = vector.extract_strided_slice %205 {offsets = [0, 24], sizes = [16, 8], strides = [1, 1]} : vector<16x128xf32> to vector<16x8xf32>
    %283 = arith.truncf %282 : vector<16x8xf32> to vector<16x8xbf16>
    %284 = vector.extract_strided_slice %205 {offsets = [0, 56], sizes = [16, 8], strides = [1, 1]} : vector<16x128xf32> to vector<16x8xf32>
    %285 = arith.truncf %284 : vector<16x8xf32> to vector<16x8xbf16>
    %286 = vector.extract_strided_slice %205 {offsets = [0, 88], sizes = [16, 8], strides = [1, 1]} : vector<16x128xf32> to vector<16x8xf32>
    %287 = arith.truncf %286 : vector<16x8xf32> to vector<16x8xbf16>
    %cst_121 = arith.constant dense<0.000000e+00> : vector<16x16xf32>
    %288 = tpu.matmul %283, %285, %cst_121 {dimension_numbers = #tpu.dot_dimension_numbers<[1], [1], [0], [0], [0, 0, 1, 0], [], []>} : vector<16x8xbf16>, vector<16x8xbf16>, vector<16x16xf32> -> vector<16x16xf32>
    %289 = arith.addf %288, %1 : vector<16x16xf32>
    %cst_122 = arith.constant dense<0xFF800000> : vector<16xf32>
    %290 = vector.multi_reduction <maximumf>, %289, %cst_122 [1] : vector<16x16xf32> to vector<16xf32>
    %291 = vector.shape_cast %290 : vector<16xf32> to vector<16x1xf32>
    %292 = vector.broadcast %291 : vector<16x1xf32> to vector<16x16xf32>
    %293 = arith.subf %289, %292 : vector<16x16xf32>
    %294 = math.exp %293 : vector<16x16xf32>
    %cst_123 = arith.constant dense<0.000000e+00> : vector<16xf32>
    %295 = vector.multi_reduction <add>, %294, %cst_123 [1] : vector<16x16xf32> to vector<16xf32>
    %296 = vector.shape_cast %295 : vector<16xf32> to vector<16x1xf32>
    %297 = tpu.reciprocal %296 {approx = true} : vector<16x1xf32> -> vector<16x1xf32>
    %298 = arith.truncf %294 : vector<16x16xf32> to vector<16x16xbf16>
    %cst_124 = arith.constant dense<0.000000e+00> : vector<16x8xf32>
    %299 = tpu.matmul %298, %287, %cst_124 {dimension_numbers = #tpu.dot_dimension_numbers<[1], [0], [0], [1], [0, 0, 1, 1], [], []>} : vector<16x16xbf16>, vector<16x8xbf16>, vector<16x8xf32> -> vector<16x8xf32>
    %300 = vector.broadcast %297 : vector<16x1xf32> to vector<16x8xf32>
    %301 = arith.mulf %299, %300 : vector<16x8xf32>
    %302 = arith.truncf %301 : vector<16x8xf32> to vector<16x8xbf16>
    %c1_125 = arith.constant 1 : index
    %c3_126 = arith.constant 3 : index
    %c0_127 = arith.constant 0 : index
    %c0_128 = arith.constant 0 : index
    %303 = vector.load %arg5[%c1_125, %c3_126, %c0_127, %c0_128] : memref<2x4x8x32xbf16, #tpu.memory_space<vmem>>, vector<1x1x8x32xbf16>
    %304 = vector.shape_cast %303 : vector<1x1x8x32xbf16> to vector<8x32xbf16>
    %cst_129 = arith.constant dense<0.000000e+00> : vector<16x32xf32>
    %305 = tpu.matmul %302, %304, %cst_129 {dimension_numbers = #tpu.dot_dimension_numbers<[1], [0], [0], [1], [0, 0, 1, 1], [], []>} : vector<16x8xbf16>, vector<8x32xbf16>, vector<16x32xf32> -> vector<16x32xf32>
    %306 = arith.addf %281, %305 : vector<16x32xf32>
    %c1_130 = arith.constant 1 : index
    %c0_131 = arith.constant 0 : index
    %c0_132 = arith.constant 0 : index
    %307 = vector.load %arg6[%c1_130, %c0_131, %c0_132] : memref<2x1x32xf32, #tpu.memory_space<vmem>>, vector<1x1x32xf32>
    %308 = vector.shape_cast %307 : vector<1x1x32xf32> to vector<1x32xf32>
    %309 = vector.broadcast %308 : vector<1x32xf32> to vector<16x32xf32>
    %310 = arith.addf %306, %309 : vector<16x32xf32>
    %311 = arith.addf %197, %310 : vector<16x32xf32>
    %c1_133 = arith.constant 1 : index
    %c0_134 = arith.constant 0 : index
    %c0_135 = arith.constant 0 : index
    %312 = vector.load %arg7[%c1_133, %c0_134, %c0_135] : memref<2x1x32xf32, #tpu.memory_space<vmem>>, vector<1x1x32xf32>
    %313 = vector.shape_cast %312 : vector<1x1x32xf32> to vector<1x32xf32>
    %c1_136 = arith.constant 1 : index
    %c0_137 = arith.constant 0 : index
    %c0_138 = arith.constant 0 : index
    %314 = vector.load %arg8[%c1_136, %c0_137, %c0_138] : memref<2x1x32xf32, #tpu.memory_space<vmem>>, vector<1x1x32xf32>
    %315 = vector.shape_cast %314 : vector<1x1x32xf32> to vector<1x32xf32>
    %cst_139 = arith.constant dense<0.000000e+00> : vector<16xf32>
    %316 = vector.multi_reduction <add>, %311, %cst_139 [1] : vector<16x32xf32> to vector<16xf32>
    %317 = vector.shape_cast %316 : vector<16xf32> to vector<16x1xf32>
    %cst_140 = arith.constant 3.200000e+01 : f32
    %318 = vector.broadcast %cst_140 : f32 to vector<16x1xf32>
    %319 = arith.divf %317, %318 : vector<16x1xf32>
    %320 = vector.broadcast %319 : vector<16x1xf32> to vector<16x32xf32>
    %321 = arith.subf %311, %320 : vector<16x32xf32>
    %322 = arith.mulf %321, %321 : vector<16x32xf32>
    %cst_141 = arith.constant dense<0.000000e+00> : vector<16xf32>
    %323 = vector.multi_reduction <add>, %322, %cst_141 [1] : vector<16x32xf32> to vector<16xf32>
    %324 = vector.shape_cast %323 : vector<16xf32> to vector<16x1xf32>
    %cst_142 = arith.constant 3.200000e+01 : f32
    %325 = vector.broadcast %cst_142 : f32 to vector<16x1xf32>
    %326 = arith.divf %324, %325 : vector<16x1xf32>
    %327 = vector.broadcast %319 : vector<16x1xf32> to vector<16x32xf32>
    %328 = arith.subf %311, %327 : vector<16x32xf32>
    %cst_143 = arith.constant 9.99999996E-13 : f32
    %329 = vector.broadcast %cst_143 : f32 to vector<16x1xf32>
    %330 = arith.addf %326, %329 : vector<16x1xf32>
    %331 = math.rsqrt %330 : vector<16x1xf32>
    %332 = vector.broadcast %331 : vector<16x1xf32> to vector<16x32xf32>
    %333 = arith.mulf %328, %332 : vector<16x32xf32>
    %334 = vector.broadcast %313 : vector<1x32xf32> to vector<16x32xf32>
    %335 = arith.mulf %333, %334 : vector<16x32xf32>
    %336 = vector.broadcast %315 : vector<1x32xf32> to vector<16x32xf32>
    %337 = arith.addf %335, %336 : vector<16x32xf32>
    %338 = arith.truncf %337 : vector<16x32xf32> to vector<16x32xbf16>
    %c1_144 = arith.constant 1 : index
    %c0_145 = arith.constant 0 : index
    %c0_146 = arith.constant 0 : index
    %339 = vector.load %arg9[%c1_144, %c0_145, %c0_146] : memref<2x32x128xbf16, #tpu.memory_space<vmem>>, vector<1x32x128xbf16>
    %340 = vector.shape_cast %339 : vector<1x32x128xbf16> to vector<32x128xbf16>
    %cst_147 = arith.constant dense<0.000000e+00> : vector<16x128xf32>
    %341 = tpu.matmul %338, %340, %cst_147 {dimension_numbers = #tpu.dot_dimension_numbers<[1], [0], [0], [1], [0, 0, 1, 1], [], []>} : vector<16x32xbf16>, vector<32x128xbf16>, vector<16x128xf32> -> vector<16x128xf32>
    %c1_148 = arith.constant 1 : index
    %c0_149 = arith.constant 0 : index
    %c0_150 = arith.constant 0 : index
    %342 = vector.load %arg10[%c1_148, %c0_149, %c0_150] : memref<2x1x128xf32, #tpu.memory_space<vmem>>, vector<1x1x128xf32>
    %343 = vector.shape_cast %342 : vector<1x1x128xf32> to vector<1x128xf32>
    %344 = vector.broadcast %343 : vector<1x128xf32> to vector<16x128xf32>
    %345 = arith.addf %341, %344 : vector<16x128xf32>
    %cst_151 = arith.constant 5.000000e-01 : f32
    %346 = vector.broadcast %cst_151 : f32 to vector<16x128xf32>
    %347 = arith.mulf %346, %345 : vector<16x128xf32>
    %cst_152 = arith.constant 4.471500e-02 : f32
    %348 = vector.broadcast %cst_152 : f32 to vector<16x128xf32>
    %349 = arith.mulf %348, %345 : vector<16x128xf32>
    %350 = arith.mulf %349, %345 : vector<16x128xf32>
    %351 = arith.mulf %350, %345 : vector<16x128xf32>
    %352 = arith.addf %345, %351 : vector<16x128xf32>
    %cst_153 = arith.constant 0.797884583 : f32
    %353 = vector.broadcast %cst_153 : f32 to vector<16x128xf32>
    %354 = arith.mulf %353, %352 : vector<16x128xf32>
    %355 = math.tanh %354 : vector<16x128xf32>
    %cst_154 = arith.constant 1.000000e+00 : f32
    %356 = vector.broadcast %cst_154 : f32 to vector<16x128xf32>
    %357 = arith.addf %356, %355 : vector<16x128xf32>
    %358 = arith.mulf %347, %357 : vector<16x128xf32>
    %359 = arith.truncf %358 : vector<16x128xf32> to vector<16x128xbf16>
    %c1_155 = arith.constant 1 : index
    %c0_156 = arith.constant 0 : index
    %c0_157 = arith.constant 0 : index
    %360 = vector.load %arg11[%c1_155, %c0_156, %c0_157] : memref<2x128x32xbf16, #tpu.memory_space<vmem>>, vector<1x128x32xbf16>
    %361 = vector.shape_cast %360 : vector<1x128x32xbf16> to vector<128x32xbf16>
    %cst_158 = arith.constant dense<0.000000e+00> : vector<16x32xf32>
    %362 = tpu.matmul %359, %361, %cst_158 {dimension_numbers = #tpu.dot_dimension_numbers<[1], [0], [0], [1], [0, 0, 1, 1], [], []>} : vector<16x128xbf16>, vector<128x32xbf16>, vector<16x32xf32> -> vector<16x32xf32>
    %c1_159 = arith.constant 1 : index
    %c0_160 = arith.constant 0 : index
    %c0_161 = arith.constant 0 : index
    %363 = vector.load %arg12[%c1_159, %c0_160, %c0_161] : memref<2x1x32xf32, #tpu.memory_space<vmem>>, vector<1x1x32xf32>
    %364 = vector.shape_cast %363 : vector<1x1x32xf32> to vector<1x32xf32>
    %365 = vector.broadcast %364 : vector<1x32xf32> to vector<16x32xf32>
    %366 = arith.addf %362, %365 : vector<16x32xf32>
    %367 = arith.addf %337, %366 : vector<16x32xf32>
    %c1_162 = arith.constant 1 : index
    %c0_163 = arith.constant 0 : index
    %c0_164 = arith.constant 0 : index
    %368 = vector.load %arg13[%c1_162, %c0_163, %c0_164] : memref<2x1x32xf32, #tpu.memory_space<vmem>>, vector<1x1x32xf32>
    %369 = vector.shape_cast %368 : vector<1x1x32xf32> to vector<1x32xf32>
    %c1_165 = arith.constant 1 : index
    %c0_166 = arith.constant 0 : index
    %c0_167 = arith.constant 0 : index
    %370 = vector.load %arg14[%c1_165, %c0_166, %c0_167] : memref<2x1x32xf32, #tpu.memory_space<vmem>>, vector<1x1x32xf32>
    %371 = vector.shape_cast %370 : vector<1x1x32xf32> to vector<1x32xf32>
    %cst_168 = arith.constant dense<0.000000e+00> : vector<16xf32>
    %372 = vector.multi_reduction <add>, %367, %cst_168 [1] : vector<16x32xf32> to vector<16xf32>
    %373 = vector.shape_cast %372 : vector<16xf32> to vector<16x1xf32>
    %cst_169 = arith.constant 3.200000e+01 : f32
    %374 = vector.broadcast %cst_169 : f32 to vector<16x1xf32>
    %375 = arith.divf %373, %374 : vector<16x1xf32>
    %376 = vector.broadcast %375 : vector<16x1xf32> to vector<16x32xf32>
    %377 = arith.subf %367, %376 : vector<16x32xf32>
    %378 = arith.mulf %377, %377 : vector<16x32xf32>
    %cst_170 = arith.constant dense<0.000000e+00> : vector<16xf32>
    %379 = vector.multi_reduction <add>, %378, %cst_170 [1] : vector<16x32xf32> to vector<16xf32>
    %380 = vector.shape_cast %379 : vector<16xf32> to vector<16x1xf32>
    %cst_171 = arith.constant 3.200000e+01 : f32
    %381 = vector.broadcast %cst_171 : f32 to vector<16x1xf32>
    %382 = arith.divf %380, %381 : vector<16x1xf32>
    %383 = vector.broadcast %375 : vector<16x1xf32> to vector<16x32xf32>
    %384 = arith.subf %367, %383 : vector<16x32xf32>
    %cst_172 = arith.constant 9.99999996E-13 : f32
    %385 = vector.broadcast %cst_172 : f32 to vector<16x1xf32>
    %386 = arith.addf %382, %385 : vector<16x1xf32>
    %387 = math.rsqrt %386 : vector<16x1xf32>
    %388 = vector.broadcast %387 : vector<16x1xf32> to vector<16x32xf32>
    %389 = arith.mulf %384, %388 : vector<16x32xf32>
    %390 = vector.broadcast %369 : vector<1x32xf32> to vector<16x32xf32>
    %391 = arith.mulf %389, %390 : vector<16x32xf32>
    %392 = vector.broadcast %371 : vector<1x32xf32> to vector<16x32xf32>
    %393 = arith.addf %391, %392 : vector<16x32xf32>
    %c0_173 = arith.constant 0 : index
    %c0_174 = arith.constant 0 : index
    %394 = vector.load %arg2[%c0_173, %c0_174] : memref<2x16xbf16, #tpu.memory_space<vmem>>, vector<2x16xbf16>
    %395 = arith.truncf %393 : vector<16x32xf32> to vector<16x32xbf16>
    %cst_175 = arith.constant dense<0.000000e+00> : vector<2x32xf32>
    %396 = tpu.matmul %394, %395, %cst_175 {dimension_numbers = #tpu.dot_dimension_numbers<[1], [0], [0], [1], [0, 0, 1, 1], [], []>} : vector<2x16xbf16>, vector<16x32xbf16>, vector<2x32xf32> -> vector<2x32xf32>
    %397 = arith.truncf %396 : vector<2x32xf32> to vector<2x32xbf16>
    %c0_176 = arith.constant 0 : index
    %c0_177 = arith.constant 0 : index
    %398 = vector.load %arg15[%c0_176, %c0_177] : memref<32x32xbf16, #tpu.memory_space<vmem>>, vector<32x32xbf16>
    %cst_178 = arith.constant dense<0.000000e+00> : vector<2x32xf32>
    %399 = tpu.matmul %397, %398, %cst_178 {dimension_numbers = #tpu.dot_dimension_numbers<[1], [0], [0], [1], [0, 0, 1, 1], [], []>} : vector<2x32xbf16>, vector<32x32xbf16>, vector<2x32xf32> -> vector<2x32xf32>
    %c0_179 = arith.constant 0 : index
    %c0_180 = arith.constant 0 : index
    %400 = vector.load %arg16[%c0_179, %c0_180] : memref<1x32xf32, #tpu.memory_space<vmem>>, vector<1x32xf32>
    %401 = vector.broadcast %400 : vector<1x32xf32> to vector<2x32xf32>
    %402 = arith.addf %399, %401 : vector<2x32xf32>
    %403 = math.tanh %402 : vector<2x32xf32>
    %404 = arith.truncf %403 : vector<2x32xf32> to vector<2x32xbf16>
    %c0_181 = arith.constant 0 : index
    %c0_182 = arith.constant 0 : index
    %405 = vector.load %arg17[%c0_181, %c0_182] : memref<32x128xbf16, #tpu.memory_space<vmem>>, vector<32x128xbf16>
    %cst_183 = arith.constant dense<0.000000e+00> : vector<2x128xf32>
    %406 = tpu.matmul %404, %405, %cst_183 {dimension_numbers = #tpu.dot_dimension_numbers<[1], [0], [0], [1], [0, 0, 1, 1], [], []>} : vector<2x32xbf16>, vector<32x128xbf16>, vector<2x128xf32> -> vector<2x128xf32>
    %c0_184 = arith.constant 0 : index
    %c0_185 = arith.constant 0 : index
    %407 = vector.load %arg18[%c0_184, %c0_185] : memref<1x128xf32, #tpu.memory_space<vmem>>, vector<1x128xf32>
    %408 = vector.broadcast %407 : vector<1x128xf32> to vector<2x128xf32>
    %409 = arith.addf %406, %408 : vector<2x128xf32>
    %c0_186 = arith.constant 0 : index
    %c0_187 = arith.constant 0 : index
    %410 = vector.load %arg19[%c0_186, %c0_187] : memref<2x128xf32, #tpu.memory_space<vmem>>, vector<2x128xf32>
    tpu.vector_store %arg19[%c0_186, %c0_187], %409 {strides = array<i32>} : memref<2x128xf32, #tpu.memory_space<vmem>>, vector<2x128xf32>,
    return
  }
}

</mosaic_0001>

<llo_original>
// kernel: bert_news_classifier.1
$region0: #{bert_news_classifier.1}
  #allocation0 [shape = 'u32[]', space=smem, size = 0x4, offset = 0x4, fixed_abs, tag = 'smem constant byte address 0x4 - core index']
  #allocation1 [shape = 'u32[144,128]{1,0:T(1,128)}', space=vmem, size = 0x12000, scoped, tag = 'internal scratch']
  %s0 = inlined_call_operand.vmem [shape: f32[16,32], index: 0, kind: input, shape index: {}]
  %s1 = inlined_call_operand.vmem [shape: f32[16,16], index: 1, kind: input, shape index: {}]
  %s2 = inlined_call_operand.vmem [shape: bf16[2,16], index: 2, kind: input, shape index: {}]
  %s3 = inlined_call_operand.vmem [shape: bf16[2,32,128], index: 3, kind: input, shape index: {}]
  %s4 = inlined_call_operand.vmem [shape: f32[2,1,128], index: 4, kind: input, shape index: {}]
  %s5 = inlined_call_operand.vmem [shape: bf16[2,4,8,32], index: 5, kind: input, shape index: {}]
  %s6 = inlined_call_operand.vmem [shape: f32[2,1,32], index: 6, kind: input, shape index: {}]
  %s7 = inlined_call_operand.vmem [shape: f32[2,1,32], index: 7, kind: input, shape index: {}]
  %s8 = inlined_call_operand.vmem [shape: f32[2,1,32], index: 8, kind: input, shape index: {}]
  %s9 = inlined_call_operand.vmem [shape: bf16[2,32,128], index: 9, kind: input, shape index: {}]
  %s10 = inlined_call_operand.vmem [shape: f32[2,1,128], index: 10, kind: input, shape index: {}]
  %s11 = inlined_call_operand.vmem [shape: bf16[2,128,32], index: 11, kind: input, shape index: {}]
  %s12 = inlined_call_operand.vmem [shape: f32[2,1,32], index: 12, kind: input, shape index: {}]
  %s13 = inlined_call_operand.vmem [shape: f32[2,1,32], index: 13, kind: input, shape index: {}]
  %s14 = inlined_call_operand.vmem [shape: f32[2,1,32], index: 14, kind: input, shape index: {}]
  %s15 = inlined_call_operand.vmem [shape: bf16[32,32], index: 15, kind: input, shape index: {}]
  %s16 = inlined_call_operand.vmem [shape: f32[1,32], index: 16, kind: input, shape index: {}]
  %s17 = inlined_call_operand.vmem [shape: bf16[32,128], index: 17, kind: input, shape index: {}]
  %s18 = inlined_call_operand.vmem [shape: f32[1,128], index: 18, kind: input, shape index: {}]
  %s19 = inlined_call_operand.hbm [shape: f32[2,128], index: 19, kind: output, shape index: {}]
  %s20 = sld [smem:[#allocation0]]
  $region86: #{bert_news_classifier.1} parent=0
    _
  %s22 = ssub.s32 1, %s20
  %s23 = scalar_select 0, %s22, %s20
  $region1: #{bert_news_classifier.1} parent=0
    #allocation2 [shape = 'u8[1024]{0}', space=vmem, size = 0x400, scoped, tag = 'output window, operand 0, single buffered']
    #allocation3 [shape = 's32[1]{0}', space=sflag, size = 0x4, scoped, tag = 'scoped memory for bert_news_classifier.1']
    %24 = vsyncpa [#allocation3], 0
    // Predicated region
    $region2: #{bert_news_classifier.1} parent=1 // pred_check
      _
    $region3: #{bert_news_classifier.1} parent=1 // pred_check_branch
      %26 = sbr.rel (0) target = $region5
    $region4: #{bert_news_classifier.1} parent=1 // pred_region
      _
    $region5: #{bert_news_classifier.1} parent=1 // pred_fallthru
      _
    // Predicated region
    $region6: #{bert_news_classifier.1} parent=1 // pred_check
      _
    $region7: #{bert_news_classifier.1} parent=1 // pred_check_branch
      %28 = sbr.rel (0) target = $region9
    $region8: #{bert_news_classifier.1} parent=1 // pred_region
      _
    $region9: #{bert_news_classifier.1} parent=1 // pred_fallthru
      _
    // Predicated region
    $region10: #{bert_news_classifier.1} parent=1 // pred_check
      _
    $region11: #{bert_news_classifier.1} parent=1 // pred_check_branch
      %30 = sbr.rel (0) target = $region13
    $region12: #{bert_news_classifier.1} parent=1 // pred_region
      _
    $region13: #{bert_news_classifier.1} parent=1 // pred_fallthru
      _
    // Predicated region
    $region14: #{bert_news_classifier.1} parent=1 // pred_check
      _
    $region15: #{bert_news_classifier.1} parent=1 // pred_check_branch
      %32 = sbr.rel (0) target = $region17
    $region16: #{bert_news_classifier.1} parent=1 // pred_region
      _
    $region17: #{bert_news_classifier.1} parent=1 // pred_fallthru
      _
    // Predicated region
    $region18: #{bert_news_classifier.1} parent=1 // pred_check
      _
    $region19: #{bert_news_classifier.1} parent=1 // pred_check_branch
      %34 = sbr.rel (0) target = $region21
    $region20: #{bert_news_classifier.1} parent=1 // pred_region
      _
    $region21: #{bert_news_classifier.1} parent=1 // pred_fallthru
      _
    // Predicated region
    $region22: #{bert_news_classifier.1} parent=1 // pred_check
      _
    $region23: #{bert_news_classifier.1} parent=1 // pred_check_branch
      %36 = sbr.rel (0) target = $region25
    $region24: #{bert_news_classifier.1} parent=1 // pred_region
      _
    $region25: #{bert_news_classifier.1} parent=1 // pred_fallthru
      _
    // Predicated region
    $region26: #{bert_news_classifier.1} parent=1 // pred_check
      _
    $region27: #{bert_news_classifier.1} parent=1 // pred_check_branch
      %38 = sbr.rel (0) target = $region29
    $region28: #{bert_news_classifier.1} parent=1 // pred_region
      _
    $region29: #{bert_news_classifier.1} parent=1 // pred_fallthru
      _
    // Predicated region
    $region30: #{bert_news_classifier.1} parent=1 // pred_check
      _
    $region31: #{bert_news_classifier.1} parent=1 // pred_check_branch
      %40 = sbr.rel (0) target = $region33
    $region32: #{bert_news_classifier.1} parent=1 // pred_region
      _
    $region33: #{bert_news_classifier.1} parent=1 // pred_fallthru
      _
    // Predicated region
    $region34: #{bert_news_classifier.1} parent=1 // pred_check
      _
    $region35: #{bert_news_classifier.1} parent=1 // pred_check_branch
      %42 = sbr.rel (0) target = $region37
    $region36: #{bert_news_classifier.1} parent=1 // pred_region
      _
    $region37: #{bert_news_classifier.1} parent=1 // pred_fallthru
      _
    // Predicated region
    $region38: #{bert_news_classifier.1} parent=1 // pred_check
      _
    $region39: #{bert_news_classifier.1} parent=1 // pred_check_branch
      %44 = sbr.rel (0) target = $region41
    $region40: #{bert_news_classifier.1} parent=1 // pred_region
      _
    $region41: #{bert_news_classifier.1} parent=1 // pred_fallthru
      _
    // Predicated region
    $region42: #{bert_news_classifier.1} parent=1 // pred_check
      _
    $region43: #{bert_news_classifier.1} parent=1 // pred_check_branch
      %46 = sbr.rel (0) target = $region45
    $region44: #{bert_news_classifier.1} parent=1 // pred_region
      _
    $region45: #{bert_news_classifier.1} parent=1 // pred_fallthru
      _
    // Predicated region
    $region46: #{bert_news_classifier.1} parent=1 // pred_check
      _
    $region47: #{bert_news_classifier.1} parent=1 // pred_check_branch
      %48 = sbr.rel (0) target = $region49
    $region48: #{bert_news_classifier.1} parent=1 // pred_region
      _
    $region49: #{bert_news_classifier.1} parent=1 // pred_fallthru
      _
    // Predicated region
    $region50: #{bert_news_classifier.1} parent=1 // pred_check
      _
    $region51: #{bert_news_classifier.1} parent=1 // pred_check_branch
      %50 = sbr.rel (0) target = $region53
    $region52: #{bert_news_classifier.1} parent=1 // pred_region
      _
    $region53: #{bert_news_classifier.1} parent=1 // pred_fallthru
      _
    // Predicated region
    $region54: #{bert_news_classifier.1} parent=1 // pred_check
      _
    $region55: #{bert_news_classifier.1} parent=1 // pred_check_branch
      %52 = sbr.rel (0) target = $region57
    $region56: #{bert_news_classifier.1} parent=1 // pred_region
      _
    $region57: #{bert_news_classifier.1} parent=1 // pred_fallthru
      _
    // Predicated region
    $region58: #{bert_news_classifier.1} parent=1 // pred_check
      _
    $region59: #{bert_news_classifier.1} parent=1 // pred_check_branch
      %54 = sbr.rel (0) target = $region61
    $region60: #{bert_news_classifier.1} parent=1 // pred_region
      _
    $region61: #{bert_news_classifier.1} parent=1 // pred_fallthru
      _
    // Predicated region
    $region62: #{bert_news_classifier.1} parent=1 // pred_check
      _
    $region63: #{bert_news_classifier.1} parent=1 // pred_check_branch
      %56 = sbr.rel (0) target = $region65
    $region64: #{bert_news_classifier.1} parent=1 // pred_region
      _
    $region65: #{bert_news_classifier.1} parent=1 // pred_fallthru
      _
    // Predicated region
    $region66: #{bert_news_classifier.1} parent=1 // pred_check
      _
    $region67: #{bert_news_classifier.1} parent=1 // pred_check_branch
      %58 = sbr.rel (0) target = $region69
    $region68: #{bert_news_classifier.1} parent=1 // pred_region
      _
    $region69: #{bert_news_classifier.1} parent=1 // pred_fallthru
      _
    // Predicated region
    $region70: #{bert_news_classifier.1} parent=1 // pred_check
      _
    $region71: #{bert_news_classifier.1} parent=1 // pred_check_branch
      %60 = sbr.rel (0) target = $region73
    $region72: #{bert_news_classifier.1} parent=1 // pred_region
      _
    $region73: #{bert_news_classifier.1} parent=1 // pred_fallthru
      _
    // Predicated region
    $region74: #{bert_news_classifier.1} parent=1 // pred_check
      _
    $region75: #{bert_news_classifier.1} parent=1 // pred_check_branch
      %62 = sbr.rel (0) target = $region77
    $region76: #{bert_news_classifier.1} parent=1 // pred_region
      _
    $region77: #{bert_news_classifier.1} parent=1 // pred_fallthru
      _
    %v64 = vld [vmem:[%s0] sm:$0xff]
    %v65 = vld [vmem:[%s0 + $0x8] sm:$0xff]
    %v66 = vld [vmem:[%s1] sm:$0xff]
    %v67 = vld [vmem:[%s1 + $0x8] sm:$0xff]
    %v68 = vpack.c.bf16 %v65, %v64
    %v69 = vld [vmem:[%s3] sm:$0xf]
    %v70 = vld [vmem:[%s3 + $0x4] sm:$0xf]
    %v71 = vld [vmem:[%s3 + $0x8] sm:$0xf]
    %v72 = vld [vmem:[%s3 + $0xc] sm:$0xf]
    %v73 = vld [vmem:[%s4] sm:$0x1]
    %v75 = vlaneseq
    %v76 = vshrl.u32 %v75, 7
    %v77 = vsub.s32 0, %v76
    %v78 = vrot.slane %v73, %v77
    %v84 = vunpack.c.l.b16 %v69
    %v85 = vunpack.c.l.b16 %v70
    %v86 = vunpack.c.l.b16 %v71
    %v87 = vunpack.c.l.b16 %v72
    %v88 = vpack.c.b16 %v85, %v84
    %v89 = vpack.c.b16 %v87, %v86
    %vm92 = vcmask 261120
    %v94 = vsel %vm92, %v68, 0
    %96 = vmatprep.subr.bf16.mxu0 0
    %97 = vmatpush1.bf16.msra.mxu0 0
    %98 = vmatprep.subr.bf16.mxu0 0
    %99 = vmatpush1.bf16.msra.mxu0 0
    %100 = vmatprep.subr.bf16.mxu0 0
    %101 = vmatpush1.bf16.msra.mxu0 0
    %102 = vmatprep.subr.bf16.mxu0 0
    %103 = vmatpush1.bf16.msra.mxu0 0
    %104 = vmatprep.subr.bf16.mxu0 0
    %105 = vmatpush1.bf16.msra.mxu0 0
    %106 = vmatprep.subr.bf16.mxu0 0
    %107 = vmatpush1.bf16.msra.mxu0 0
    %108 = vmatprep.subr.bf16.mxu0 0
    %109 = vmatpush1.bf16.msra.mxu0 %v89
    %110 = vmatprep.subr.bf16.mxu0 0
    %111 = vmatpush1.bf16.msra.mxu0 %v88
    %112 = vmatprep.subr.bf16.mxu0 0
    %113 = vmatpush2.bf16.msra.mxu0 0
    %114 = vmatprep.subr.bf16.mxu0 0
    %115 = vmatpush2.bf16.msra.mxu0 0
    %116 = vmatprep.subr.bf16.mxu0 0
    %117 = vmatpush2.bf16.msra.mxu0 0
    %118 = vmatprep.subr.bf16.mxu0 0
    %119 = vmatpush2.bf16.msra.mxu0 0
    %120 = vmatprep.subr.bf16.mxu0 0
    %121 = vmatpush2.bf16.msra.mxu0 0
    %122 = vmatprep.subr.bf16.mxu0 0
    %123 = vmatpush2.bf16.msra.mxu0 0
    %124 = vmatprep.subr.bf16.mxu0 0
    %125 = vmatpush2.bf16.msra.mxu0 0
    %126 = vmatprep.subr.bf16.mxu0 0
    %127 = vmatpush2.bf16.msra.mxu0 0
    %128 = vmatprep.mubr.bf16.mxu0 0
    %129 = vmatmul.mubr.bf16.gmra.mxu0 %v94
    %v130 = vpop.f32.mrf.mxu0
    %v131 = vadd.f32 %v78, %v130
    %v132 = vpop.f32.mrf.mxu0
    %v133 = vpop.f32.mrf.mxu0
    %v134 = vadd.f32 %v78, %v133
    %v135 = vpop.f32.mrf.mxu0
    %136 = vdwg.mxu0
    %v137 = vpack.c.bf16 %v134, %v131
    %139 = vrot.lane.b32.xlu0 %v137, 96
    %v140 = vpop.permute.xlu0 %139
    %vm141 = vcmask 64512
    %v143 = vsel %vm141, %v137, 0
    %v146 = vsel %vm141, %v140, 0
    %148 = vmatprep.subr.bf16.mxu0 0
    %149 = vmatpush1.bf16.xpose.msra.mxu0 0
    %150 = vmatprep.subr.bf16.mxu0 0
    %151 = vmatpush1.bf16.xpose.msra.mxu0 0
    %152 = vmatprep.subr.bf16.mxu0 0
    %153 = vmatpush1.bf16.xpose.msra.mxu0 0
    %154 = vmatprep.subr.bf16.mxu0 0
    %155 = vmatpush1.bf16.xpose.msra.mxu0 0
    %156 = vmatprep.subr.bf16.mxu0 0
    %157 = vmatpush1.bf16.xpose.msra.mxu0 0
    %158 = vmatprep.subr.bf16.mxu0 0
    %159 = vmatpush1.bf16.xpose.msra.mxu0 0
    %160 = vmatprep.subr.bf16.mxu0 0
    %161 = vmatpush1.bf16.xpose.msra.mxu0 0
    %162 = vmatprep.subr.bf16.mxu0 0
    %163 = vmatpush1.bf16.xpose.msra.mxu0 %v146
    %164 = vmatprep.subr.bf16.mxu0 0
    %165 = vmatpush2.bf16.xpose.msra.mxu0 0
    %166 = vmatprep.subr.bf16.mxu0 0
    %167 = vmatpush2.bf16.xpose.msra.mxu0 0
    %168 = vmatprep.subr.bf16.mxu0 0
    %169 = vmatpush2.bf16.xpose.msra.mxu0 0
    %170 = vmatprep.subr.bf16.mxu0 0
    %171 = vmatpush2.bf16.xpose.msra.mxu0 0
    %172 = vmatprep.subr.bf16.mxu0 0
    %173 = vmatpush2.bf16.xpose.msra.mxu0 0
    %174 = vmatprep.subr.bf16.mxu0 0
    %175 = vmatpush2.bf16.xpose.msra.mxu0 0
    %176 = vmatprep.subr.bf16.mxu0 0
    %177 = vmatpush2.bf16.xpose.msra.mxu0 0
    %178 = vmatprep.subr.bf16.mxu0 0
    %179 = vmatpush2.bf16.xpose.msra.mxu0 0
    %180 = vmatprep.mubr.bf16.mxu0 0
    %181 = vmatmul.mubr.bf16.gmra.mxu0 %v143
    %v182 = vpop.f32.mrf.mxu0
    %v183 = vadd.f32 %v66, %v182
    %v184 = vpop.f32.mrf.mxu0
    %v185 = vpop.f32.mrf.mxu0
    %v186 = vadd.f32 %v67, %v185
    %v187 = vpop.f32.mrf.mxu0
    %188 = vdwg.mxu0
    %vm189 = vcmask 130048
    %v190 = vsel %vm189, %v183, -inf
    %191 = vmax.xlane.f32.xlu0 %v190
    %v192 = vpop.xlane.xlu0 %191
    %v193 = vsel %vm189, %v186, -inf
    %194 = vmax.xlane.f32.xlu0 %v193
    %v195 = vpop.xlane.xlu0 %194
    %v196 = vsub.f32 %v183, %v192
    %v197 = vsub.f32 %v186, %v195
    %v198 = vmul.f32 %v196, 1.442695
    %v199 = vpow.pop %v198
    %v200 = vmul.f32 %v197, 1.442695
    %v201 = vpow.pop %v200
    %v202 = vsel %vm189, %v199, 0.0
    %203 = vadd.xlane.f32.xlu0 %v202
    %v204 = vpop.xlane.xlu0 %203
    %v205 = vsel %vm189, %v201, 0.0
    %206 = vadd.xlane.f32.xlu0 %v205
    %v207 = vpop.xlane.xlu0 %206
    %v208 = vrcp.pop %v204
    %v209 = vrcp.pop %v207
    %v210 = vpack.c.bf16 %v201, %v199
    %211 = vrot.lane.b32.xlu0 %v137, 64
    %v212 = vpop.permute.xlu0 %211
    %v215 = vsel %vm189, %v210, 0
    %217 = vmatprep.subr.bf16.mxu0 0
    %218 = vmatpush1.bf16.msra.mxu0 0
    %219 = vmatprep.subr.bf16.mxu0 0
    %220 = vmatpush1.bf16.msra.mxu0 0
    %221 = vmatprep.subr.bf16.mxu0 0
    %222 = vmatpush1.bf16.msra.mxu0 0
    %223 = vmatprep.subr.bf16.mxu0 0
    %224 = vmatpush1.bf16.msra.mxu0 0
    %225 = vmatprep.subr.bf16.mxu0 0
    %226 = vmatpush1.bf16.msra.mxu0 0
    %227 = vmatprep.subr.bf16.mxu0 0
    %228 = vmatpush1.bf16.msra.mxu0 0
    %229 = vmatprep.subr.bf16.mxu0 0
    %230 = vmatpush1.bf16.msra.mxu0 0
    %231 = vmatprep.subr.bf16.mxu0 0
    %232 = vmatpush1.bf16.msra.mxu0 %v212
    %233 = vmatprep.subr.bf16.mxu0 0
    %234 = vmatpush2.bf16.msra.mxu0 0
    %235 = vmatprep.subr.bf16.mxu0 0
    %236 = vmatpush2.bf16.msra.mxu0 0
    %237 = vmatprep.subr.bf16.mxu0 0
    %238 = vmatpush2.bf16.msra.mxu0 0
    %239 = vmatprep.subr.bf16.mxu0 0
    %240 = vmatpush2.bf16.msra.mxu0 0
    %241 = vmatprep.subr.bf16.mxu0 0
    %242 = vmatpush2.bf16.msra.mxu0 0
    %243 = vmatprep.subr.bf16.mxu0 0
    %244 = vmatpush2.bf16.msra.mxu0 0
    %245 = vmatprep.subr.bf16.mxu0 0
    %246 = vmatpush2.bf16.msra.mxu0 0
    %247 = vmatprep.subr.bf16.mxu0 0
    %248 = vmatpush2.bf16.msra.mxu0 0
    %249 = vmatprep.mubr.bf16.mxu0 0
    %250 = vmatmul.mubr.bf16.gmra.mxu0 %v215
    %v251 = vpop.f32.mrf.mxu0
    %v252 = vadd.f32 0.0, %v251
    %v253 = vpop.f32.mrf.mxu0
    %v254 = vpop.f32.mrf.mxu0
    %v255 = vadd.f32 0.0, %v254
    %v256 = vpop.f32.mrf.mxu0
    %257 = vdwg.mxu0
    %v258 = vmul.f32 %v252, %v208
    %v259 = vmul.f32 %v255, %v209
    %v260 = vpack.c.bf16 %v259, %v258
    %v261 = vld [vmem:[%s5] sm:$0xf]
    %262 = vrot.lane.b32.xlu0 %v137, 120
    %v263 = vpop.permute.xlu0 %262
    %264 = vrot.lane.b32.xlu0 %v137, 88
    %v265 = vpop.permute.xlu0 %264
    %v267 = vsel %vm141, %v263, 0
    %v270 = vsel %vm141, %v265, 0
    %272 = vmatprep.subr.bf16.mxu0 0
    %273 = vmatpush1.bf16.xpose.msra.mxu0 0
    %274 = vmatprep.subr.bf16.mxu0 0
    %275 = vmatpush1.bf16.xpose.msra.mxu0 0
    %276 = vmatprep.subr.bf16.mxu0 0
    %277 = vmatpush1.bf16.xpose.msra.mxu0 0
    %278 = vmatprep.subr.bf16.mxu0 0
    %279 = vmatpush1.bf16.xpose.msra.mxu0 0
    %280 = vmatprep.subr.bf16.mxu0 0
    %281 = vmatpush1.bf16.xpose.msra.mxu0 0
    %282 = vmatprep.subr.bf16.mxu0 0
    %283 = vmatpush1.bf16.xpose.msra.mxu0 0
    %284 = vmatprep.subr.bf16.mxu0 0
    %285 = vmatpush1.bf16.xpose.msra.mxu0 0
    %286 = vmatprep.subr.bf16.mxu0 0
    %287 = vmatpush1.bf16.xpose.msra.mxu0 %v270
    %288 = vmatprep.subr.bf16.mxu0 0
    %289 = vmatpush2.bf16.xpose.msra.mxu0 0
    %290 = vmatprep.subr.bf16.mxu0 0
    %291 = vmatpush2.bf16.xpose.msra.mxu0 0
    %292 = vmatprep.subr.bf16.mxu0 0
    %293 = vmatpush2.bf16.xpose.msra.mxu0 0
    %294 = vmatprep.subr.bf16.mxu0 0
    %295 = vmatpush2.bf16.xpose.msra.mxu0 0
    %296 = vmatprep.subr.bf16.mxu0 0
    %297 = vmatpush2.bf16.xpose.msra.mxu0 0
    %298 = vmatprep.subr.bf16.mxu0 0
    %299 = vmatpush2.bf16.xpose.msra.mxu0 0
    %300 = vmatprep.subr.bf16.mxu0 0
    %301 = vmatpush2.bf16.xpose.msra.mxu0 0
    %302 = vmatprep.subr.bf16.mxu0 0
    %303 = vmatpush2.bf16.xpose.msra.mxu0 0
    %304 = vmatprep.mubr.bf16.mxu0 0
    %305 = vmatmul.mubr.bf16.gmra.mxu0 %v267
    %v306 = vpop.f32.mrf.mxu0
    %v307 = vadd.f32 %v66, %v306
    %v308 = vpop.f32.mrf.mxu0
    %v309 = vpop.f32.mrf.mxu0
    %v310 = vadd.f32 %v67, %v309
    %v311 = vpop.f32.mrf.mxu0
    %312 = vdwg.mxu0
    %v313 = vsel %vm189, %v307, -inf
    %314 = vmax.xlane.f32.xlu0 %v313
    %v315 = vpop.xlane.xlu0 %314
    %v316 = vsel %vm189, %v310, -inf
    %317 = vmax.xlane.f32.xlu0 %v316
    %v318 = vpop.xlane.xlu0 %317
    %v319 = vsub.f32 %v307, %v315
    %v320 = vsub.f32 %v310, %v318
    %v321 = vmul.f32 %v319, 1.442695
    %v322 = vpow.pop %v321
    %v323 = vmul.f32 %v320, 1.442695
    %v324 = vpow.pop %v323
    %v325 = vsel %vm189, %v322, 0.0
    %326 = vadd.xlane.f32.xlu0 %v325
    %v327 = vpop.xlane.xlu0 %326
    %v328 = vsel %vm189, %v324, 0.0
    %329 = vadd.xlane.f32.xlu0 %v328
    %v330 = vpop.xlane.xlu0 %329
    %v331 = vrcp.pop %v327
    %v332 = vrcp.pop %v330
    %v333 = vpack.c.bf16 %v324, %v322
    %334 = vrot.lane.b32.xlu0 %v137, 56
    %v335 = vpop.permute.xlu0 %334
    %v338 = vsel %vm189, %v333, 0
    %340 = vmatprep.subr.bf16.mxu0 0
    %341 = vmatpush1.bf16.msra.mxu0 0
    %342 = vmatprep.subr.bf16.mxu0 0
    %343 = vmatpush1.bf16.msra.mxu0 0
    %344 = vmatprep.subr.bf16.mxu0 0
    %345 = vmatpush1.bf16.msra.mxu0 0
    %346 = vmatprep.subr.bf16.mxu0 0
    %347 = vmatpush1.bf16.msra.mxu0 0
    %348 = vmatprep.subr.bf16.mxu0 0
    %349 = vmatpush1.bf16.msra.mxu0 0
    %350 = vmatprep.subr.bf16.mxu0 0
    %351 = vmatpush1.bf16.msra.mxu0 0
    %352 = vmatprep.subr.bf16.mxu0 0
    %353 = vmatpush1.bf16.msra.mxu0 0
    %354 = vmatprep.subr.bf16.mxu0 0
    %355 = vmatpush1.bf16.msra.mxu0 %v335
    %356 = vmatprep.subr.bf16.mxu0 0
    %357 = vmatpush2.bf16.msra.mxu0 0
    %358 = vmatprep.subr.bf16.mxu0 0
    %359 = vmatpush2.bf16.msra.mxu0 0
    %360 = vmatprep.subr.bf16.mxu0 0
    %361 = vmatpush2.bf16.msra.mxu0 0
    %362 = vmatprep.subr.bf16.mxu0 0
    %363 = vmatpush2.bf16.msra.mxu0 0
    %364 = vmatprep.subr.bf16.mxu0 0
    %365 = vmatpush2.bf16.msra.mxu0 0
    %366 = vmatprep.subr.bf16.mxu0 0
    %367 = vmatpush2.bf16.msra.mxu0 0
    %368 = vmatprep.subr.bf16.mxu0 0
    %369 = vmatpush2.bf16.msra.mxu0 0
    %370 = vmatprep.subr.bf16.mxu0 0
    %371 = vmatpush2.bf16.msra.mxu0 0
    %372 = vmatprep.mubr.bf16.mxu0 0
    %373 = vmatmul.mubr.bf16.gmra.mxu0 %v338
    %v374 = vpop.f32.mrf.mxu0
    %v375 = vadd.f32 0.0, %v374
    %v376 = vpop.f32.mrf.mxu0
    %v377 = vpop.f32.mrf.mxu0
    %v378 = vadd.f32 0.0, %v377
    %v379 = vpop.f32.mrf.mxu0
    %380 = vdwg.mxu0
    %v381 = vmul.f32 %v375, %v331
    %v382 = vmul.f32 %v378, %v332
    %v383 = vpack.c.bf16 %v382, %v381
    %s384 = scalar_lea.vmem %s5, 4
    %v385 = vld [vmem:[%s384] sm:$0xf]
    %v387 = vsel %vm141, %v383, 0
    %vm389 = vcmask 1043456
    %v391 = vsel %vm389, %v385, 0
    %393 = vmatprep.subr.bf16.mxu0 0
    %394 = vmatpush1.bf16.msra.mxu0 0
    %395 = vmatprep.subr.bf16.mxu0 0
    %396 = vmatpush1.bf16.msra.mxu0 0
    %397 = vmatprep.subr.bf16.mxu0 0
    %398 = vmatpush1.bf16.msra.mxu0 0
    %399 = vmatprep.subr.bf16.mxu0 0
    %400 = vmatpush1.bf16.msra.mxu0 0
    %401 = vmatprep.subr.bf16.mxu0 0
    %402 = vmatpush1.bf16.msra.mxu0 0
    %403 = vmatprep.subr.bf16.mxu0 0
    %404 = vmatpush1.bf16.msra.mxu0 0
    %405 = vmatprep.subr.bf16.mxu0 0
    %406 = vmatpush1.bf16.msra.mxu0 0
    %407 = vmatprep.subr.bf16.mxu0 0
    %408 = vmatpush1.bf16.msra.mxu0 %v391
    %409 = vmatprep.subr.bf16.mxu0 0
    %410 = vmatpush2.bf16.msra.mxu0 0
    %411 = vmatprep.subr.bf16.mxu0 0
    %412 = vmatpush2.bf16.msra.mxu0 0
    %413 = vmatprep.subr.bf16.mxu0 0
    %414 = vmatpush2.bf16.msra.mxu0 0
    %415 = vmatprep.subr.bf16.mxu0 0
    %416 = vmatpush2.bf16.msra.mxu0 0
    %417 = vmatprep.subr.bf16.mxu0 0
    %418 = vmatpush2.bf16.msra.mxu0 0
    %419 = vmatprep.subr.bf16.mxu0 0
    %420 = vmatpush2.bf16.msra.mxu0 0
    %421 = vmatprep.subr.bf16.mxu0 0
    %422 = vmatpush2.bf16.msra.mxu0 0
    %423 = vmatprep.subr.bf16.mxu0 0
    %424 = vmatpush2.bf16.msra.mxu0 0
    %425 = vmatprep.mubr.bf16.mxu0 0
    %426 = vmatmul.mubr.bf16.gmra.mxu0 %v387
    %v427 = vpop.f32.mrf.mxu0
    %v428 = vadd.f32 0.0, %v427
    %v429 = vpop.f32.mrf.mxu0
    %v430 = vpop.f32.mrf.mxu0
    %v431 = vadd.f32 0.0, %v430
    %v432 = vpop.f32.mrf.mxu0
    %433 = vdwg.mxu0
    %v435 = vsel %vm141, %v260, 0
    %v438 = vsel %vm389, %v261, 0
    %440 = vmatprep.subr.bf16.mxu0 0
    %441 = vmatpush1.bf16.msra.mxu0 0
    %442 = vmatprep.subr.bf16.mxu0 0
    %443 = vmatpush1.bf16.msra.mxu0 0
    %444 = vmatprep.subr.bf16.mxu0 0
    %445 = vmatpush1.bf16.msra.mxu0 0
    %446 = vmatprep.subr.bf16.mxu0 0
    %447 = vmatpush1.bf16.msra.mxu0 0
    %448 = vmatprep.subr.bf16.mxu0 0
    %449 = vmatpush1.bf16.msra.mxu0 0
    %450 = vmatprep.subr.bf16.mxu0 0
    %451 = vmatpush1.bf16.msra.mxu0 0
    %452 = vmatprep.subr.bf16.mxu0 0
    %453 = vmatpush1.bf16.msra.mxu0 0
    %454 = vmatprep.subr.bf16.mxu0 0
    %455 = vmatpush1.bf16.msra.mxu0 %v438
    %456 = vmatprep.subr.bf16.mxu0 0
    %457 = vmatpush2.bf16.msra.mxu0 0
    %458 = vmatprep.subr.bf16.mxu0 0
    %459 = vmatpush2.bf16.msra.mxu0 0
    %460 = vmatprep.subr.bf16.mxu0 0
    %461 = vmatpush2.bf16.msra.mxu0 0
    %462 = vmatprep.subr.bf16.mxu0 0
    %463 = vmatpush2.bf16.msra.mxu0 0
    %464 = vmatprep.subr.bf16.mxu0 0
    %465 = vmatpush2.bf16.msra.mxu0 0
    %466 = vmatprep.subr.bf16.mxu0 0
    %467 = vmatpush2.bf16.msra.mxu0 0
    %468 = vmatprep.subr.bf16.mxu0 0
    %469 = vmatpush2.bf16.msra.mxu0 0
    %470 = vmatprep.subr.bf16.mxu0 0
    %471 = vmatpush2.bf16.msra.mxu0 0
    %472 = vmatprep.mubr.bf16.mxu0 0
    %473 = vmatmul.mubr.bf16.gmra.mxu0 %v435
    %v474 = vpop.f32.mrf.mxu0
    %v475 = vadd.f32 %v428, %v474
    %v476 = vpop.f32.mrf.mxu0
    %v477 = vpop.f32.mrf.mxu0
    %v478 = vadd.f32 %v431, %v477
    %v479 = vpop.f32.mrf.mxu0
    %480 = vdwg.mxu0
    %481 = vrot.lane.b32.xlu0 %v137, 112
    %v482 = vpop.permute.xlu0 %481
    %483 = vrot.lane.b32.xlu0 %v137, 80
    %v484 = vpop.permute.xlu0 %483
    %v486 = vsel %vm141, %v482, 0
    %v489 = vsel %vm141, %v484, 0
    %491 = vmatprep.subr.bf16.mxu0 0
    %492 = vmatpush1.bf16.xpose.msra.mxu0 0
    %493 = vmatprep.subr.bf16.mxu0 0
    %494 = vmatpush1.bf16.xpose.msra.mxu0 0
    %495 = vmatprep.subr.bf16.mxu0 0
    %496 = vmatpush1.bf16.xpose.msra.mxu0 0
    %497 = vmatprep.subr.bf16.mxu0 0
    %498 = vmatpush1.bf16.xpose.msra.mxu0 0
    %499 = vmatprep.subr.bf16.mxu0 0
    %500 = vmatpush1.bf16.xpose.msra.mxu0 0
    %501 = vmatprep.subr.bf16.mxu0 0
    %502 = vmatpush1.bf16.xpose.msra.mxu0 0
    %503 = vmatprep.subr.bf16.mxu0 0
    %504 = vmatpush1.bf16.xpose.msra.mxu0 0
    %505 = vmatprep.subr.bf16.mxu0 0
    %506 = vmatpush1.bf16.xpose.msra.mxu0 %v489
    %507 = vmatprep.subr.bf16.mxu0 0
    %508 = vmatpush2.bf16.xpose.msra.mxu0 0
    %509 = vmatprep.subr.bf16.mxu0 0
    %510 = vmatpush2.bf16.xpose.msra.mxu0 0
    %511 = vmatprep.subr.bf16.mxu0 0
    %512 = vmatpush2.bf16.xpose.msra.mxu0 0
    %513 = vmatprep.subr.bf16.mxu0 0
    %514 = vmatpush2.bf16.xpose.msra.mxu0 0
    %515 = vmatprep.subr.bf16.mxu0 0
    %516 = vmatpush2.bf16.xpose.msra.mxu0 0
    %517 = vmatprep.subr.bf16.mxu0 0
    %518 = vmatpush2.bf16.xpose.msra.mxu0 0
    %519 = vmatprep.subr.bf16.mxu0 0
    %520 = vmatpush2.bf16.xpose.msra.mxu0 0
    %521 = vmatprep.subr.bf16.mxu0 0
    %522 = vmatpush2.bf16.xpose.msra.mxu0 0
    %523 = vmatprep.mubr.bf16.mxu0 0
    %524 = vmatmul.mubr.bf16.gmra.mxu0 %v486
    %v525 = vpop.f32.mrf.mxu0
    %v526 = vadd.f32 %v66, %v525
    %v527 = vpop.f32.mrf.mxu0
    %v528 = vpop.f32.mrf.mxu0
    %v529 = vadd.f32 %v67, %v528
    %v530 = vpop.f32.mrf.mxu0
    %531 = vdwg.mxu0
    %v532 = vsel %vm189, %v526, -inf
    %533 = vmax.xlane.f32.xlu0 %v532
    %v534 = vpop.xlane.xlu0 %533
    %v535 = vsel %vm189, %v529, -inf
    %536 = vmax.xlane.f32.xlu0 %v535
    %v537 = vpop.xlane.xlu0 %536
    %v538 = vsub.f32 %v526, %v534
    %v539 = vsub.f32 %v529, %v537
    %v540 = vmul.f32 %v538, 1.442695
    %v541 = vpow.pop %v540
    %v542 = vmul.f32 %v539, 1.442695
    %v543 = vpow.pop %v542
    %v544 = vsel %vm189, %v541, 0.0
    %545 = vadd.xlane.f32.xlu0 %v544
    %v546 = vpop.xlane.xlu0 %545
    %v547 = vsel %vm189, %v543, 0.0
    %548 = vadd.xlane.f32.xlu0 %v547
    %v549 = vpop.xlane.xlu0 %548
    %v550 = vrcp.pop %v546
    %v551 = vrcp.pop %v549
    %v552 = vpack.c.bf16 %v543, %v541
    %553 = vrot.lane.b32.xlu0 %v137, 48
    %v554 = vpop.permute.xlu0 %553
    %v557 = vsel %vm189, %v552, 0
    %559 = vmatprep.subr.bf16.mxu0 0
    %560 = vmatpush1.bf16.msra.mxu0 0
    %561 = vmatprep.subr.bf16.mxu0 0
    %562 = vmatpush1.bf16.msra.mxu0 0
    %563 = vmatprep.subr.bf16.mxu0 0
    %564 = vmatpush1.bf16.msra.mxu0 0
    %565 = vmatprep.subr.bf16.mxu0 0
    %566 = vmatpush1.bf16.msra.mxu0 0
    %567 = vmatprep.subr.bf16.mxu0 0
    %568 = vmatpush1.bf16.msra.mxu0 0
    %569 = vmatprep.subr.bf16.mxu0 0
    %570 = vmatpush1.bf16.msra.mxu0 0
    %571 = vmatprep.subr.bf16.mxu0 0
    %572 = vmatpush1.bf16.msra.mxu0 0
    %573 = vmatprep.subr.bf16.mxu0 0
    %574 = vmatpush1.bf16.msra.mxu0 %v554
    %575 = vmatprep.subr.bf16.mxu0 0
    %576 = vmatpush2.bf16.msra.mxu0 0
    %577 = vmatprep.subr.bf16.mxu0 0
    %578 = vmatpush2.bf16.msra.mxu0 0
    %579 = vmatprep.subr.bf16.mxu0 0
    %580 = vmatpush2.bf16.msra.mxu0 0
    %581 = vmatprep.subr.bf16.mxu0 0
    %582 = vmatpush2.bf16.msra.mxu0 0
    %583 = vmatprep.subr.bf16.mxu0 0
    %584 = vmatpush2.bf16.msra.mxu0 0
    %585 = vmatprep.subr.bf16.mxu0 0
    %586 = vmatpush2.bf16.msra.mxu0 0
    %587 = vmatprep.subr.bf16.mxu0 0
    %588 = vmatpush2.bf16.msra.mxu0 0
    %589 = vmatprep.subr.bf16.mxu0 0
    %590 = vmatpush2.bf16.msra.mxu0 0
    %591 = vmatprep.mubr.bf16.mxu0 0
    %592 = vmatmul.mubr.bf16.gmra.mxu0 %v557
    %v593 = vpop.f32.mrf.mxu0
    %v594 = vadd.f32 0.0, %v593
    %v595 = vpop.f32.mrf.mxu0
    %v596 = vpop.f32.mrf.mxu0
    %v597 = vadd.f32 0.0, %v596
    %v598 = vpop.f32.mrf.mxu0
    %599 = vdwg.mxu0
    %v600 = vmul.f32 %v594, %v550
    %v601 = vmul.f32 %v597, %v551
    %v602 = vpack.c.bf16 %v601, %v600
    %s603 = scalar_lea.vmem %s5, 8
    %v604 = vld [vmem:[%s603] sm:$0xf]
    %v606 = vsel %vm141, %v602, 0
    %v609 = vsel %vm389, %v604, 0
    %611 = vmatprep.subr.bf16.mxu0 0
    %612 = vmatpush1.bf16.msra.mxu0 0
    %613 = vmatprep.subr.bf16.mxu0 0
    %614 = vmatpush1.bf16.msra.mxu0 0
    %615 = vmatprep.subr.bf16.mxu0 0
    %616 = vmatpush1.bf16.msra.mxu0 0
    %617 = vmatprep.subr.bf16.mxu0 0
    %618 = vmatpush1.bf16.msra.mxu0 0
    %619 = vmatprep.subr.bf16.mxu0 0
    %620 = vmatpush1.bf16.msra.mxu0 0
    %621 = vmatprep.subr.bf16.mxu0 0
    %622 = vmatpush1.bf16.msra.mxu0 0
    %623 = vmatprep.subr.bf16.mxu0 0
    %624 = vmatpush1.bf16.msra.mxu0 0
    %625 = vmatprep.subr.bf16.mxu0 0
    %626 = vmatpush1.bf16.msra.mxu0 %v609
    %627 = vmatprep.subr.bf16.mxu0 0
    %628 = vmatpush2.bf16.msra.mxu0 0
    %629 = vmatprep.subr.bf16.mxu0 0
    %630 = vmatpush2.bf16.msra.mxu0 0
    %631 = vmatprep.subr.bf16.mxu0 0
    %632 = vmatpush2.bf16.msra.mxu0 0
    %633 = vmatprep.subr.bf16.mxu0 0
    %634 = vmatpush2.bf16.msra.mxu0 0
    %635 = vmatprep.subr.bf16.mxu0 0
    %636 = vmatpush2.bf16.msra.mxu0 0
    %637 = vmatprep.subr.bf16.mxu0 0
    %638 = vmatpush2.bf16.msra.mxu0 0
    %639 = vmatprep.subr.bf16.mxu0 0
    %640 = vmatpush2.bf16.msra.mxu0 0
    %641 = vmatprep.subr.bf16.mxu0 0
    %642 = vmatpush2.bf16.msra.mxu0 0
    %643 = vmatprep.mubr.bf16.mxu0 0
    %644 = vmatmul.mubr.bf16.gmra.mxu0 %v606
    %v645 = vpop.f32.mrf.mxu0
    %v646 = vadd.f32 0.0, %v645
    %v647 = vpop.f32.mrf.mxu0
    %v648 = vpop.f32.mrf.mxu0
    %v649 = vadd.f32 0.0, %v648
    %v650 = vpop.f32.mrf.mxu0
    %651 = vdwg.mxu0
    %v652 = vadd.f32 %v475, %v646
    %v653 = vadd.f32 %v478, %v649
    %654 = vrot.lane.b32.xlu0 %v137, 104
    %v655 = vpop.permute.xlu0 %654
    %656 = vrot.lane.b32.xlu0 %v137, 72
    %v657 = vpop.permute.xlu0 %656
    %v659 = vsel %vm141, %v655, 0
    %v662 = vsel %vm141, %v657, 0
    %664 = vmatprep.subr.bf16.mxu0 0
    %665 = vmatpush1.bf16.xpose.msra.mxu0 0
    %666 = vmatprep.subr.bf16.mxu0 0
    %667 = vmatpush1.bf16.xpose.msra.mxu0 0
    %668 = vmatprep.subr.bf16.mxu0 0
    %669 = vmatpush1.bf16.xpose.msra.mxu0 0
    %670 = vmatprep.subr.bf16.mxu0 0
    %671 = vmatpush1.bf16.xpose.msra.mxu0 0
    %672 = vmatprep.subr.bf16.mxu0 0
    %673 = vmatpush1.bf16.xpose.msra.mxu0 0
    %674 = vmatprep.subr.bf16.mxu0 0
    %675 = vmatpush1.bf16.xpose.msra.mxu0 0
    %676 = vmatprep.subr.bf16.mxu0 0
    %677 = vmatpush1.bf16.xpose.msra.mxu0 0
    %678 = vmatprep.subr.bf16.mxu0 0
    %679 = vmatpush1.bf16.xpose.msra.mxu0 %v662
    %680 = vmatprep.subr.bf16.mxu0 0
    %681 = vmatpush2.bf16.xpose.msra.mxu0 0
    %682 = vmatprep.subr.bf16.mxu0 0
    %683 = vmatpush2.bf16.xpose.msra.mxu0 0
    %684 = vmatprep.subr.bf16.mxu0 0
    %685 = vmatpush2.bf16.xpose.msra.mxu0 0
    %686 = vmatprep.subr.bf16.mxu0 0
    %687 = vmatpush2.bf16.xpose.msra.mxu0 0
    %688 = vmatprep.subr.bf16.mxu0 0
    %689 = vmatpush2.bf16.xpose.msra.mxu0 0
    %690 = vmatprep.subr.bf16.mxu0 0
    %691 = vmatpush2.bf16.xpose.msra.mxu0 0
    %692 = vmatprep.subr.bf16.mxu0 0
    %693 = vmatpush2.bf16.xpose.msra.mxu0 0
    %694 = vmatprep.subr.bf16.mxu0 0
    %695 = vmatpush2.bf16.xpose.msra.mxu0 0
    %696 = vmatprep.mubr.bf16.mxu0 0
    %697 = vmatmul.mubr.bf16.gmra.mxu0 %v659
    %v698 = vpop.f32.mrf.mxu0
    %v699 = vadd.f32 %v66, %v698
    %v700 = vpop.f32.mrf.mxu0
    %v701 = vpop.f32.mrf.mxu0
    %v702 = vadd.f32 %v67, %v701
    %v703 = vpop.f32.mrf.mxu0
    %704 = vdwg.mxu0
    %v705 = vsel %vm189, %v699, -inf
    %706 = vmax.xlane.f32.xlu0 %v705
    %v707 = vpop.xlane.xlu0 %706
    %v708 = vsel %vm189, %v702, -inf
    %709 = vmax.xlane.f32.xlu0 %v708
    %v710 = vpop.xlane.xlu0 %709
    %v711 = vsub.f32 %v699, %v707
    %v712 = vsub.f32 %v702, %v710
    %v713 = vmul.f32 %v711, 1.442695
    %v714 = vpow.pop %v713
    %v715 = vmul.f32 %v712, 1.442695
    %v716 = vpow.pop %v715
    %v717 = vsel %vm189, %v714, 0.0
    %718 = vadd.xlane.f32.xlu0 %v717
    %v719 = vpop.xlane.xlu0 %718
    %v720 = vsel %vm189, %v716, 0.0
    %721 = vadd.xlane.f32.xlu0 %v720
    %v722 = vpop.xlane.xlu0 %721
    %v723 = vrcp.pop %v719
    %v724 = vrcp.pop %v722
    %v725 = vpack.c.bf16 %v716, %v714
    %726 = vrot.lane.b32.xlu0 %v137, 40
    %v727 = vpop.permute.xlu0 %726
    %v730 = vsel %vm189, %v725, 0
    %732 = vmatprep.subr.bf16.mxu0 0
    %733 = vmatpush1.bf16.msra.mxu0 0
    %734 = vmatprep.subr.bf16.mxu0 0
    %735 = vmatpush1.bf16.msra.mxu0 0
    %736 = vmatprep.subr.bf16.mxu0 0
    %737 = vmatpush1.bf16.msra.mxu0 0
    %738 = vmatprep.subr.bf16.mxu0 0
    %739 = vmatpush1.bf16.msra.mxu0 0
    %740 = vmatprep.subr.bf16.mxu0 0
    %741 = vmatpush1.bf16.msra.mxu0 0
    %742 = vmatprep.subr.bf16.mxu0 0
    %743 = vmatpush1.bf16.msra.mxu0 0
    %744 = vmatprep.subr.bf16.mxu0 0
    %745 = vmatpush1.bf16.msra.mxu0 0
    %746 = vmatprep.subr.bf16.mxu0 0
    %747 = vmatpush1.bf16.msra.mxu0 %v727
    %748 = vmatprep.subr.bf16.mxu0 0
    %749 = vmatpush2.bf16.msra.mxu0 0
    %750 = vmatprep.subr.bf16.mxu0 0
    %751 = vmatpush2.bf16.msra.mxu0 0
    %752 = vmatprep.subr.bf16.mxu0 0
    %753 = vmatpush2.bf16.msra.mxu0 0
    %754 = vmatprep.subr.bf16.mxu0 0
    %755 = vmatpush2.bf16.msra.mxu0 0
    %756 = vmatprep.subr.bf16.mxu0 0
    %757 = vmatpush2.bf16.msra.mxu0 0
    %758 = vmatprep.subr.bf16.mxu0 0
    %759 = vmatpush2.bf16.msra.mxu0 0
    %760 = vmatprep.subr.bf16.mxu0 0
    %761 = vmatpush2.bf16.msra.mxu0 0
    %762 = vmatprep.subr.bf16.mxu0 0
    %763 = vmatpush2.bf16.msra.mxu0 0
    %764 = vmatprep.mubr.bf16.mxu0 0
    %765 = vmatmul.mubr.bf16.gmra.mxu0 %v730
    %v766 = vpop.f32.mrf.mxu0
    %v767 = vadd.f32 0.0, %v766
    %v768 = vpop.f32.mrf.mxu0
    %v769 = vpop.f32.mrf.mxu0
    %v770 = vadd.f32 0.0, %v769
    %v771 = vpop.f32.mrf.mxu0
    %772 = vdwg.mxu0
    %v773 = vmul.f32 %v767, %v723
    %v774 = vmul.f32 %v770, %v724
    %v775 = vpack.c.bf16 %v774, %v773
    %s776 = scalar_lea.vmem %s5, 12
    %v777 = vld [vmem:[%s776] sm:$0xf]
    %v779 = vsel %vm141, %v775, 0
    %v782 = vsel %vm389, %v777, 0
    %784 = vmatprep.subr.bf16.mxu0 0
    %785 = vmatpush1.bf16.msra.mxu0 0
    %786 = vmatprep.subr.bf16.mxu0 0
    %787 = vmatpush1.bf16.msra.mxu0 0
    %788 = vmatprep.subr.bf16.mxu0 0
    %789 = vmatpush1.bf16.msra.mxu0 0
    %790 = vmatprep.subr.bf16.mxu0 0
    %791 = vmatpush1.bf16.msra.mxu0 0
    %792 = vmatprep.subr.bf16.mxu0 0
    %793 = vmatpush1.bf16.msra.mxu0 0
    %794 = vmatprep.subr.bf16.mxu0 0
    %795 = vmatpush1.bf16.msra.mxu0 0
    %796 = vmatprep.subr.bf16.mxu0 0
    %797 = vmatpush1.bf16.msra.mxu0 0
    %798 = vmatprep.subr.bf16.mxu0 0
    %799 = vmatpush1.bf16.msra.mxu0 %v782
    %800 = vmatprep.subr.bf16.mxu0 0
    %801 = vmatpush2.bf16.msra.mxu0 0
    %802 = vmatprep.subr.bf16.mxu0 0
    %803 = vmatpush2.bf16.msra.mxu0 0
    %804 = vmatprep.subr.bf16.mxu0 0
    %805 = vmatpush2.bf16.msra.mxu0 0
    %806 = vmatprep.subr.bf16.mxu0 0
    %807 = vmatpush2.bf16.msra.mxu0 0
    %808 = vmatprep.subr.bf16.mxu0 0
    %809 = vmatpush2.bf16.msra.mxu0 0
    %810 = vmatprep.subr.bf16.mxu0 0
    %811 = vmatpush2.bf16.msra.mxu0 0
    %812 = vmatprep.subr.bf16.mxu0 0
    %813 = vmatpush2.bf16.msra.mxu0 0
    %814 = vmatprep.subr.bf16.mxu0 0
    %815 = vmatpush2.bf16.msra.mxu0 0
    %816 = vmatprep.mubr.bf16.mxu0 0
    %817 = vmatmul.mubr.bf16.gmra.mxu0 %v779
    %v818 = vpop.f32.mrf.mxu0
    %v819 = vadd.f32 0.0, %v818
    %v820 = vpop.f32.mrf.mxu0
    %v821 = vpop.f32.mrf.mxu0
    %v822 = vadd.f32 0.0, %v821
    %v823 = vpop.f32.mrf.mxu0
    %824 = vdwg.mxu0
    %v825 = vadd.f32 %v652, %v819
    %v826 = vadd.f32 %v653, %v822
    %v827 = vld [vmem:[%s6] sm:$0x1]
    %v829 = vlaneseq
    %v830 = vshrl.u32 %v829, 7
    %v831 = vsub.s32 0, %v830
    %v832 = vrot.slane %v827, %v831
    %v834 = vadd.f32 %v825, %v832
    %v835 = vadd.f32 %v826, %v832
    %v836 = vadd.f32 %v64, %v834
    %v837 = vadd.f32 %v65, %v835
    %v838 = vld [vmem:[%s7] sm:$0x1]
    %v839 = vld [vmem:[%s8] sm:$0x1]
    %v840 = vsel %vm92, %v836, 0.0
    %841 = vadd.xlane.f32.xlu0 %v840
    %v842 = vpop.xlane.xlu0 %841
    %v843 = vsel %vm92, %v837, 0.0
    %844 = vadd.xlane.f32.xlu0 %v843
    %v845 = vpop.xlane.xlu0 %844
    %v846 = vrcp.pop 32.0
    %v847 = vmul.f32 %v842, %v846
    %v848 = vmul.f32 %v845, %v846
    %v849 = vsub.f32 %v836, %v847
    %v850 = vsub.f32 %v837, %v848
    %v851 = vmul.f32 %v849, %v849
    %v852 = vmul.f32 %v850, %v850
    %v853 = vsel %vm92, %v851, 0.0
    %854 = vadd.xlane.f32.xlu0 %v853
    %v855 = vpop.xlane.xlu0 %854
    %v856 = vsel %vm92, %v852, 0.0
    %857 = vadd.xlane.f32.xlu0 %v856
    %v858 = vpop.xlane.xlu0 %857
    %v859 = vmul.f32 %v855, %v846
    %v860 = vmul.f32 %v858, %v846
    %v861 = vadd.f32 %v859, 1e-12
    %v862 = vadd.f32 %v860, 1e-12
    %v863 = vrsqrt.pop %v861
    %v864 = vrsqrt.pop %v862
    %v865 = vmul.f32 %v849, %v863
    %v866 = vmul.f32 %v850, %v864
    %v868 = vlaneseq
    %v869 = vshrl.u32 %v868, 7
    %v870 = vsub.s32 0, %v869
    %v871 = vrot.slane %v838, %v870
    %v873 = vmul.f32 %v865, %v871
    %v874 = vmul.f32 %v866, %v871
    %v876 = vlaneseq
    %v877 = vshrl.u32 %v876, 7
    %v878 = vsub.s32 0, %v877
    %v879 = vrot.slane %v839, %v878
    %v881 = vadd.f32 %v873, %v879
    %v882 = vadd.f32 %v874, %v879
    %v883 = vpack.c.bf16 %v882, %v881
    %v884 = vld [vmem:[%s9] sm:$0xf]
    %v885 = vld [vmem:[%s9 + $0x4] sm:$0xf]
    %v886 = vld [vmem:[%s9 + $0x8] sm:$0xf]
    %v887 = vld [vmem:[%s9 + $0xc] sm:$0xf]
    %v888 = vld [vmem:[%s10] sm:$0x1]
    %v890 = vlaneseq
    %v891 = vshrl.u32 %v890, 7
    %v892 = vsub.s32 0, %v891
    %v893 = vrot.slane %v888, %v892
    %v899 = vunpack.c.l.b16 %v884
    %v900 = vunpack.c.l.b16 %v885
    %v901 = vunpack.c.l.b16 %v886
    %v902 = vunpack.c.l.b16 %v887
    %v903 = vpack.c.b16 %v900, %v899
    %v904 = vpack.c.b16 %v902, %v901
    %v908 = vsel %vm92, %v883, 0
    %910 = vmatprep.subr.bf16.mxu0 0
    %911 = vmatpush1.bf16.msra.mxu0 0
    %912 = vmatprep.subr.bf16.mxu0 0
    %913 = vmatpush1.bf16.msra.mxu0 0
    %914 = vmatprep.subr.bf16.mxu0 0
    %915 = vmatpush1.bf16.msra.mxu0 0
    %916 = vmatprep.subr.bf16.mxu0 0
    %917 = vmatpush1.bf16.msra.mxu0 0
    %918 = vmatprep.subr.bf16.mxu0 0
    %919 = vmatpush1.bf16.msra.mxu0 0
    %920 = vmatprep.subr.bf16.mxu0 0
    %921 = vmatpush1.bf16.msra.mxu0 0
    %922 = vmatprep.subr.bf16.mxu0 0
    %923 = vmatpush1.bf16.msra.mxu0 %v904
    %924 = vmatprep.subr.bf16.mxu0 0
    %925 = vmatpush1.bf16.msra.mxu0 %v903
    %926 = vmatprep.subr.bf16.mxu0 0
    %927 = vmatpush2.bf16.msra.mxu0 0
    %928 = vmatprep.subr.bf16.mxu0 0
    %929 = vmatpush2.bf16.msra.mxu0 0
    %930 = vmatprep.subr.bf16.mxu0 0
    %931 = vmatpush2.bf16.msra.mxu0 0
    %932 = vmatprep.subr.bf16.mxu0 0
    %933 = vmatpush2.bf16.msra.mxu0 0
    %934 = vmatprep.subr.bf16.mxu0 0
    %935 = vmatpush2.bf16.msra.mxu0 0
    %936 = vmatprep.subr.bf16.mxu0 0
    %937 = vmatpush2.bf16.msra.mxu0 0
    %938 = vmatprep.subr.bf16.mxu0 0
    %939 = vmatpush2.bf16.msra.mxu0 0
    %940 = vmatprep.subr.bf16.mxu0 0
    %941 = vmatpush2.bf16.msra.mxu0 0
    %942 = vmatprep.mubr.bf16.mxu0 0
    %943 = vmatmul.mubr.bf16.gmra.mxu0 %v908
    %v944 = vpop.f32.mrf.mxu0
    %v945 = vadd.f32 %v893, %v944
    %v946 = vpop.f32.mrf.mxu0
    %v947 = vpop.f32.mrf.mxu0
    %v948 = vadd.f32 %v893, %v947
    %v949 = vpop.f32.mrf.mxu0
    %950 = vdwg.mxu0
    %v951 = vmul.f32 %v945, 0.5
    %v952 = vmul.f32 %v948, 0.5
    %v953 = vmul.f32 %v945, 0.044715
    %v954 = vmul.f32 %v948, 0.044715
    %v955 = vmul.f32 %v953, %v945
    %v956 = vmul.f32 %v954, %v948
    %v957 = vmul.f32 %v955, %v945
    %v958 = vmul.f32 %v956, %v948
    %v959 = vadd.f32 %v945, %v957
    %v960 = vadd.f32 %v948, %v958
    %v961 = vmul.f32 %v959, 0.7978846
    %v962 = vmul.f32 %v960, 0.7978846
    %v963 = vtanh.pop %v961
    %v964 = vtanh.pop %v962
    %v965 = vadd.f32 %v963, 1.0
    %v966 = vadd.f32 %v964, 1.0
    %v967 = vmul.f32 %v951, %v965
    %v968 = vmul.f32 %v952, %v966
    %v969 = vpack.c.bf16 %v968, %v967
    %v970 = vld [vmem:[%s11] sm:$0xf]
    %v971 = vld [vmem:[%s11 + $0x4] sm:$0xf]
    %v972 = vld [vmem:[%s11 + $0x8] sm:$0xf]
    %v973 = vld [vmem:[%s11 + $0xc] sm:$0xf]
    %v974 = vld [vmem:[%s11 + $0x10] sm:$0xf]
    %v975 = vld [vmem:[%s11 + $0x14] sm:$0xf]
    %v976 = vld [vmem:[%s11 + $0x18] sm:$0xf]
    %v977 = vld [vmem:[%s11 + $0x1c] sm:$0xf]
    %v978 = vld [vmem:[%s11 + $0x20] sm:$0xf]
    %v979 = vld [vmem:[%s11 + $0x24] sm:$0xf]
    %v980 = vld [vmem:[%s11 + $0x28] sm:$0xf]
    %v981 = vld [vmem:[%s11 + $0x2c] sm:$0xf]
    %v982 = vld [vmem:[%s11 + $0x30] sm:$0xf]
    %v983 = vld [vmem:[%s11 + $0x34] sm:$0xf]
    %v984 = vld [vmem:[%s11 + $0x38] sm:$0xf]
    %v985 = vld [vmem:[%s11 + $0x3c] sm:$0xf]
    %v986 = vld [vmem:[%s12] sm:$0x1]
    %v988 = vlaneseq
    %v989 = vshrl.u32 %v988, 7
    %v990 = vsub.s32 0, %v989
    %v991 = vrot.slane %v986, %v990
    %v1009 = vunpack.c.l.b16 %v970
    %v1010 = vunpack.c.l.b16 %v971
    %v1011 = vunpack.c.l.b16 %v972
    %v1012 = vunpack.c.l.b16 %v973
    %v1013 = vunpack.c.l.b16 %v974
    %v1014 = vunpack.c.l.b16 %v975
    %v1015 = vunpack.c.l.b16 %v976
    %v1016 = vunpack.c.l.b16 %v977
    %v1017 = vunpack.c.l.b16 %v978
    %v1018 = vunpack.c.l.b16 %v979
    %v1019 = vunpack.c.l.b16 %v980
    %v1020 = vunpack.c.l.b16 %v981
    %v1021 = vunpack.c.l.b16 %v982
    %v1022 = vunpack.c.l.b16 %v983
    %v1023 = vunpack.c.l.b16 %v984
    %v1024 = vunpack.c.l.b16 %v985
    %v1025 = vpack.c.b16 %v1010, %v1009
    %v1026 = vpack.c.b16 %v1012, %v1011
    %v1027 = vpack.c.b16 %v1014, %v1013
    %v1028 = vpack.c.b16 %v1016, %v1015
    %v1029 = vpack.c.b16 %v1018, %v1017
    %v1030 = vpack.c.b16 %v1020, %v1019
    %v1031 = vpack.c.b16 %v1022, %v1021
    %v1032 = vpack.c.b16 %v1024, %v1023
    %1041 = vmatprep.subr.bf16.mxu0 0
    %1042 = vmatpush1.bf16.msra.mxu0 %v1032
    %1043 = vmatprep.subr.bf16.mxu0 0
    %1044 = vmatpush1.bf16.msra.mxu0 %v1031
    %1045 = vmatprep.subr.bf16.mxu0 0
    %1046 = vmatpush1.bf16.msra.mxu0 %v1030
    %1047 = vmatprep.subr.bf16.mxu0 0
    %1048 = vmatpush1.bf16.msra.mxu0 %v1029
    %1049 = vmatprep.subr.bf16.mxu0 0
    %1050 = vmatpush1.bf16.msra.mxu0 %v1028
    %1051 = vmatprep.subr.bf16.mxu0 0
    %1052 = vmatpush1.bf16.msra.mxu0 %v1027
    %1053 = vmatprep.subr.bf16.mxu0 0
    %1054 = vmatpush1.bf16.msra.mxu0 %v1026
    %1055 = vmatprep.subr.bf16.mxu0 0
    %1056 = vmatpush1.bf16.msra.mxu0 %v1025
    %1057 = vmatprep.subr.bf16.mxu0 0
    %1058 = vmatpush2.bf16.msra.mxu0 0
    %1059 = vmatprep.subr.bf16.mxu0 0
    %1060 = vmatpush2.bf16.msra.mxu0 0
    %1061 = vmatprep.subr.bf16.mxu0 0
    %1062 = vmatpush2.bf16.msra.mxu0 0
    %1063 = vmatprep.subr.bf16.mxu0 0
    %1064 = vmatpush2.bf16.msra.mxu0 0
    %1065 = vmatprep.subr.bf16.mxu0 0
    %1066 = vmatpush2.bf16.msra.mxu0 0
    %1067 = vmatprep.subr.bf16.mxu0 0
    %1068 = vmatpush2.bf16.msra.mxu0 0
    %1069 = vmatprep.subr.bf16.mxu0 0
    %1070 = vmatpush2.bf16.msra.mxu0 0
    %1071 = vmatprep.subr.bf16.mxu0 0
    %1072 = vmatpush2.bf16.msra.mxu0 0
    %1073 = vmatprep.mubr.bf16.mxu0 0
    %1074 = vmatmul.mubr.bf16.gmra.mxu0 %v969
    %v1075 = vpop.f32.mrf.mxu0
    %v1076 = vadd.f32 %v991, %v1075
    %v1077 = vpop.f32.mrf.mxu0
    %v1078 = vpop.f32.mrf.mxu0
    %v1079 = vadd.f32 %v991, %v1078
    %v1080 = vpop.f32.mrf.mxu0
    %1081 = vdwg.mxu0
    %v1082 = vadd.f32 %v881, %v1076
    %v1083 = vadd.f32 %v882, %v1079
    %v1084 = vld [vmem:[%s13] sm:$0x1]
    %v1085 = vld [vmem:[%s14] sm:$0x1]
    %v1086 = vsel %vm92, %v1082, 0.0
    %1087 = vadd.xlane.f32.xlu0 %v1086
    %v1088 = vpop.xlane.xlu0 %1087
    %v1089 = vsel %vm92, %v1083, 0.0
    %1090 = vadd.xlane.f32.xlu0 %v1089
    %v1091 = vpop.xlane.xlu0 %1090
    %v1092 = vmul.f32 %v1088, %v846
    %v1093 = vmul.f32 %v1091, %v846
    %v1094 = vsub.f32 %v1082, %v1092
    %v1095 = vsub.f32 %v1083, %v1093
    %v1096 = vmul.f32 %v1094, %v1094
    %v1097 = vmul.f32 %v1095, %v1095
    %v1098 = vsel %vm92, %v1096, 0.0
    %1099 = vadd.xlane.f32.xlu0 %v1098
    %v1100 = vpop.xlane.xlu0 %1099
    %v1101 = vsel %vm92, %v1097, 0.0
    %1102 = vadd.xlane.f32.xlu0 %v1101
    %v1103 = vpop.xlane.xlu0 %1102
    %v1104 = vmul.f32 %v1100, %v846
    %v1105 = vmul.f32 %v1103, %v846
    %v1106 = vadd.f32 %v1104, 1e-12
    %v1107 = vadd.f32 %v1105, 1e-12
    %v1108 = vrsqrt.pop %v1106
    %v1109 = vrsqrt.pop %v1107
    %v1110 = vmul.f32 %v1094, %v1108
    %v1111 = vmul.f32 %v1095, %v1109
    %v1113 = vlaneseq
    %v1114 = vshrl.u32 %v1113, 7
    %v1115 = vsub.s32 0, %v1114
    %v1116 = vrot.slane %v1084, %v1115
    %v1118 = vmul.f32 %v1110, %v1116
    %v1119 = vmul.f32 %v1111, %v1116
    %v1121 = vlaneseq
    %v1122 = vshrl.u32 %v1121, 7
    %v1123 = vsub.s32 0, %v1122
    %v1124 = vrot.slane %v1085, %v1123
    %v1126 = vadd.f32 %v1118, %v1124
    %v1127 = vadd.f32 %v1119, %v1124
    %v1128 = vpack.c.bf16 %v1127, %v1126
    %s1129 = scalar_lea.vmem %s3, 16
    %v1130 = vld [vmem:[%s1129] sm:$0xf]
    %v1131 = vld [vmem:[%s1129 + $0x4] sm:$0xf]
    %v1132 = vld [vmem:[%s1129 + $0x8] sm:$0xf]
    %v1133 = vld [vmem:[%s1129 + $0xc] sm:$0xf]
    %s1134 = scalar_lea.vmem %s4, 1
    %v1135 = vld [vmem:[%s1134] sm:$0x1]
    %v1137 = vlaneseq
    %v1138 = vshrl.u32 %v1137, 7
    %v1139 = vsub.s32 0, %v1138
    %v1140 = vrot.slane %v1135, %v1139
    %v1146 = vunpack.c.l.b16 %v1130
    %v1147 = vunpack.c.l.b16 %v1131
    %v1148 = vunpack.c.l.b16 %v1132
    %v1149 = vunpack.c.l.b16 %v1133
    %v1150 = vpack.c.b16 %v1147, %v1146
    %v1151 = vpack.c.b16 %v1149, %v1148
    %v1155 = vsel %vm92, %v1128, 0
    %1157 = vmatprep.subr.bf16.mxu0 0
    %1158 = vmatpush1.bf16.msra.mxu0 0
    %1159 = vmatprep.subr.bf16.mxu0 0
    %1160 = vmatpush1.bf16.msra.mxu0 0
    %1161 = vmatprep.subr.bf16.mxu0 0
    %1162 = vmatpush1.bf16.msra.mxu0 0
    %1163 = vmatprep.subr.bf16.mxu0 0
    %1164 = vmatpush1.bf16.msra.mxu0 0
    %1165 = vmatprep.subr.bf16.mxu0 0
    %1166 = vmatpush1.bf16.msra.mxu0 0
    %1167 = vmatprep.subr.bf16.mxu0 0
    %1168 = vmatpush1.bf16.msra.mxu0 0
    %1169 = vmatprep.subr.bf16.mxu0 0
    %1170 = vmatpush1.bf16.msra.mxu0 %v1151
    %1171 = vmatprep.subr.bf16.mxu0 0
    %1172 = vmatpush1.bf16.msra.mxu0 %v1150
    %1173 = vmatprep.subr.bf16.mxu0 0
    %1174 = vmatpush2.bf16.msra.mxu0 0
    %1175 = vmatprep.subr.bf16.mxu0 0
    %1176 = vmatpush2.bf16.msra.mxu0 0
    %1177 = vmatprep.subr.bf16.mxu0 0
    %1178 = vmatpush2.bf16.msra.mxu0 0
    %1179 = vmatprep.subr.bf16.mxu0 0
    %1180 = vmatpush2.bf16.msra.mxu0 0
    %1181 = vmatprep.subr.bf16.mxu0 0
    %1182 = vmatpush2.bf16.msra.mxu0 0
    %1183 = vmatprep.subr.bf16.mxu0 0
    %1184 = vmatpush2.bf16.msra.mxu0 0
    %1185 = vmatprep.subr.bf16.mxu0 0
    %1186 = vmatpush2.bf16.msra.mxu0 0
    %1187 = vmatprep.subr.bf16.mxu0 0
    %1188 = vmatpush2.bf16.msra.mxu0 0
    %1189 = vmatprep.mubr.bf16.mxu0 0
    %1190 = vmatmul.mubr.bf16.gmra.mxu0 %v1155
    %v1191 = vpop.f32.mrf.mxu0
    %v1192 = vadd.f32 %v1140, %v1191
    %v1193 = vpop.f32.mrf.mxu0
    %v1194 = vpop.f32.mrf.mxu0
    %v1195 = vadd.f32 %v1140, %v1194
    %v1196 = vpop.f32.mrf.mxu0
    %1197 = vdwg.mxu0
    %v1198 = vpack.c.bf16 %v1195, %v1192
    %1200 = vrot.lane.b32.xlu0 %v1198, 96
    %v1201 = vpop.permute.xlu0 %1200
    %v1203 = vsel %vm141, %v1198, 0
    %v1206 = vsel %vm141, %v1201, 0
    %1208 = vmatprep.subr.bf16.mxu0 0
    %1209 = vmatpush1.bf16.xpose.msra.mxu0 0
    %1210 = vmatprep.subr.bf16.mxu0 0
    %1211 = vmatpush1.bf16.xpose.msra.mxu0 0
    %1212 = vmatprep.subr.bf16.mxu0 0
    %1213 = vmatpush1.bf16.xpose.msra.mxu0 0
    %1214 = vmatprep.subr.bf16.mxu0 0
    %1215 = vmatpush1.bf16.xpose.msra.mxu0 0
    %1216 = vmatprep.subr.bf16.mxu0 0
    %1217 = vmatpush1.bf16.xpose.msra.mxu0 0
    %1218 = vmatprep.subr.bf16.mxu0 0
    %1219 = vmatpush1.bf16.xpose.msra.mxu0 0
    %1220 = vmatprep.subr.bf16.mxu0 0
    %1221 = vmatpush1.bf16.xpose.msra.mxu0 0
    %1222 = vmatprep.subr.bf16.mxu0 0
    %1223 = vmatpush1.bf16.xpose.msra.mxu0 %v1206
    %1224 = vmatprep.subr.bf16.mxu0 0
    %1225 = vmatpush2.bf16.xpose.msra.mxu0 0
    %1226 = vmatprep.subr.bf16.mxu0 0
    %1227 = vmatpush2.bf16.xpose.msra.mxu0 0
    %1228 = vmatprep.subr.bf16.mxu0 0
    %1229 = vmatpush2.bf16.xpose.msra.mxu0 0
    %1230 = vmatprep.subr.bf16.mxu0 0
    %1231 = vmatpush2.bf16.xpose.msra.mxu0 0
    %1232 = vmatprep.subr.bf16.mxu0 0
    %1233 = vmatpush2.bf16.xpose.msra.mxu0 0
    %1234 = vmatprep.subr.bf16.mxu0 0
    %1235 = vmatpush2.bf16.xpose.msra.mxu0 0
    %1236 = vmatprep.subr.bf16.mxu0 0
    %1237 = vmatpush2.bf16.xpose.msra.mxu0 0
    %1238 = vmatprep.subr.bf16.mxu0 0
    %1239 = vmatpush2.bf16.xpose.msra.mxu0 0
    %1240 = vmatprep.mubr.bf16.mxu0 0
    %1241 = vmatmul.mubr.bf16.gmra.mxu0 %v1203
    %v1242 = vpop.f32.mrf.mxu0
    %v1243 = vadd.f32 %v66, %v1242
    %v1244 = vpop.f32.mrf.mxu0
    %v1245 = vpop.f32.mrf.mxu0
    %v1246 = vadd.f32 %v67, %v1245
    %v1247 = vpop.f32.mrf.mxu0
    %1248 = vdwg.mxu0
    %v1249 = vsel %vm189, %v1243, -inf
    %1250 = vmax.xlane.f32.xlu0 %v1249
    %v1251 = vpop.xlane.xlu0 %1250
    %v1252 = vsel %vm189, %v1246, -inf
    %1253 = vmax.xlane.f32.xlu0 %v1252
    %v1254 = vpop.xlane.xlu0 %1253
    %v1255 = vsub.f32 %v1243, %v1251
    %v1256 = vsub.f32 %v1246, %v1254
    %v1257 = vmul.f32 %v1255, 1.442695
    %v1258 = vpow.pop %v1257
    %v1259 = vmul.f32 %v1256, 1.442695
    %v1260 = vpow.pop %v1259
    %v1261 = vsel %vm189, %v1258, 0.0
    %1262 = vadd.xlane.f32.xlu0 %v1261
    %v1263 = vpop.xlane.xlu0 %1262
    %v1264 = vsel %vm189, %v1260, 0.0
    %1265 = vadd.xlane.f32.xlu0 %v1264
    %v1266 = vpop.xlane.xlu0 %1265
    %v1267 = vrcp.pop %v1263
    %v1268 = vrcp.pop %v1266
    %v1269 = vpack.c.bf16 %v1260, %v1258
    %1270 = vrot.lane.b32.xlu0 %v1198, 64
    %v1271 = vpop.permute.xlu0 %1270
    %v1274 = vsel %vm189, %v1269, 0
    %1276 = vmatprep.subr.bf16.mxu0 0
    %1277 = vmatpush1.bf16.msra.mxu0 0
    %1278 = vmatprep.subr.bf16.mxu0 0
    %1279 = vmatpush1.bf16.msra.mxu0 0
    %1280 = vmatprep.subr.bf16.mxu0 0
    %1281 = vmatpush1.bf16.msra.mxu0 0
    %1282 = vmatprep.subr.bf16.mxu0 0
    %1283 = vmatpush1.bf16.msra.mxu0 0
    %1284 = vmatprep.subr.bf16.mxu0 0
    %1285 = vmatpush1.bf16.msra.mxu0 0
    %1286 = vmatprep.subr.bf16.mxu0 0
    %1287 = vmatpush1.bf16.msra.mxu0 0
    %1288 = vmatprep.subr.bf16.mxu0 0
    %1289 = vmatpush1.bf16.msra.mxu0 0
    %1290 = vmatprep.subr.bf16.mxu0 0
    %1291 = vmatpush1.bf16.msra.mxu0 %v1271
    %1292 = vmatprep.subr.bf16.mxu0 0
    %1293 = vmatpush2.bf16.msra.mxu0 0
    %1294 = vmatprep.subr.bf16.mxu0 0
    %1295 = vmatpush2.bf16.msra.mxu0 0
    %1296 = vmatprep.subr.bf16.mxu0 0
    %1297 = vmatpush2.bf16.msra.mxu0 0
    %1298 = vmatprep.subr.bf16.mxu0 0
    %1299 = vmatpush2.bf16.msra.mxu0 0
    %1300 = vmatprep.subr.bf16.mxu0 0
    %1301 = vmatpush2.bf16.msra.mxu0 0
    %1302 = vmatprep.subr.bf16.mxu0 0
    %1303 = vmatpush2.bf16.msra.mxu0 0
    %1304 = vmatprep.subr.bf16.mxu0 0
    %1305 = vmatpush2.bf16.msra.mxu0 0
    %1306 = vmatprep.subr.bf16.mxu0 0
    %1307 = vmatpush2.bf16.msra.mxu0 0
    %1308 = vmatprep.mubr.bf16.mxu0 0
    %1309 = vmatmul.mubr.bf16.gmra.mxu0 %v1274
    %v1310 = vpop.f32.mrf.mxu0
    %v1311 = vadd.f32 0.0, %v1310
    %v1312 = vpop.f32.mrf.mxu0
    %v1313 = vpop.f32.mrf.mxu0
    %v1314 = vadd.f32 0.0, %v1313
    %v1315 = vpop.f32.mrf.mxu0
    %1316 = vdwg.mxu0
    %v1317 = vmul.f32 %v1311, %v1267
    %v1318 = vmul.f32 %v1314, %v1268
    %v1319 = vpack.c.bf16 %v1318, %v1317
    %s1320 = scalar_lea.vmem %s5, 16
    %v1321 = vld [vmem:[%s1320] sm:$0xf]
    %1322 = vrot.lane.b32.xlu0 %v1198, 120
    %v1323 = vpop.permute.xlu0 %1322
    %1324 = vrot.lane.b32.xlu0 %v1198, 88
    %v1325 = vpop.permute.xlu0 %1324
    %v1327 = vsel %vm141, %v1323, 0
    %v1330 = vsel %vm141, %v1325, 0
    %1332 = vmatprep.subr.bf16.mxu0 0
    %1333 = vmatpush1.bf16.xpose.msra.mxu0 0
    %1334 = vmatprep.subr.bf16.mxu0 0
    %1335 = vmatpush1.bf16.xpose.msra.mxu0 0
    %1336 = vmatprep.subr.bf16.mxu0 0
    %1337 = vmatpush1.bf16.xpose.msra.mxu0 0
    %1338 = vmatprep.subr.bf16.mxu0 0
    %1339 = vmatpush1.bf16.xpose.msra.mxu0 0
    %1340 = vmatprep.subr.bf16.mxu0 0
    %1341 = vmatpush1.bf16.xpose.msra.mxu0 0
    %1342 = vmatprep.subr.bf16.mxu0 0
    %1343 = vmatpush1.bf16.xpose.msra.mxu0 0
    %1344 = vmatprep.subr.bf16.mxu0 0
    %1345 = vmatpush1.bf16.xpose.msra.mxu0 0
    %1346 = vmatprep.subr.bf16.mxu0 0
    %1347 = vmatpush1.bf16.xpose.msra.mxu0 %v1330
    %1348 = vmatprep.subr.bf16.mxu0 0
    %1349 = vmatpush2.bf16.xpose.msra.mxu0 0
    %1350 = vmatprep.subr.bf16.mxu0 0
    %1351 = vmatpush2.bf16.xpose.msra.mxu0 0
    %1352 = vmatprep.subr.bf16.mxu0 0
    %1353 = vmatpush2.bf16.xpose.msra.mxu0 0
    %1354 = vmatprep.subr.bf16.mxu0 0
    %1355 = vmatpush2.bf16.xpose.msra.mxu0 0
    %1356 = vmatprep.subr.bf16.mxu0 0
    %1357 = vmatpush2.bf16.xpose.msra.mxu0 0
    %1358 = vmatprep.subr.bf16.mxu0 0
    %1359 = vmatpush2.bf16.xpose.msra.mxu0 0
    %1360 = vmatprep.subr.bf16.mxu0 0
    %1361 = vmatpush2.bf16.xpose.msra.mxu0 0
    %1362 = vmatprep.subr.bf16.mxu0 0
    %1363 = vmatpush2.bf16.xpose.msra.mxu0 0
    %1364 = vmatprep.mubr.bf16.mxu0 0
    %1365 = vmatmul.mubr.bf16.gmra.mxu0 %v1327
    %v1366 = vpop.f32.mrf.mxu0
    %v1367 = vadd.f32 %v66, %v1366
    %v1368 = vpop.f32.mrf.mxu0
    %v1369 = vpop.f32.mrf.mxu0
    %v1370 = vadd.f32 %v67, %v1369
    %v1371 = vpop.f32.mrf.mxu0
    %1372 = vdwg.mxu0
    %v1373 = vsel %vm189, %v1367, -inf
    %1374 = vmax.xlane.f32.xlu0 %v1373
    %v1375 = vpop.xlane.xlu0 %1374
    %v1376 = vsel %vm189, %v1370, -inf
    %1377 = vmax.xlane.f32.xlu0 %v1376
    %v1378 = vpop.xlane.xlu0 %1377
    %v1379 = vsub.f32 %v1367, %v1375
    %v1380 = vsub.f32 %v1370, %v1378
    %v1381 = vmul.f32 %v1379, 1.442695
    %v1382 = vpow.pop %v1381
    %v1383 = vmul.f32 %v1380, 1.442695
    %v1384 = vpow.pop %v1383
    %v1385 = vsel %vm189, %v1382, 0.0
    %1386 = vadd.xlane.f32.xlu0 %v1385
    %v1387 = vpop.xlane.xlu0 %1386
    %v1388 = vsel %vm189, %v1384, 0.0
    %1389 = vadd.xlane.f32.xlu0 %v1388
    %v1390 = vpop.xlane.xlu0 %1389
    %v1391 = vrcp.pop %v1387
    %v1392 = vrcp.pop %v1390
    %v1393 = vpack.c.bf16 %v1384, %v1382
    %1394 = vrot.lane.b32.xlu0 %v1198, 56
    %v1395 = vpop.permute.xlu0 %1394
    %v1398 = vsel %vm189, %v1393, 0
    %1400 = vmatprep.subr.bf16.mxu0 0
    %1401 = vmatpush1.bf16.msra.mxu0 0
    %1402 = vmatprep.subr.bf16.mxu0 0
    %1403 = vmatpush1.bf16.msra.mxu0 0
    %1404 = vmatprep.subr.bf16.mxu0 0
    %1405 = vmatpush1.bf16.msra.mxu0 0
    %1406 = vmatprep.subr.bf16.mxu0 0
    %1407 = vmatpush1.bf16.msra.mxu0 0
    %1408 = vmatprep.subr.bf16.mxu0 0
    %1409 = vmatpush1.bf16.msra.mxu0 0
    %1410 = vmatprep.subr.bf16.mxu0 0
    %1411 = vmatpush1.bf16.msra.mxu0 0
    %1412 = vmatprep.subr.bf16.mxu0 0
    %1413 = vmatpush1.bf16.msra.mxu0 0
    %1414 = vmatprep.subr.bf16.mxu0 0
    %1415 = vmatpush1.bf16.msra.mxu0 %v1395
    %1416 = vmatprep.subr.bf16.mxu0 0
    %1417 = vmatpush2.bf16.msra.mxu0 0
    %1418 = vmatprep.subr.bf16.mxu0 0
    %1419 = vmatpush2.bf16.msra.mxu0 0
    %1420 = vmatprep.subr.bf16.mxu0 0
    %1421 = vmatpush2.bf16.msra.mxu0 0
    %1422 = vmatprep.subr.bf16.mxu0 0
    %1423 = vmatpush2.bf16.msra.mxu0 0
    %1424 = vmatprep.subr.bf16.mxu0 0
    %1425 = vmatpush2.bf16.msra.mxu0 0
    %1426 = vmatprep.subr.bf16.mxu0 0
    %1427 = vmatpush2.bf16.msra.mxu0 0
    %1428 = vmatprep.subr.bf16.mxu0 0
    %1429 = vmatpush2.bf16.msra.mxu0 0
    %1430 = vmatprep.subr.bf16.mxu0 0
    %1431 = vmatpush2.bf16.msra.mxu0 0
    %1432 = vmatprep.mubr.bf16.mxu0 0
    %1433 = vmatmul.mubr.bf16.gmra.mxu0 %v1398
    %v1434 = vpop.f32.mrf.mxu0
    %v1435 = vadd.f32 0.0, %v1434
    %v1436 = vpop.f32.mrf.mxu0
    %v1437 = vpop.f32.mrf.mxu0
    %v1438 = vadd.f32 0.0, %v1437
    %v1439 = vpop.f32.mrf.mxu0
    %1440 = vdwg.mxu0
    %v1441 = vmul.f32 %v1435, %v1391
    %v1442 = vmul.f32 %v1438, %v1392
    %v1443 = vpack.c.bf16 %v1442, %v1441
    %s1444 = scalar_lea.vmem %s5, 20
    %v1445 = vld [vmem:[%s1444] sm:$0xf]
    %v1447 = vsel %vm141, %v1443, 0
    %v1450 = vsel %vm389, %v1445, 0
    %1452 = vmatprep.subr.bf16.mxu0 0
    %1453 = vmatpush1.bf16.msra.mxu0 0
    %1454 = vmatprep.subr.bf16.mxu0 0
    %1455 = vmatpush1.bf16.msra.mxu0 0
    %1456 = vmatprep.subr.bf16.mxu0 0
    %1457 = vmatpush1.bf16.msra.mxu0 0
    %1458 = vmatprep.subr.bf16.mxu0 0
    %1459 = vmatpush1.bf16.msra.mxu0 0
    %1460 = vmatprep.subr.bf16.mxu0 0
    %1461 = vmatpush1.bf16.msra.mxu0 0
    %1462 = vmatprep.subr.bf16.mxu0 0
    %1463 = vmatpush1.bf16.msra.mxu0 0
    %1464 = vmatprep.subr.bf16.mxu0 0
    %1465 = vmatpush1.bf16.msra.mxu0 0
    %1466 = vmatprep.subr.bf16.mxu0 0
    %1467 = vmatpush1.bf16.msra.mxu0 %v1450
    %1468 = vmatprep.subr.bf16.mxu0 0
    %1469 = vmatpush2.bf16.msra.mxu0 0
    %1470 = vmatprep.subr.bf16.mxu0 0
    %1471 = vmatpush2.bf16.msra.mxu0 0
    %1472 = vmatprep.subr.bf16.mxu0 0
    %1473 = vmatpush2.bf16.msra.mxu0 0
    %1474 = vmatprep.subr.bf16.mxu0 0
    %1475 = vmatpush2.bf16.msra.mxu0 0
    %1476 = vmatprep.subr.bf16.mxu0 0
    %1477 = vmatpush2.bf16.msra.mxu0 0
    %1478 = vmatprep.subr.bf16.mxu0 0
    %1479 = vmatpush2.bf16.msra.mxu0 0
    %1480 = vmatprep.subr.bf16.mxu0 0
    %1481 = vmatpush2.bf16.msra.mxu0 0
    %1482 = vmatprep.subr.bf16.mxu0 0
    %1483 = vmatpush2.bf16.msra.mxu0 0
    %1484 = vmatprep.mubr.bf16.mxu0 0
    %1485 = vmatmul.mubr.bf16.gmra.mxu0 %v1447
    %v1486 = vpop.f32.mrf.mxu0
    %v1487 = vadd.f32 0.0, %v1486
    %v1488 = vpop.f32.mrf.mxu0
    %v1489 = vpop.f32.mrf.mxu0
    %v1490 = vadd.f32 0.0, %v1489
    %v1491 = vpop.f32.mrf.mxu0
    %1492 = vdwg.mxu0
    %v1494 = vsel %vm141, %v1319, 0
    %v1497 = vsel %vm389, %v1321, 0
    %1499 = vmatprep.subr.bf16.mxu0 0
    %1500 = vmatpush1.bf16.msra.mxu0 0
    %1501 = vmatprep.subr.bf16.mxu0 0
    %1502 = vmatpush1.bf16.msra.mxu0 0
    %1503 = vmatprep.subr.bf16.mxu0 0
    %1504 = vmatpush1.bf16.msra.mxu0 0
    %1505 = vmatprep.subr.bf16.mxu0 0
    %1506 = vmatpush1.bf16.msra.mxu0 0
    %1507 = vmatprep.subr.bf16.mxu0 0
    %1508 = vmatpush1.bf16.msra.mxu0 0
    %1509 = vmatprep.subr.bf16.mxu0 0
    %1510 = vmatpush1.bf16.msra.mxu0 0
    %1511 = vmatprep.subr.bf16.mxu0 0
    %1512 = vmatpush1.bf16.msra.mxu0 0
    %1513 = vmatprep.subr.bf16.mxu0 0
    %1514 = vmatpush1.bf16.msra.mxu0 %v1497
    %1515 = vmatprep.subr.bf16.mxu0 0
    %1516 = vmatpush2.bf16.msra.mxu0 0
    %1517 = vmatprep.subr.bf16.mxu0 0
    %1518 = vmatpush2.bf16.msra.mxu0 0
    %1519 = vmatprep.subr.bf16.mxu0 0
    %1520 = vmatpush2.bf16.msra.mxu0 0
    %1521 = vmatprep.subr.bf16.mxu0 0
    %1522 = vmatpush2.bf16.msra.mxu0 0
    %1523 = vmatprep.subr.bf16.mxu0 0
    %1524 = vmatpush2.bf16.msra.mxu0 0
    %1525 = vmatprep.subr.bf16.mxu0 0
    %1526 = vmatpush2.bf16.msra.mxu0 0
    %1527 = vmatprep.subr.bf16.mxu0 0
    %1528 = vmatpush2.bf16.msra.mxu0 0
    %1529 = vmatprep.subr.bf16.mxu0 0
    %1530 = vmatpush2.bf16.msra.mxu0 0
    %1531 = vmatprep.mubr.bf16.mxu0 0
    %1532 = vmatmul.mubr.bf16.gmra.mxu0 %v1494
    %v1533 = vpop.f32.mrf.mxu0
    %v1534 = vadd.f32 %v1487, %v1533
    %v1535 = vpop.f32.mrf.mxu0
    %v1536 = vpop.f32.mrf.mxu0
    %v1537 = vadd.f32 %v1490, %v1536
    %v1538 = vpop.f32.mrf.mxu0
    %1539 = vdwg.mxu0
    %1540 = vrot.lane.b32.xlu0 %v1198, 112
    %v1541 = vpop.permute.xlu0 %1540
    %1542 = vrot.lane.b32.xlu0 %v1198, 80
    %v1543 = vpop.permute.xlu0 %1542
    %v1545 = vsel %vm141, %v1541, 0
    %v1548 = vsel %vm141, %v1543, 0
    %1550 = vmatprep.subr.bf16.mxu0 0
    %1551 = vmatpush1.bf16.xpose.msra.mxu0 0
    %1552 = vmatprep.subr.bf16.mxu0 0
    %1553 = vmatpush1.bf16.xpose.msra.mxu0 0
    %1554 = vmatprep.subr.bf16.mxu0 0
    %1555 = vmatpush1.bf16.xpose.msra.mxu0 0
    %1556 = vmatprep.subr.bf16.mxu0 0
    %1557 = vmatpush1.bf16.xpose.msra.mxu0 0
    %1558 = vmatprep.subr.bf16.mxu0 0
    %1559 = vmatpush1.bf16.xpose.msra.mxu0 0
    %1560 = vmatprep.subr.bf16.mxu0 0
    %1561 = vmatpush1.bf16.xpose.msra.mxu0 0
    %1562 = vmatprep.subr.bf16.mxu0 0
    %1563 = vmatpush1.bf16.xpose.msra.mxu0 0
    %1564 = vmatprep.subr.bf16.mxu0 0
    %1565 = vmatpush1.bf16.xpose.msra.mxu0 %v1548
    %1566 = vmatprep.subr.bf16.mxu0 0
    %1567 = vmatpush2.bf16.xpose.msra.mxu0 0
    %1568 = vmatprep.subr.bf16.mxu0 0
    %1569 = vmatpush2.bf16.xpose.msra.mxu0 0
    %1570 = vmatprep.subr.bf16.mxu0 0
    %1571 = vmatpush2.bf16.xpose.msra.mxu0 0
    %1572 = vmatprep.subr.bf16.mxu0 0
    %1573 = vmatpush2.bf16.xpose.msra.mxu0 0
    %1574 = vmatprep.subr.bf16.mxu0 0
    %1575 = vmatpush2.bf16.xpose.msra.mxu0 0
    %1576 = vmatprep.subr.bf16.mxu0 0
    %1577 = vmatpush2.bf16.xpose.msra.mxu0 0
    %1578 = vmatprep.subr.bf16.mxu0 0
    %1579 = vmatpush2.bf16.xpose.msra.mxu0 0
    %1580 = vmatprep.subr.bf16.mxu0 0
    %1581 = vmatpush2.bf16.xpose.msra.mxu0 0
    %1582 = vmatprep.mubr.bf16.mxu0 0
    %1583 = vmatmul.mubr.bf16.gmra.mxu0 %v1545
    %v1584 = vpop.f32.mrf.mxu0
    %v1585 = vadd.f32 %v66, %v1584
    %v1586 = vpop.f32.mrf.mxu0
    %v1587 = vpop.f32.mrf.mxu0
    %v1588 = vadd.f32 %v67, %v1587
    %v1589 = vpop.f32.mrf.mxu0
    %1590 = vdwg.mxu0
    %v1591 = vsel %vm189, %v1585, -inf
    %1592 = vmax.xlane.f32.xlu0 %v1591
    %v1593 = vpop.xlane.xlu0 %1592
    %v1594 = vsel %vm189, %v1588, -inf
    %1595 = vmax.xlane.f32.xlu0 %v1594
    %v1596 = vpop.xlane.xlu0 %1595
    %v1597 = vsub.f32 %v1585, %v1593
    %v1598 = vsub.f32 %v1588, %v1596
    %v1599 = vmul.f32 %v1597, 1.442695
    %v1600 = vpow.pop %v1599
    %v1601 = vmul.f32 %v1598, 1.442695
    %v1602 = vpow.pop %v1601
    %v1603 = vsel %vm189, %v1600, 0.0
    %1604 = vadd.xlane.f32.xlu0 %v1603
    %v1605 = vpop.xlane.xlu0 %1604
    %v1606 = vsel %vm189, %v1602, 0.0
    %1607 = vadd.xlane.f32.xlu0 %v1606
    %v1608 = vpop.xlane.xlu0 %1607
    %v1609 = vrcp.pop %v1605
    %v1610 = vrcp.pop %v1608
    %v1611 = vpack.c.bf16 %v1602, %v1600
    %1612 = vrot.lane.b32.xlu0 %v1198, 48
    %v1613 = vpop.permute.xlu0 %1612
    %v1616 = vsel %vm189, %v1611, 0
    %1618 = vmatprep.subr.bf16.mxu0 0
    %1619 = vmatpush1.bf16.msra.mxu0 0
    %1620 = vmatprep.subr.bf16.mxu0 0
    %1621 = vmatpush1.bf16.msra.mxu0 0
    %1622 = vmatprep.subr.bf16.mxu0 0
    %1623 = vmatpush1.bf16.msra.mxu0 0
    %1624 = vmatprep.subr.bf16.mxu0 0
    %1625 = vmatpush1.bf16.msra.mxu0 0
    %1626 = vmatprep.subr.bf16.mxu0 0
    %1627 = vmatpush1.bf16.msra.mxu0 0
    %1628 = vmatprep.subr.bf16.mxu0 0
    %1629 = vmatpush1.bf16.msra.mxu0 0
    %1630 = vmatprep.subr.bf16.mxu0 0
    %1631 = vmatpush1.bf16.msra.mxu0 0
    %1632 = vmatprep.subr.bf16.mxu0 0
    %1633 = vmatpush1.bf16.msra.mxu0 %v1613
    %1634 = vmatprep.subr.bf16.mxu0 0
    %1635 = vmatpush2.bf16.msra.mxu0 0
    %1636 = vmatprep.subr.bf16.mxu0 0
    %1637 = vmatpush2.bf16.msra.mxu0 0
    %1638 = vmatprep.subr.bf16.mxu0 0
    %1639 = vmatpush2.bf16.msra.mxu0 0
    %1640 = vmatprep.subr.bf16.mxu0 0
    %1641 = vmatpush2.bf16.msra.mxu0 0
    %1642 = vmatprep.subr.bf16.mxu0 0
    %1643 = vmatpush2.bf16.msra.mxu0 0
    %1644 = vmatprep.subr.bf16.mxu0 0
    %1645 = vmatpush2.bf16.msra.mxu0 0
    %1646 = vmatprep.subr.bf16.mxu0 0
    %1647 = vmatpush2.bf16.msra.mxu0 0
    %1648 = vmatprep.subr.bf16.mxu0 0
    %1649 = vmatpush2.bf16.msra.mxu0 0
    %1650 = vmatprep.mubr.bf16.mxu0 0
    %1651 = vmatmul.mubr.bf16.gmra.mxu0 %v1616
    %v1652 = vpop.f32.mrf.mxu0
    %v1653 = vadd.f32 0.0, %v1652
    %v1654 = vpop.f32.mrf.mxu0
    %v1655 = vpop.f32.mrf.mxu0
    %v1656 = vadd.f32 0.0, %v1655
    %v1657 = vpop.f32.mrf.mxu0
    %1658 = vdwg.mxu0
    %v1659 = vmul.f32 %v1653, %v1609
    %v1660 = vmul.f32 %v1656, %v1610
    %v1661 = vpack.c.bf16 %v1660, %v1659
    %s1662 = scalar_lea.vmem %s5, 24
    %v1663 = vld [vmem:[%s1662] sm:$0xf]
    %v1665 = vsel %vm141, %v1661, 0
    %v1668 = vsel %vm389, %v1663, 0
    %1670 = vmatprep.subr.bf16.mxu0 0
    %1671 = vmatpush1.bf16.msra.mxu0 0
    %1672 = vmatprep.subr.bf16.mxu0 0
    %1673 = vmatpush1.bf16.msra.mxu0 0
    %1674 = vmatprep.subr.bf16.mxu0 0
    %1675 = vmatpush1.bf16.msra.mxu0 0
    %1676 = vmatprep.subr.bf16.mxu0 0
    %1677 = vmatpush1.bf16.msra.mxu0 0
    %1678 = vmatprep.subr.bf16.mxu0 0
    %1679 = vmatpush1.bf16.msra.mxu0 0
    %1680 = vmatprep.subr.bf16.mxu0 0
    %1681 = vmatpush1.bf16.msra.mxu0 0
    %1682 = vmatprep.subr.bf16.mxu0 0
    %1683 = vmatpush1.bf16.msra.mxu0 0
    %1684 = vmatprep.subr.bf16.mxu0 0
    %1685 = vmatpush1.bf16.msra.mxu0 %v1668
    %1686 = vmatprep.subr.bf16.mxu0 0
    %1687 = vmatpush2.bf16.msra.mxu0 0
    %1688 = vmatprep.subr.bf16.mxu0 0
    %1689 = vmatpush2.bf16.msra.mxu0 0
    %1690 = vmatprep.subr.bf16.mxu0 0
    %1691 = vmatpush2.bf16.msra.mxu0 0
    %1692 = vmatprep.subr.bf16.mxu0 0
    %1693 = vmatpush2.bf16.msra.mxu0 0
    %1694 = vmatprep.subr.bf16.mxu0 0
    %1695 = vmatpush2.bf16.msra.mxu0 0
    %1696 = vmatprep.subr.bf16.mxu0 0
    %1697 = vmatpush2.bf16.msra.mxu0 0
    %1698 = vmatprep.subr.bf16.mxu0 0
    %1699 = vmatpush2.bf16.msra.mxu0 0
    %1700 = vmatprep.subr.bf16.mxu0 0
    %1701 = vmatpush2.bf16.msra.mxu0 0
    %1702 = vmatprep.mubr.bf16.mxu0 0
    %1703 = vmatmul.mubr.bf16.gmra.mxu0 %v1665
    %v1704 = vpop.f32.mrf.mxu0
    %v1705 = vadd.f32 0.0, %v1704
    %v1706 = vpop.f32.mrf.mxu0
    %v1707 = vpop.f32.mrf.mxu0
    %v1708 = vadd.f32 0.0, %v1707
    %v1709 = vpop.f32.mrf.mxu0
    %1710 = vdwg.mxu0
    %v1711 = vadd.f32 %v1534, %v1705
    %v1712 = vadd.f32 %v1537, %v1708
    %1713 = vrot.lane.b32.xlu0 %v1198, 104
    %v1714 = vpop.permute.xlu0 %1713
    %1715 = vrot.lane.b32.xlu0 %v1198, 72
    %v1716 = vpop.permute.xlu0 %1715
    %v1718 = vsel %vm141, %v1714, 0
    %v1721 = vsel %vm141, %v1716, 0
    %1723 = vmatprep.subr.bf16.mxu0 0
    %1724 = vmatpush1.bf16.xpose.msra.mxu0 0
    %1725 = vmatprep.subr.bf16.mxu0 0
    %1726 = vmatpush1.bf16.xpose.msra.mxu0 0
    %1727 = vmatprep.subr.bf16.mxu0 0
    %1728 = vmatpush1.bf16.xpose.msra.mxu0 0
    %1729 = vmatprep.subr.bf16.mxu0 0
    %1730 = vmatpush1.bf16.xpose.msra.mxu0 0
    %1731 = vmatprep.subr.bf16.mxu0 0
    %1732 = vmatpush1.bf16.xpose.msra.mxu0 0
    %1733 = vmatprep.subr.bf16.mxu0 0
    %1734 = vmatpush1.bf16.xpose.msra.mxu0 0
    %1735 = vmatprep.subr.bf16.mxu0 0
    %1736 = vmatpush1.bf16.xpose.msra.mxu0 0
    %1737 = vmatprep.subr.bf16.mxu0 0
    %1738 = vmatpush1.bf16.xpose.msra.mxu0 %v1721
    %1739 = vmatprep.subr.bf16.mxu0 0
    %1740 = vmatpush2.bf16.xpose.msra.mxu0 0
    %1741 = vmatprep.subr.bf16.mxu0 0
    %1742 = vmatpush2.bf16.xpose.msra.mxu0 0
    %1743 = vmatprep.subr.bf16.mxu0 0
    %1744 = vmatpush2.bf16.xpose.msra.mxu0 0
    %1745 = vmatprep.subr.bf16.mxu0 0
    %1746 = vmatpush2.bf16.xpose.msra.mxu0 0
    %1747 = vmatprep.subr.bf16.mxu0 0
    %1748 = vmatpush2.bf16.xpose.msra.mxu0 0
    %1749 = vmatprep.subr.bf16.mxu0 0
    %1750 = vmatpush2.bf16.xpose.msra.mxu0 0
    %1751 = vmatprep.subr.bf16.mxu0 0
    %1752 = vmatpush2.bf16.xpose.msra.mxu0 0
    %1753 = vmatprep.subr.bf16.mxu0 0
    %1754 = vmatpush2.bf16.xpose.msra.mxu0 0
    %1755 = vmatprep.mubr.bf16.mxu0 0
    %1756 = vmatmul.mubr.bf16.gmra.mxu0 %v1718
    %v1757 = vpop.f32.mrf.mxu0
    %v1758 = vadd.f32 %v66, %v1757
    %v1759 = vpop.f32.mrf.mxu0
    %v1760 = vpop.f32.mrf.mxu0
    %v1761 = vadd.f32 %v67, %v1760
    %v1762 = vpop.f32.mrf.mxu0
    %1763 = vdwg.mxu0
    %v1764 = vsel %vm189, %v1758, -inf
    %1765 = vmax.xlane.f32.xlu0 %v1764
    %v1766 = vpop.xlane.xlu0 %1765
    %v1767 = vsel %vm189, %v1761, -inf
    %1768 = vmax.xlane.f32.xlu0 %v1767
    %v1769 = vpop.xlane.xlu0 %1768
    %v1770 = vsub.f32 %v1758, %v1766
    %v1771 = vsub.f32 %v1761, %v1769
    %v1772 = vmul.f32 %v1770, 1.442695
    %v1773 = vpow.pop %v1772
    %v1774 = vmul.f32 %v1771, 1.442695
    %v1775 = vpow.pop %v1774
    %v1776 = vsel %vm189, %v1773, 0.0
    %1777 = vadd.xlane.f32.xlu0 %v1776
    %v1778 = vpop.xlane.xlu0 %1777
    %v1779 = vsel %vm189, %v1775, 0.0
    %1780 = vadd.xlane.f32.xlu0 %v1779
    %v1781 = vpop.xlane.xlu0 %1780
    %v1782 = vrcp.pop %v1778
    %v1783 = vrcp.pop %v1781
    %v1784 = vpack.c.bf16 %v1775, %v1773
    %1785 = vrot.lane.b32.xlu0 %v1198, 40
    %v1786 = vpop.permute.xlu0 %1785
    %v1789 = vsel %vm189, %v1784, 0
    %1791 = vmatprep.subr.bf16.mxu0 0
    %1792 = vmatpush1.bf16.msra.mxu0 0
    %1793 = vmatprep.subr.bf16.mxu0 0
    %1794 = vmatpush1.bf16.msra.mxu0 0
    %1795 = vmatprep.subr.bf16.mxu0 0
    %1796 = vmatpush1.bf16.msra.mxu0 0
    %1797 = vmatprep.subr.bf16.mxu0 0
    %1798 = vmatpush1.bf16.msra.mxu0 0
    %1799 = vmatprep.subr.bf16.mxu0 0
    %1800 = vmatpush1.bf16.msra.mxu0 0
    %1801 = vmatprep.subr.bf16.mxu0 0
    %1802 = vmatpush1.bf16.msra.mxu0 0
    %1803 = vmatprep.subr.bf16.mxu0 0
    %1804 = vmatpush1.bf16.msra.mxu0 0
    %1805 = vmatprep.subr.bf16.mxu0 0
    %1806 = vmatpush1.bf16.msra.mxu0 %v1786
    %1807 = vmatprep.subr.bf16.mxu0 0
    %1808 = vmatpush2.bf16.msra.mxu0 0
    %1809 = vmatprep.subr.bf16.mxu0 0
    %1810 = vmatpush2.bf16.msra.mxu0 0
    %1811 = vmatprep.subr.bf16.mxu0 0
    %1812 = vmatpush2.bf16.msra.mxu0 0
    %1813 = vmatprep.subr.bf16.mxu0 0
    %1814 = vmatpush2.bf16.msra.mxu0 0
    %1815 = vmatprep.subr.bf16.mxu0 0
    %1816 = vmatpush2.bf16.msra.mxu0 0
    %1817 = vmatprep.subr.bf16.mxu0 0
    %1818 = vmatpush2.bf16.msra.mxu0 0
    %1819 = vmatprep.subr.bf16.mxu0 0
    %1820 = vmatpush2.bf16.msra.mxu0 0
    %1821 = vmatprep.subr.bf16.mxu0 0
    %1822 = vmatpush2.bf16.msra.mxu0 0
    %1823 = vmatprep.mubr.bf16.mxu0 0
    %1824 = vmatmul.mubr.bf16.gmra.mxu0 %v1789
    %v1825 = vpop.f32.mrf.mxu0
    %v1826 = vadd.f32 0.0, %v1825
    %v1827 = vpop.f32.mrf.mxu0
    %v1828 = vpop.f32.mrf.mxu0
    %v1829 = vadd.f32 0.0, %v1828
    %v1830 = vpop.f32.mrf.mxu0
    %1831 = vdwg.mxu0
    %v1832 = vmul.f32 %v1826, %v1782
    %v1833 = vmul.f32 %v1829, %v1783
    %v1834 = vpack.c.bf16 %v1833, %v1832
    %s1835 = scalar_lea.vmem %s5, 28
    %v1836 = vld [vmem:[%s1835] sm:$0xf]
    %v1838 = vsel %vm141, %v1834, 0
    %v1841 = vsel %vm389, %v1836, 0
    %1843 = vmatprep.subr.bf16.mxu0 0
    %1844 = vmatpush1.bf16.msra.mxu0 0
    %1845 = vmatprep.subr.bf16.mxu0 0
    %1846 = vmatpush1.bf16.msra.mxu0 0
    %1847 = vmatprep.subr.bf16.mxu0 0
    %1848 = vmatpush1.bf16.msra.mxu0 0
    %1849 = vmatprep.subr.bf16.mxu0 0
    %1850 = vmatpush1.bf16.msra.mxu0 0
    %1851 = vmatprep.subr.bf16.mxu0 0
    %1852 = vmatpush1.bf16.msra.mxu0 0
    %1853 = vmatprep.subr.bf16.mxu0 0
    %1854 = vmatpush1.bf16.msra.mxu0 0
    %1855 = vmatprep.subr.bf16.mxu0 0
    %1856 = vmatpush1.bf16.msra.mxu0 0
    %1857 = vmatprep.subr.bf16.mxu0 0
    %1858 = vmatpush1.bf16.msra.mxu0 %v1841
    %1859 = vmatprep.subr.bf16.mxu0 0
    %1860 = vmatpush2.bf16.msra.mxu0 0
    %1861 = vmatprep.subr.bf16.mxu0 0
    %1862 = vmatpush2.bf16.msra.mxu0 0
    %1863 = vmatprep.subr.bf16.mxu0 0
    %1864 = vmatpush2.bf16.msra.mxu0 0
    %1865 = vmatprep.subr.bf16.mxu0 0
    %1866 = vmatpush2.bf16.msra.mxu0 0
    %1867 = vmatprep.subr.bf16.mxu0 0
    %1868 = vmatpush2.bf16.msra.mxu0 0
    %1869 = vmatprep.subr.bf16.mxu0 0
    %1870 = vmatpush2.bf16.msra.mxu0 0
    %1871 = vmatprep.subr.bf16.mxu0 0
    %1872 = vmatpush2.bf16.msra.mxu0 0
    %1873 = vmatprep.subr.bf16.mxu0 0
    %1874 = vmatpush2.bf16.msra.mxu0 0
    %1875 = vmatprep.mubr.bf16.mxu0 0
    %1876 = vmatmul.mubr.bf16.gmra.mxu0 %v1838
    %v1877 = vpop.f32.mrf.mxu0
    %v1878 = vadd.f32 0.0, %v1877
    %v1879 = vpop.f32.mrf.mxu0
    %v1880 = vpop.f32.mrf.mxu0
    %v1881 = vadd.f32 0.0, %v1880
    %v1882 = vpop.f32.mrf.mxu0
    %1883 = vdwg.mxu0
    %v1884 = vadd.f32 %v1711, %v1878
    %v1885 = vadd.f32 %v1712, %v1881
    %s1886 = scalar_lea.vmem %s6, 1
    %v1887 = vld [vmem:[%s1886] sm:$0x1]
    %v1889 = vlaneseq
    %v1890 = vshrl.u32 %v1889, 7
    %v1891 = vsub.s32 0, %v1890
    %v1892 = vrot.slane %v1887, %v1891
    %v1894 = vadd.f32 %v1884, %v1892
    %v1895 = vadd.f32 %v1885, %v1892
    %v1896 = vadd.f32 %v1126, %v1894
    %v1897 = vadd.f32 %v1127, %v1895
    %s1898 = scalar_lea.vmem %s7, 1
    %v1899 = vld [vmem:[%s1898] sm:$0x1]
    %s1900 = scalar_lea.vmem %s8, 1
    %v1901 = vld [vmem:[%s1900] sm:$0x1]
    %v1902 = vsel %vm92, %v1896, 0.0
    %1903 = vadd.xlane.f32.xlu0 %v1902
    %v1904 = vpop.xlane.xlu0 %1903
    %v1905 = vsel %vm92, %v1897, 0.0
    %1906 = vadd.xlane.f32.xlu0 %v1905
    %v1907 = vpop.xlane.xlu0 %1906
    %v1908 = vmul.f32 %v1904, %v846
    %v1909 = vmul.f32 %v1907, %v846
    %v1910 = vsub.f32 %v1896, %v1908
    %v1911 = vsub.f32 %v1897, %v1909
    %v1912 = vmul.f32 %v1910, %v1910
    %v1913 = vmul.f32 %v1911, %v1911
    %v1914 = vsel %vm92, %v1912, 0.0
    %1915 = vadd.xlane.f32.xlu0 %v1914
    %v1916 = vpop.xlane.xlu0 %1915
    %v1917 = vsel %vm92, %v1913, 0.0
    %1918 = vadd.xlane.f32.xlu0 %v1917
    %v1919 = vpop.xlane.xlu0 %1918
    %v1920 = vmul.f32 %v1916, %v846
    %v1921 = vmul.f32 %v1919, %v846
    %v1922 = vadd.f32 %v1920, 1e-12
    %v1923 = vadd.f32 %v1921, 1e-12
    %v1924 = vrsqrt.pop %v1922
    %v1925 = vrsqrt.pop %v1923
    %v1926 = vmul.f32 %v1910, %v1924
    %v1927 = vmul.f32 %v1911, %v1925
    %v1929 = vlaneseq
    %v1930 = vshrl.u32 %v1929, 7
    %v1931 = vsub.s32 0, %v1930
    %v1932 = vrot.slane %v1899, %v1931
    %v1934 = vmul.f32 %v1926, %v1932
    %v1935 = vmul.f32 %v1927, %v1932
    %v1937 = vlaneseq
    %v1938 = vshrl.u32 %v1937, 7
    %v1939 = vsub.s32 0, %v1938
    %v1940 = vrot.slane %v1901, %v1939
    %v1942 = vadd.f32 %v1934, %v1940
    %v1943 = vadd.f32 %v1935, %v1940
    %v1944 = vpack.c.bf16 %v1943, %v1942
    %s1945 = scalar_lea.vmem %s9, 16
    %v1946 = vld [vmem:[%s1945] sm:$0xf]
    %v1947 = vld [vmem:[%s1945 + $0x4] sm:$0xf]
    %v1948 = vld [vmem:[%s1945 + $0x8] sm:$0xf]
    %v1949 = vld [vmem:[%s1945 + $0xc] sm:$0xf]
    %s1950 = scalar_lea.vmem %s10, 1
    %v1951 = vld [vmem:[%s1950] sm:$0x1]
    %v1953 = vlaneseq
    %v1954 = vshrl.u32 %v1953, 7
    %v1955 = vsub.s32 0, %v1954
    %v1956 = vrot.slane %v1951, %v1955
    %v1962 = vunpack.c.l.b16 %v1946
    %v1963 = vunpack.c.l.b16 %v1947
    %v1964 = vunpack.c.l.b16 %v1948
    %v1965 = vunpack.c.l.b16 %v1949
    %v1966 = vpack.c.b16 %v1963, %v1962
    %v1967 = vpack.c.b16 %v1965, %v1964
    %v1971 = vsel %vm92, %v1944, 0
    %1973 = vmatprep.subr.bf16.mxu0 0
    %1974 = vmatpush1.bf16.msra.mxu0 0
    %1975 = vmatprep.subr.bf16.mxu0 0
    %1976 = vmatpush1.bf16.msra.mxu0 0
    %1977 = vmatprep.subr.bf16.mxu0 0
    %1978 = vmatpush1.bf16.msra.mxu0 0
    %1979 = vmatprep.subr.bf16.mxu0 0
    %1980 = vmatpush1.bf16.msra.mxu0 0
    %1981 = vmatprep.subr.bf16.mxu0 0
    %1982 = vmatpush1.bf16.msra.mxu0 0
    %1983 = vmatprep.subr.bf16.mxu0 0
    %1984 = vmatpush1.bf16.msra.mxu0 0
    %1985 = vmatprep.subr.bf16.mxu0 0
    %1986 = vmatpush1.bf16.msra.mxu0 %v1967
    %1987 = vmatprep.subr.bf16.mxu0 0
    %1988 = vmatpush1.bf16.msra.mxu0 %v1966
    %1989 = vmatprep.subr.bf16.mxu0 0
    %1990 = vmatpush2.bf16.msra.mxu0 0
    %1991 = vmatprep.subr.bf16.mxu0 0
    %1992 = vmatpush2.bf16.msra.mxu0 0
    %1993 = vmatprep.subr.bf16.mxu0 0
    %1994 = vmatpush2.bf16.msra.mxu0 0
    %1995 = vmatprep.subr.bf16.mxu0 0
    %1996 = vmatpush2.bf16.msra.mxu0 0
    %1997 = vmatprep.subr.bf16.mxu0 0
    %1998 = vmatpush2.bf16.msra.mxu0 0
    %1999 = vmatprep.subr.bf16.mxu0 0
    %2000 = vmatpush2.bf16.msra.mxu0 0
    %2001 = vmatprep.subr.bf16.mxu0 0
    %2002 = vmatpush2.bf16.msra.mxu0 0
    %2003 = vmatprep.subr.bf16.mxu0 0
    %2004 = vmatpush2.bf16.msra.mxu0 0
    %2005 = vmatprep.mubr.bf16.mxu0 0
    %2006 = vmatmul.mubr.bf16.gmra.mxu0 %v1971
    %v2007 = vpop.f32.mrf.mxu0
    %v2008 = vadd.f32 %v1956, %v2007
    %v2009 = vpop.f32.mrf.mxu0
    %v2010 = vpop.f32.mrf.mxu0
    %v2011 = vadd.f32 %v1956, %v2010
    %v2012 = vpop.f32.mrf.mxu0
    %2013 = vdwg.mxu0
    %v2014 = vmul.f32 %v2008, 0.5
    %v2015 = vmul.f32 %v2011, 0.5
    %v2016 = vmul.f32 %v2008, 0.044715
    %v2017 = vmul.f32 %v2011, 0.044715
    %v2018 = vmul.f32 %v2016, %v2008
    %v2019 = vmul.f32 %v2017, %v2011
    %v2020 = vmul.f32 %v2018, %v2008
    %v2021 = vmul.f32 %v2019, %v2011
    %v2022 = vadd.f32 %v2008, %v2020
    %v2023 = vadd.f32 %v2011, %v2021
    %v2024 = vmul.f32 %v2022, 0.7978846
    %v2025 = vmul.f32 %v2023, 0.7978846
    %v2026 = vtanh.pop %v2024
    %v2027 = vtanh.pop %v2025
    %v2028 = vadd.f32 %v2026, 1.0
    %v2029 = vadd.f32 %v2027, 1.0
    %v2030 = vmul.f32 %v2014, %v2028
    %v2031 = vmul.f32 %v2015, %v2029
    %v2032 = vpack.c.bf16 %v2031, %v2030
    %s2033 = scalar_lea.vmem %s11, 64
    %v2034 = vld [vmem:[%s2033] sm:$0xf]
    %v2035 = vld [vmem:[%s2033 + $0x4] sm:$0xf]
    %v2036 = vld [vmem:[%s2033 + $0x8] sm:$0xf]
    %v2037 = vld [vmem:[%s2033 + $0xc] sm:$0xf]
    %v2038 = vld [vmem:[%s2033 + $0x10] sm:$0xf]
    %v2039 = vld [vmem:[%s2033 + $0x14] sm:$0xf]
    %v2040 = vld [vmem:[%s2033 + $0x18] sm:$0xf]
    %v2041 = vld [vmem:[%s2033 + $0x1c] sm:$0xf]
    %v2042 = vld [vmem:[%s2033 + $0x20] sm:$0xf]
    %v2043 = vld [vmem:[%s2033 + $0x24] sm:$0xf]
    %v2044 = vld [vmem:[%s2033 + $0x28] sm:$0xf]
    %v2045 = vld [vmem:[%s2033 + $0x2c] sm:$0xf]
    %v2046 = vld [vmem:[%s2033 + $0x30] sm:$0xf]
    %v2047 = vld [vmem:[%s2033 + $0x34] sm:$0xf]
    %v2048 = vld [vmem:[%s2033 + $0x38] sm:$0xf]
    %v2049 = vld [vmem:[%s2033 + $0x3c] sm:$0xf]
    %s2050 = scalar_lea.vmem %s12, 1
    %v2051 = vld [vmem:[%s2050] sm:$0x1]
    %v2053 = vlaneseq
    %v2054 = vshrl.u32 %v2053, 7
    %v2055 = vsub.s32 0, %v2054
    %v2056 = vrot.slane %v2051, %v2055
    %v2074 = vunpack.c.l.b16 %v2034
    %v2075 = vunpack.c.l.b16 %v2035
    %v2076 = vunpack.c.l.b16 %v2036
    %v2077 = vunpack.c.l.b16 %v2037
    %v2078 = vunpack.c.l.b16 %v2038
    %v2079 = vunpack.c.l.b16 %v2039
    %v2080 = vunpack.c.l.b16 %v2040
    %v2081 = vunpack.c.l.b16 %v2041
    %v2082 = vunpack.c.l.b16 %v2042
    %v2083 = vunpack.c.l.b16 %v2043
    %v2084 = vunpack.c.l.b16 %v2044
    %v2085 = vunpack.c.l.b16 %v2045
    %v2086 = vunpack.c.l.b16 %v2046
    %v2087 = vunpack.c.l.b16 %v2047
    %v2088 = vunpack.c.l.b16 %v2048
    %v2089 = vunpack.c.l.b16 %v2049
    %v2090 = vpack.c.b16 %v2075, %v2074
    %v2091 = vpack.c.b16 %v2077, %v2076
    %v2092 = vpack.c.b16 %v2079, %v2078
    %v2093 = vpack.c.b16 %v2081, %v2080
    %v2094 = vpack.c.b16 %v2083, %v2082
    %v2095 = vpack.c.b16 %v2085, %v2084
    %v2096 = vpack.c.b16 %v2087, %v2086
    %v2097 = vpack.c.b16 %v2089, %v2088
    %2106 = vmatprep.subr.bf16.mxu0 0
    %2107 = vmatpush1.bf16.msra.mxu0 %v2097
    %2108 = vmatprep.subr.bf16.mxu0 0
    %2109 = vmatpush1.bf16.msra.mxu0 %v2096
    %2110 = vmatprep.subr.bf16.mxu0 0
    %2111 = vmatpush1.bf16.msra.mxu0 %v2095
    %2112 = vmatprep.subr.bf16.mxu0 0
    %2113 = vmatpush1.bf16.msra.mxu0 %v2094
    %2114 = vmatprep.subr.bf16.mxu0 0
    %2115 = vmatpush1.bf16.msra.mxu0 %v2093
    %2116 = vmatprep.subr.bf16.mxu0 0
    %2117 = vmatpush1.bf16.msra.mxu0 %v2092
    %2118 = vmatprep.subr.bf16.mxu0 0
    %2119 = vmatpush1.bf16.msra.mxu0 %v2091
    %2120 = vmatprep.subr.bf16.mxu0 0
    %2121 = vmatpush1.bf16.msra.mxu0 %v2090
    %2122 = vmatprep.subr.bf16.mxu0 0
    %2123 = vmatpush2.bf16.msra.mxu0 0
    %2124 = vmatprep.subr.bf16.mxu0 0
    %2125 = vmatpush2.bf16.msra.mxu0 0
    %2126 = vmatprep.subr.bf16.mxu0 0
    %2127 = vmatpush2.bf16.msra.mxu0 0
    %2128 = vmatprep.subr.bf16.mxu0 0
    %2129 = vmatpush2.bf16.msra.mxu0 0
    %2130 = vmatprep.subr.bf16.mxu0 0
    %2131 = vmatpush2.bf16.msra.mxu0 0
    %2132 = vmatprep.subr.bf16.mxu0 0
    %2133 = vmatpush2.bf16.msra.mxu0 0
    %2134 = vmatprep.subr.bf16.mxu0 0
    %2135 = vmatpush2.bf16.msra.mxu0 0
    %2136 = vmatprep.subr.bf16.mxu0 0
    %2137 = vmatpush2.bf16.msra.mxu0 0
    %2138 = vmatprep.mubr.bf16.mxu0 0
    %2139 = vmatmul.mubr.bf16.gmra.mxu0 %v2032
    %v2140 = vpop.f32.mrf.mxu0
    %v2141 = vadd.f32 %v2056, %v2140
    %v2142 = vpop.f32.mrf.mxu0
    %v2143 = vpop.f32.mrf.mxu0
    %v2144 = vadd.f32 %v2056, %v2143
    %v2145 = vpop.f32.mrf.mxu0
    %2146 = vdwg.mxu0
    %v2147 = vadd.f32 %v1942, %v2141
    %v2148 = vadd.f32 %v1943, %v2144
    %s2149 = scalar_lea.vmem %s13, 1
    %v2150 = vld [vmem:[%s2149] sm:$0x1]
    %s2151 = scalar_lea.vmem %s14, 1
    %v2152 = vld [vmem:[%s2151] sm:$0x1]
    %v2153 = vsel %vm92, %v2147, 0.0
    %2154 = vadd.xlane.f32.xlu0 %v2153
    %v2155 = vpop.xlane.xlu0 %2154
    %v2156 = vsel %vm92, %v2148, 0.0
    %2157 = vadd.xlane.f32.xlu0 %v2156
    %v2158 = vpop.xlane.xlu0 %2157
    %v2159 = vmul.f32 %v2155, %v846
    %v2160 = vmul.f32 %v2158, %v846
    %v2161 = vsub.f32 %v2147, %v2159
    %v2162 = vsub.f32 %v2148, %v2160
    %v2163 = vmul.f32 %v2161, %v2161
    %v2164 = vmul.f32 %v2162, %v2162
    %v2165 = vsel %vm92, %v2163, 0.0
    %2166 = vadd.xlane.f32.xlu0 %v2165
    %v2167 = vpop.xlane.xlu0 %2166
    %v2168 = vsel %vm92, %v2164, 0.0
    %2169 = vadd.xlane.f32.xlu0 %v2168
    %v2170 = vpop.xlane.xlu0 %2169
    %v2171 = vmul.f32 %v2167, %v846
    %v2172 = vmul.f32 %v2170, %v846
    %v2173 = vadd.f32 %v2171, 1e-12
    %v2174 = vadd.f32 %v2172, 1e-12
    %v2175 = vrsqrt.pop %v2173
    %v2176 = vrsqrt.pop %v2174
    %v2177 = vmul.f32 %v2161, %v2175
    %v2178 = vmul.f32 %v2162, %v2176
    %v2180 = vlaneseq
    %v2181 = vshrl.u32 %v2180, 7
    %v2182 = vsub.s32 0, %v2181
    %v2183 = vrot.slane %v2150, %v2182
    %v2185 = vmul.f32 %v2177, %v2183
    %v2186 = vmul.f32 %v2178, %v2183
    %v2188 = vlaneseq
    %v2189 = vshrl.u32 %v2188, 7
    %v2190 = vsub.s32 0, %v2189
    %v2191 = vrot.slane %v2152, %v2190
    %v2193 = vadd.f32 %v2185, %v2191
    %v2194 = vadd.f32 %v2186, %v2191
    %v2195 = vld [vmem:[%s2] sm:$0x1]
    %v2196 = vpack.c.bf16 %v2194, %v2193
    %v2198 = vsel %vm189, %v2195, 0
    %2200 = vmatprep.subr.bf16.mxu0 0
    %2201 = vmatpush1.bf16.msra.mxu0 0
    %2202 = vmatprep.subr.bf16.mxu0 0
    %2203 = vmatpush1.bf16.msra.mxu0 0
    %2204 = vmatprep.subr.bf16.mxu0 0
    %2205 = vmatpush1.bf16.msra.mxu0 0
    %2206 = vmatprep.subr.bf16.mxu0 0
    %2207 = vmatpush1.bf16.msra.mxu0 0
    %2208 = vmatprep.subr.bf16.mxu0 0
    %2209 = vmatpush1.bf16.msra.mxu0 0
    %2210 = vmatprep.subr.bf16.mxu0 0
    %2211 = vmatpush1.bf16.msra.mxu0 0
    %2212 = vmatprep.subr.bf16.mxu0 0
    %2213 = vmatpush1.bf16.msra.mxu0 0
    %2214 = vmatprep.subr.bf16.mxu0 0
    %2215 = vmatpush1.bf16.msra.mxu0 %v2196
    %2216 = vmatprep.subr.bf16.mxu0 0
    %2217 = vmatpush2.bf16.msra.mxu0 0
    %2218 = vmatprep.subr.bf16.mxu0 0
    %2219 = vmatpush2.bf16.msra.mxu0 0
    %2220 = vmatprep.subr.bf16.mxu0 0
    %2221 = vmatpush2.bf16.msra.mxu0 0
    %2222 = vmatprep.subr.bf16.mxu0 0
    %2223 = vmatpush2.bf16.msra.mxu0 0
    %2224 = vmatprep.subr.bf16.mxu0 0
    %2225 = vmatpush2.bf16.msra.mxu0 0
    %2226 = vmatprep.subr.bf16.mxu0 0
    %2227 = vmatpush2.bf16.msra.mxu0 0
    %2228 = vmatprep.subr.bf16.mxu0 0
    %2229 = vmatpush2.bf16.msra.mxu0 0
    %2230 = vmatprep.subr.bf16.mxu0 0
    %2231 = vmatpush2.bf16.msra.mxu0 0
    %2232 = vmatprep.mubr.bf16.mxu0 0
    %2233 = vmatmul.mubr.bf16.gmra.mxu0 %v2198
    %v2234 = vpop.f32.mrf.mxu0
    %v2235 = vadd.f32 0.0, %v2234
    %v2236 = vpop.f32.mrf.mxu0
    %v2237 = vpop.f32.mrf.mxu0
    %v2238 = vpop.f32.mrf.mxu0
    %2239 = vdwg.mxu0
    %v2240 = vpack.c.bf16 %v2235, %v2235
    %v2241 = vld [vmem:[%s15] sm:$0xf]
    %v2242 = vld [vmem:[%s15 + $0x4] sm:$0xf]
    %v2243 = vld [vmem:[%s15 + $0x8] sm:$0xf]
    %v2244 = vld [vmem:[%s15 + $0xc] sm:$0xf]
    %v2245 = vld [vmem:[%s16] sm:$0x1]
    %v2247 = vlaneseq
    %v2248 = vshrl.u32 %v2247, 7
    %v2249 = vsub.s32 0, %v2248
    %v2250 = vrot.slane %v2245, %v2249
    %v2256 = vunpack.c.l.b16 %v2241
    %v2257 = vunpack.c.l.b16 %v2242
    %v2258 = vunpack.c.l.b16 %v2243
    %v2259 = vunpack.c.l.b16 %v2244
    %v2260 = vpack.c.b16 %v2257, %v2256
    %v2261 = vpack.c.b16 %v2259, %v2258
    %v2265 = vsel %vm92, %v2240, 0
    %2267 = vmatprep.subr.bf16.mxu0 0
    %2268 = vmatpush1.bf16.msra.mxu0 0
    %2269 = vmatprep.subr.bf16.mxu0 0
    %2270 = vmatpush1.bf16.msra.mxu0 0
    %2271 = vmatprep.subr.bf16.mxu0 0
    %2272 = vmatpush1.bf16.msra.mxu0 0
    %2273 = vmatprep.subr.bf16.mxu0 0
    %2274 = vmatpush1.bf16.msra.mxu0 0
    %2275 = vmatprep.subr.bf16.mxu0 0
    %2276 = vmatpush1.bf16.msra.mxu0 0
    %2277 = vmatprep.subr.bf16.mxu0 0
    %2278 = vmatpush1.bf16.msra.mxu0 0
    %2279 = vmatprep.subr.bf16.mxu0 0
    %2280 = vmatpush1.bf16.msra.mxu0 %v2261
    %2281 = vmatprep.subr.bf16.mxu0 0
    %2282 = vmatpush1.bf16.msra.mxu0 %v2260
    %2283 = vmatprep.subr.bf16.mxu0 0
    %2284 = vmatpush2.bf16.msra.mxu0 0
    %2285 = vmatprep.subr.bf16.mxu0 0
    %2286 = vmatpush2.bf16.msra.mxu0 0
    %2287 = vmatprep.subr.bf16.mxu0 0
    %2288 = vmatpush2.bf16.msra.mxu0 0
    %2289 = vmatprep.subr.bf16.mxu0 0
    %2290 = vmatpush2.bf16.msra.mxu0 0
    %2291 = vmatprep.subr.bf16.mxu0 0
    %2292 = vmatpush2.bf16.msra.mxu0 0
    %2293 = vmatprep.subr.bf16.mxu0 0
    %2294 = vmatpush2.bf16.msra.mxu0 0
    %2295 = vmatprep.subr.bf16.mxu0 0
    %2296 = vmatpush2.bf16.msra.mxu0 0
    %2297 = vmatprep.subr.bf16.mxu0 0
    %2298 = vmatpush2.bf16.msra.mxu0 0
    %2299 = vmatprep.mubr.bf16.mxu0 0
    %2300 = vmatmul.mubr.bf16.gmra.mxu0 %v2265
    %v2301 = vpop.f32.mrf.mxu0
    %v2302 = vadd.f32 %v2250, %v2301
    %v2303 = vpop.f32.mrf.mxu0
    %v2304 = vpop.f32.mrf.mxu0
    %v2305 = vpop.f32.mrf.mxu0
    %2306 = vdwg.mxu0
    %v2307 = vtanh.pop %v2302
    %v2308 = vpack.c.bf16 %v2307, %v2307
    %v2309 = vld [vmem:[%s17] sm:$0xf]
    %v2310 = vld [vmem:[%s17 + $0x4] sm:$0xf]
    %v2311 = vld [vmem:[%s17 + $0x8] sm:$0xf]
    %v2312 = vld [vmem:[%s17 + $0xc] sm:$0xf]
    %v2313 = vld [vmem:[%s18] sm:$0x1]
    %v2315 = vlaneseq
    %v2316 = vshrl.u32 %v2315, 7
    %v2317 = vsub.s32 0, %v2316
    %v2318 = vrot.slane %v2313, %v2317
    %v2324 = vunpack.c.l.b16 %v2309
    %v2325 = vunpack.c.l.b16 %v2310
    %v2326 = vunpack.c.l.b16 %v2311
    %v2327 = vunpack.c.l.b16 %v2312
    %v2328 = vpack.c.b16 %v2325, %v2324
    %v2329 = vpack.c.b16 %v2327, %v2326
    %v2333 = vsel %vm92, %v2308, 0
    %2335 = vmatprep.subr.bf16.mxu0 0
    %2336 = vmatpush1.bf16.msra.mxu0 0
    %2337 = vmatprep.subr.bf16.mxu0 0
    %2338 = vmatpush1.bf16.msra.mxu0 0
    %2339 = vmatprep.subr.bf16.mxu0 0
    %2340 = vmatpush1.bf16.msra.mxu0 0
    %2341 = vmatprep.subr.bf16.mxu0 0
    %2342 = vmatpush1.bf16.msra.mxu0 0
    %2343 = vmatprep.subr.bf16.mxu0 0
    %2344 = vmatpush1.bf16.msra.mxu0 0
    %2345 = vmatprep.subr.bf16.mxu0 0
    %2346 = vmatpush1.bf16.msra.mxu0 0
    %2347 = vmatprep.subr.bf16.mxu0 0
    %2348 = vmatpush1.bf16.msra.mxu0 %v2329
    %2349 = vmatprep.subr.bf16.mxu0 0
    %2350 = vmatpush1.bf16.msra.mxu0 %v2328
    %2351 = vmatprep.subr.bf16.mxu0 0
    %2352 = vmatpush2.bf16.msra.mxu0 0
    %2353 = vmatprep.subr.bf16.mxu0 0
    %2354 = vmatpush2.bf16.msra.mxu0 0
    %2355 = vmatprep.subr.bf16.mxu0 0
    %2356 = vmatpush2.bf16.msra.mxu0 0
    %2357 = vmatprep.subr.bf16.mxu0 0
    %2358 = vmatpush2.bf16.msra.mxu0 0
    %2359 = vmatprep.subr.bf16.mxu0 0
    %2360 = vmatpush2.bf16.msra.mxu0 0
    %2361 = vmatprep.subr.bf16.mxu0 0
    %2362 = vmatpush2.bf16.msra.mxu0 0
    %2363 = vmatprep.subr.bf16.mxu0 0
    %2364 = vmatpush2.bf16.msra.mxu0 0
    %2365 = vmatprep.subr.bf16.mxu0 0
    %2366 = vmatpush2.bf16.msra.mxu0 0
    %2367 = vmatprep.mubr.bf16.mxu0 0
    %2368 = vmatmul.mubr.bf16.gmra.mxu0 %v2333
    %v2369 = vpop.f32.mrf.mxu0
    %v2370 = vadd.f32 %v2318, %v2369
    %v2371 = vpop.f32.mrf.mxu0
    %v2372 = vpop.f32.mrf.mxu0
    %v2373 = vpop.f32.mrf.mxu0
    %2374 = vdwg.mxu0
    %2375 = vst [vmem:[#allocation2] sm:$0x3] %v2370
    // Predicated region
    $region78: #{bert_news_classifier.1} parent=1 // pred_check
      _
    $region79: #{bert_news_classifier.1} parent=1 // pred_check_branch
      %2377 = sbr.rel (0) target = $region81
    $region80: #{bert_news_classifier.1} parent=1 // pred_region
      %s2379 = ssub.s32 32, 32
      %2380 = vsyncadd [#allocation3], %s2379
      %s2382 = sshll.u32 [#allocation2], 4
      %s2383 = int_to_ptr.vmem [resolvable:$true] %s2382
      %2385 = dma.vmem_to_hbm [thread:$0]  %s2383, 32, %s19, [#allocation3]
    $region81: #{bert_news_classifier.1} parent=1 // pred_fallthru
      _
    // Predicated region
    $region82: #{bert_news_classifier.1} parent=1 // pred_check
      _
    $region83: #{bert_news_classifier.1} parent=1 // pred_check_branch
      %2387 = sbr.rel (0) target = $region85
    $region84: #{bert_news_classifier.1} parent=1 // pred_region
      %2388 = dma.done [#allocation3], 32
    $region85: #{bert_news_classifier.1} parent=1 // pred_fallthru
      _
    %2389 = vsyncpa [#allocation3], 1

</llo_original>
